<compile_context>
chip_gen: v7x
topology: tpu7x:2x2x1
jax: 0.10.0
libtpu: 0.0.40
codegen_flags: <defaults>
</compile_context>

<pallas_src>
import functools

import numpy as np
import jax
import jax.numpy as jnp
from jax.experimental import pallas as pl
from jax.experimental.pallas import tpu as pltpu

_VMEM = pl.BlockSpec(memory_space=pltpu.MemorySpace.VMEM)


# ------------------------------ kernel helpers ------------------------------ #

def _conv_relu(load_shift, a_ref, bt_ref, kh):
    """relu(bias + sum_i load_shift(i) @ A[i]).

    load_shift(i): (Ho, Wp*Cin) slab of the (padded) input shifted by i rows.
    a_ref:         (kh, Wp*Cin, Wo*Cout) structured conv weight (built at init).
    bt_ref:        (1, Wo*Cout) bias tiled over output columns.
    Returns an (Ho, Wo*Cout) value (layout (h, w*c), lane-dense: 192 lanes).
    """
    acc = jnp.dot(load_shift(0), a_ref[0], preferred_element_type=jnp.float32)
    for i in range(1, kh):
        acc = acc + jnp.dot(load_shift(i), a_ref[i],
                            preferred_element_type=jnp.float32)
    return jnp.maximum(acc + bt_ref[...], 0.0)


def _pool_into(y, dst_ref, rp_ref, *, hpo, wpo, c, row_off, col_off):
    """2x2/stride-2 max pool of y (2*hpo, 2*wpo*c) in (h, w*c) layout.

    Writes the pooled (hpo, wpo*c) result into dst_ref at [row_off:, col_off:]
    (dst is either the zero-padded input slab of the next conv, or a plain
    buffer). rp_ref is a (>=hpo, 2*wpo*c) VMEM scratch for the row-pooled slab.
    """
    for k in range(hpo):
        rp_ref[k:k + 1, :] = jnp.maximum(y[2 * k:2 * k + 1, :],
                                         y[2 * k + 1:2 * k + 2, :])
    for w in range(wpo):
        left = rp_ref[0:hpo, (2 * w) * c:(2 * w + 1) * c]
        right = rp_ref[0:hpo, (2 * w + 1) * c:(2 * w + 2) * c]
        dst_ref[row_off:row_off + hpo,
                col_off + w * c:col_off + (w + 1) * c] = jnp.maximum(left, right)


# --------------------------------- kernel ----------------------------------- #

def _cnn_kernel(x_ref, a1_ref, bt1_ref, a2_ref, bt2_ref, a3_ref, bt3_ref,
                wf1_ref, bf1_ref, wf2_ref, bf2_ref, wf3_ref, bf3_ref,
                o_ref,
                s1_ref, s2_ref, rp_ref, p3_ref, sf_ref, *, n_batch):
    # Zero the padded scratch slabs once; only their interiors are rewritten
    # per image, the 1-pixel zero border persists across images.
    s1_ref[...] = jnp.zeros_like(s1_ref)
    s2_ref[...] = jnp.zeros_like(s2_ref)

    for n in range(n_batch):
        # stage 1: conv 5x5 (1->8), pad 0, ReLU, pool: 28x28x1 -> 24x24x8 -> 12x12x8
        y = _conv_relu(lambda i: x_ref[n, i:i + 24, :], a1_ref, bt1_ref, kh=5)
        _pool_into(y, s1_ref, rp_ref, hpo=12, wpo=12, c=8, row_off=1, col_off=8)

        # stage 2: conv 3x3 (8->16), pad 1, ReLU, pool: 12x12x8 -> 12x12x16 -> 6x6x16
        y = _conv_relu(lambda i: s1_ref[i:i + 12, :], a2_ref, bt2_ref, kh=3)
        _pool_into(y, s2_ref, rp_ref, hpo=6, wpo=6, c=16, row_off=1, col_off=16)

        # stage 3: conv 3x3 (16->32), pad 1, ReLU, pool: 6x6x16 -> 6x6x32 -> 3x3x32
        y = _conv_relu(lambda i: s2_ref[i:i + 6, :], a3_ref, bt3_ref, kh=3)
        _pool_into(y, p3_ref, rp_ref, hpo=3, wpo=3, c=32, row_off=0, col_off=0)

        # flatten (h, w, c) per image into the FC input slab (fc1 rows were
        # permuted at init to account for torch's NCHW flatten order).
        for h in range(3):
            sf_ref[n:n + 1, h * 96:(h + 1) * 96] = p3_ref[h:h + 1, :]

    # fully-connected head, batched over all images.
    x = sf_ref[...]                                                    # (N, 288)
    h1 = jnp.maximum(
        jnp.dot(x, wf1_ref[...], preferred_element_type=jnp.float32) + bf1_ref[...], 0.0)
    # TODO(synk): training-mode stochastic dropout (p=0.5) not implemented; inference identity.
    h2 = jnp.maximum(
        jnp.dot(h1, wf2_ref[...], preferred_element_type=jnp.float32) + bf2_ref[...], 0.0)
    out = jnp.dot(h2, wf3_ref[...], preferred_element_type=jnp.float32) + bf3_ref[...]
    o_ref[...] = out.astype(o_ref.dtype)


# ------------------------------ parameters ---------------------------------- #

def init_params(key):
    ks = jax.random.split(key, 12)

    def u(k, shape, fan_in):
        bound = 1.0 / np.sqrt(float(fan_in))
        return jax.random.uniform(k, shape, jnp.float32, -bound, bound)

    return {
        # conv weights in torch layout (Cout, Cin, kh, kw)
        "w1": u(ks[0], (8, 1, 5, 5), 1 * 5 * 5),    "b1": u(ks[1], (8,), 1 * 5 * 5),
        "w2": u(ks[2], (16, 8, 3, 3), 8 * 3 * 3),   "b2": u(ks[3], (16,), 8 * 3 * 3),
        "w3": u(ks[4], (32, 16, 3, 3), 16 * 3 * 3), "b3": u(ks[5], (32,), 16 * 3 * 3),
        # fc weights stored as (in, out); "in" indexed in torch (C,H,W) flatten order
        "wfc1": u(ks[6], (32 * 3 * 3, 120), 32 * 3 * 3), "bfc1": u(ks[7], (120,), 32 * 3 * 3),
        "wfc2": u(ks[8], (120, 84), 120),                "bfc2": u(ks[9], (84,), 120),
        "wfc3": u(ks[10], (84, 10), 84),                 "bfc3": u(ks[11], (10,), 84),
    }


def prepare_params(params):
    """One-time layout baking: conv weights -> structured matmul matrices,
    tiled biases, and the NCHW-flatten permutation folded into fc1."""

    def conv_matrix(w_oihw, wp, wo):
        # A[i, w*Cin + ci, wo*Cout + co] = W[co, ci, i, w - wo]  (0 <= w-wo < kw)
        w = np.asarray(w_oihw, np.float32)
        cout, cin, kh, kw = w.shape
        a = np.zeros((kh, wp * cin, wo * cout), np.float32)
        for i in range(kh):
            for j in range(kw):
                blk = w[:, :, i, j].T                      # (Cin, Cout)
                for o in range(wo):
                    a[i, (o + j) * cin:(o + j + 1) * cin,
                      o * cout:(o + 1) * cout] = blk
        return jnp.asarray(a)

    def tiled_bias(b, wo):
        return jnp.tile(jnp.asarray(b, jnp.float32), wo).reshape(1, -1)

    # fc1 rows: torch flatten order (c*9 + h*3 + w)  ->  kernel order (h*96 + w*32 + c)
    wf1 = jnp.asarray(params["wfc1"], jnp.float32)
    wf1 = jnp.transpose(wf1.reshape(32, 3, 3, 120), (1, 2, 0, 3)).reshape(288, 120)

    return {
        "a1": conv_matrix(params["w1"], 28, 24), "bt1": tiled_bias(params["b1"], 24),
        "a2": conv_matrix(params["w2"], 14, 12), "bt2": tiled_bias(params["b2"], 12),
        "a3": conv_matrix(params["w3"], 8, 6),   "bt3": tiled_bias(params["b3"], 6),
        "wf1": wf1,
        "bf1": jnp.reshape(jnp.asarray(params["bfc1"], jnp.float32), (1, -1)),
        "wf2": jnp.asarray(params["wfc2"], jnp.float32),
        "bf2": jnp.reshape(jnp.asarray(params["bfc2"], jnp.float32), (1, -1)),
        "wf3": jnp.asarray(params["wfc3"], jnp.float32),
        "bf3": jnp.reshape(jnp.asarray(params["bfc3"], jnp.float32), (1, -1)),
    }


# -------------------------------- forward ----------------------------------- #

@jax.jit
def cnn_forward(prep, x_nchw):
    n = x_nchw.shape[0]
    # Cin = 1, so NCHW (N,1,28,28) is already the (h, w*c) slab layout per image.
    x = x_nchw.astype(jnp.float32).reshape(n, 28, 28)
    kernel = functools.partial(_cnn_kernel, n_batch=n)
    return pl.pallas_call(
        kernel,
        out_shape=jax.ShapeDtypeStruct((n, 10), jnp.float32),
        in_specs=[_VMEM] * 13,
        out_specs=_VMEM,
        scratch_shapes=[
            pltpu.VMEM((14, 112), jnp.float32),   # padded pool-1 output (conv2 input)
            pltpu.VMEM((8, 128), jnp.float32),    # padded pool-2 output (conv3 input)
            pltpu.VMEM((12, 192), jnp.float32),   # row-pooled intermediate (reused per stage)
            pltpu.VMEM((3, 96), jnp.float32),     # pool-3 output (pre-flatten)
            pltpu.VMEM((n, 288), jnp.float32),    # flattened FC input
        ],
    )(x, prep["a1"], prep["bt1"], prep["a2"], prep["bt2"], prep["a3"], prep["bt3"],
      prep["wf1"], prep["bf1"], prep["wf2"], prep["bf2"], prep["wf3"], prep["bf3"])


# --------------------------- plain-JAX reference ----------------------------- #

def reference_forward(params, x_nchw):
    def conv(x, w, b, pad):
        y = jax.lax.conv_general_dilated(
            x, w, window_strides=(1, 1), padding=[(pad, pad), (pad, pad)],
            dimension_numbers=("NCHW", "OIHW", "NCHW"),
            precision=jax.lax.Precision.HIGHEST)
        return jax.nn.relu(y + b.reshape(1, -1, 1, 1))

    def pool(x):
        return jax.lax.reduce_window(x, -jnp.inf, jax.lax.max,
                                     (1, 1, 2, 2), (1, 1, 2, 2), "VALID")

    x = pool(conv(x_nchw.astype(jnp.float32), params["w1"], params["b1"], 0))
    x = pool(conv(x, params["w2"], params["b2"], 1))
    x = pool(conv(x, params["w3"], params["b3"], 1))
    x = x.reshape(x.shape[0], -1)                    # NCHW flatten, matches torch .view
    x = jax.nn.relu(x @ params["wfc1"] + params["bfc1"])
    x = jax.nn.relu(x @ params["wfc2"] + params["bfc2"])
    return x @ params["wfc3"] + params["bfc3"]


# ---------------------------------- main ------------------------------------ #

if __name__ == "__main__":
    key = jax.random.PRNGKey(0)
    k_param, k_input = jax.random.split(key)
    params = init_params(k_param)
    prep = prepare_params(params)

    # Architecture requires 28x28 single-channel input (fc1 expects 32*3*3).
    x = jax.random.normal(k_input, (2, 1, 28, 28), dtype=jnp.float32)

    out = jax.block_until_ready(cnn_forward(prep, x))
    assert out.shape == (2, 10), out.shape

    ref = jax.block_until_ready(reference_forward(params, x))
    max_err = float(jnp.max(jnp.abs(out - ref)))
    assert max_err < 2e-3, f"mismatch vs reference: max abs err = {max_err}"

    print("KERNEL_OK")
</pallas_src>

<mosaic_0001>
module attributes {stable_mosaic.version = 11 : i64} {
  func.func @_cnn_kernel(%arg0: memref<2x28x28xf32, #tpu.memory_space<vmem>>, %arg1: memref<5x28x192xf32, #tpu.memory_space<vmem>>, %arg2: memref<1x192xf32, #tpu.memory_space<vmem>>, %arg3: memref<3x112x192xf32, #tpu.memory_space<vmem>>, %arg4: memref<1x192xf32, #tpu.memory_space<vmem>>, %arg5: memref<3x128x192xf32, #tpu.memory_space<vmem>>, %arg6: memref<1x192xf32, #tpu.memory_space<vmem>>, %arg7: memref<288x120xf32, #tpu.memory_space<vmem>>, %arg8: memref<1x120xf32, #tpu.memory_space<vmem>>, %arg9: memref<120x84xf32, #tpu.memory_space<vmem>>, %arg10: memref<1x84xf32, #tpu.memory_space<vmem>>, %arg11: memref<84x10xf32, #tpu.memory_space<vmem>>, %arg12: memref<1x10xf32, #tpu.memory_space<vmem>>, %arg13: memref<2x10xf32, #tpu.memory_space<vmem>>, %arg14: memref<14x112xf32, #tpu.memory_space<vmem>>, %arg15: memref<8x128xf32, #tpu.memory_space<vmem>>, %arg16: memref<12x192xf32, #tpu.memory_space<vmem>>, %arg17: memref<3x96xf32, #tpu.memory_space<vmem>>, %arg18: memref<2x288xf32, #tpu.memory_space<vmem>>) attributes {dimension_semantics = [], scalar_prefetch = 0 : i64, scratch_operands = 5 : i64, tpu.core_type = #tpu.core_type<tc>} {
    %cst = arith.constant 0.000000e+00 : f32
    %0 = vector.broadcast %cst : f32 to vector<14x112xf32>
    %c0 = arith.constant 0 : index
    %c0_0 = arith.constant 0 : index
    %1 = vector.load %arg14[%c0, %c0_0] : memref<14x112xf32, #tpu.memory_space<vmem>>, vector<14x112xf32>
    tpu.vector_store %arg14[%c0, %c0_0], %0 {strides = array<i32>} : memref<14x112xf32, #tpu.memory_space<vmem>>, vector<14x112xf32>,
    %cst_1 = arith.constant 0.000000e+00 : f32
    %2 = vector.broadcast %cst_1 : f32 to vector<8x128xf32>
    %c0_2 = arith.constant 0 : index
    %c0_3 = arith.constant 0 : index
    %3 = vector.load %arg15[%c0_2, %c0_3] : memref<8x128xf32, #tpu.memory_space<vmem>>, vector<8x128xf32>
    tpu.vector_store %arg15[%c0_2, %c0_3], %2 {strides = array<i32>} : memref<8x128xf32, #tpu.memory_space<vmem>>, vector<8x128xf32>,
    %c0_4 = arith.constant 0 : index
    %c0_5 = arith.constant 0 : index
    %c0_6 = arith.constant 0 : index
    %4 = vector.load %arg0[%c0_4, %c0_5, %c0_6] : memref<2x28x28xf32, #tpu.memory_space<vmem>>, vector<1x24x28xf32>
    %5 = vector.shape_cast %4 : vector<1x24x28xf32> to vector<24x28xf32>
    %c0_7 = arith.constant 0 : index
    %c0_8 = arith.constant 0 : index
    %c0_9 = arith.constant 0 : index
    %6 = vector.load %arg1[%c0_7, %c0_8, %c0_9] : memref<5x28x192xf32, #tpu.memory_space<vmem>>, vector<1x28x192xf32>
    %7 = vector.shape_cast %6 : vector<1x28x192xf32> to vector<28x192xf32>
    %cst_10 = arith.constant dense<0.000000e+00> : vector<24x192xf32>
    %8 = tpu.matmul %5, %7, %cst_10 {dimension_numbers = #tpu.dot_dimension_numbers<[1], [0], [0], [1], [0, 0, 1, 1], [], []>} : vector<24x28xf32>, vector<28x192xf32>, vector<24x192xf32> -> vector<24x192xf32>
    %c0_11 = arith.constant 0 : index
    %c1 = arith.constant 1 : index
    %c0_12 = arith.constant 0 : index
    %9 = vector.load %arg0[%c0_11, %c1, %c0_12] : memref<2x28x28xf32, #tpu.memory_space<vmem>>, vector<1x24x28xf32>
    %10 = vector.shape_cast %9 : vector<1x24x28xf32> to vector<24x28xf32>
    %c1_13 = arith.constant 1 : index
    %c0_14 = arith.constant 0 : index
    %c0_15 = arith.constant 0 : index
    %11 = vector.load %arg1[%c1_13, %c0_14, %c0_15] : memref<5x28x192xf32, #tpu.memory_space<vmem>>, vector<1x28x192xf32>
    %12 = vector.shape_cast %11 : vector<1x28x192xf32> to vector<28x192xf32>
    %cst_16 = arith.constant dense<0.000000e+00> : vector<24x192xf32>
    %13 = tpu.matmul %10, %12, %cst_16 {dimension_numbers = #tpu.dot_dimension_numbers<[1], [0], [0], [1], [0, 0, 1, 1], [], []>} : vector<24x28xf32>, vector<28x192xf32>, vector<24x192xf32> -> vector<24x192xf32>
    %14 = arith.addf %8, %13 : vector<24x192xf32>
    %c0_17 = arith.constant 0 : index
    %c2 = arith.constant 2 : index
    %c0_18 = arith.constant 0 : index
    %15 = vector.load %arg0[%c0_17, %c2, %c0_18] : memref<2x28x28xf32, #tpu.memory_space<vmem>>, vector<1x24x28xf32>
    %16 = vector.shape_cast %15 : vector<1x24x28xf32> to vector<24x28xf32>
    %c2_19 = arith.constant 2 : index
    %c0_20 = arith.constant 0 : index
    %c0_21 = arith.constant 0 : index
    %17 = vector.load %arg1[%c2_19, %c0_20, %c0_21] : memref<5x28x192xf32, #tpu.memory_space<vmem>>, vector<1x28x192xf32>
    %18 = vector.shape_cast %17 : vector<1x28x192xf32> to vector<28x192xf32>
    %cst_22 = arith.constant dense<0.000000e+00> : vector<24x192xf32>
    %19 = tpu.matmul %16, %18, %cst_22 {dimension_numbers = #tpu.dot_dimension_numbers<[1], [0], [0], [1], [0, 0, 1, 1], [], []>} : vector<24x28xf32>, vector<28x192xf32>, vector<24x192xf32> -> vector<24x192xf32>
    %20 = arith.addf %14, %19 : vector<24x192xf32>
    %c0_23 = arith.constant 0 : index
    %c3 = arith.constant 3 : index
    %c0_24 = arith.constant 0 : index
    %21 = vector.load %arg0[%c0_23, %c3, %c0_24] : memref<2x28x28xf32, #tpu.memory_space<vmem>>, vector<1x24x28xf32>
    %22 = vector.shape_cast %21 : vector<1x24x28xf32> to vector<24x28xf32>
    %c3_25 = arith.constant 3 : index
    %c0_26 = arith.constant 0 : index
    %c0_27 = arith.constant 0 : index
    %23 = vector.load %arg1[%c3_25, %c0_26, %c0_27] : memref<5x28x192xf32, #tpu.memory_space<vmem>>, vector<1x28x192xf32>
    %24 = vector.shape_cast %23 : vector<1x28x192xf32> to vector<28x192xf32>
    %cst_28 = arith.constant dense<0.000000e+00> : vector<24x192xf32>
    %25 = tpu.matmul %22, %24, %cst_28 {dimension_numbers = #tpu.dot_dimension_numbers<[1], [0], [0], [1], [0, 0, 1, 1], [], []>} : vector<24x28xf32>, vector<28x192xf32>, vector<24x192xf32> -> vector<24x192xf32>
    %26 = arith.addf %20, %25 : vector<24x192xf32>
    %c0_29 = arith.constant 0 : index
    %c4 = arith.constant 4 : index
    %c0_30 = arith.constant 0 : index
    %27 = vector.load %arg0[%c0_29, %c4, %c0_30] : memref<2x28x28xf32, #tpu.memory_space<vmem>>, vector<1x24x28xf32>
    %28 = vector.shape_cast %27 : vector<1x24x28xf32> to vector<24x28xf32>
    %c4_31 = arith.constant 4 : index
    %c0_32 = arith.constant 0 : index
    %c0_33 = arith.constant 0 : index
    %29 = vector.load %arg1[%c4_31, %c0_32, %c0_33] : memref<5x28x192xf32, #tpu.memory_space<vmem>>, vector<1x28x192xf32>
    %30 = vector.shape_cast %29 : vector<1x28x192xf32> to vector<28x192xf32>
    %cst_34 = arith.constant dense<0.000000e+00> : vector<24x192xf32>
    %31 = tpu.matmul %28, %30, %cst_34 {dimension_numbers = #tpu.dot_dimension_numbers<[1], [0], [0], [1], [0, 0, 1, 1], [], []>} : vector<24x28xf32>, vector<28x192xf32>, vector<24x192xf32> -> vector<24x192xf32>
    %32 = arith.addf %26, %31 : vector<24x192xf32>
    %c0_35 = arith.constant 0 : index
    %c0_36 = arith.constant 0 : index
    %33 = vector.load %arg2[%c0_35, %c0_36] : memref<1x192xf32, #tpu.memory_space<vmem>>, vector<1x192xf32>
    %34 = vector.broadcast %33 : vector<1x192xf32> to vector<24x192xf32>
    %35 = arith.addf %32, %34 : vector<24x192xf32>
    %cst_37 = arith.constant 0.000000e+00 : f32
    %36 = vector.broadcast %cst_37 : f32 to vector<24x192xf32>
    %37 = arith.maximumf %35, %36 : vector<24x192xf32>
    %38 = vector.extract_strided_slice %37 {offsets = [0, 0], sizes = [1, 192], strides = [1, 1]} : vector<24x192xf32> to vector<1x192xf32>
    %39 = vector.extract_strided_slice %37 {offsets = [1, 0], sizes = [1, 192], strides = [1, 1]} : vector<24x192xf32> to vector<1x192xf32>
    %40 = arith.maximumf %38, %39 : vector<1x192xf32>
    %c0_38 = arith.constant 0 : index
    %c0_39 = arith.constant 0 : index
    %41 = vector.load %arg16[%c0_38, %c0_39] : memref<12x192xf32, #tpu.memory_space<vmem>>, vector<1x192xf32>
    tpu.vector_store %arg16[%c0_38, %c0_39], %40 {strides = array<i32>} : memref<12x192xf32, #tpu.memory_space<vmem>>, vector<1x192xf32>,
    %42 = vector.extract_strided_slice %37 {offsets = [2, 0], sizes = [1, 192], strides = [1, 1]} : vector<24x192xf32> to vector<1x192xf32>
    %43 = vector.extract_strided_slice %37 {offsets = [3, 0], sizes = [1, 192], strides = [1, 1]} : vector<24x192xf32> to vector<1x192xf32>
    %44 = arith.maximumf %42, %43 : vector<1x192xf32>
    %c1_40 = arith.constant 1 : index
    %c0_41 = arith.constant 0 : index
    %45 = vector.load %arg16[%c1_40, %c0_41] : memref<12x192xf32, #tpu.memory_space<vmem>>, vector<1x192xf32>
    tpu.vector_store %arg16[%c1_40, %c0_41], %44 {strides = array<i32>} : memref<12x192xf32, #tpu.memory_space<vmem>>, vector<1x192xf32>,
    %46 = vector.extract_strided_slice %37 {offsets = [4, 0], sizes = [1, 192], strides = [1, 1]} : vector<24x192xf32> to vector<1x192xf32>
    %47 = vector.extract_strided_slice %37 {offsets = [5, 0], sizes = [1, 192], strides = [1, 1]} : vector<24x192xf32> to vector<1x192xf32>
    %48 = arith.maximumf %46, %47 : vector<1x192xf32>
    %c2_42 = arith.constant 2 : index
    %c0_43 = arith.constant 0 : index
    %49 = vector.load %arg16[%c2_42, %c0_43] : memref<12x192xf32, #tpu.memory_space<vmem>>, vector<1x192xf32>
    tpu.vector_store %arg16[%c2_42, %c0_43], %48 {strides = array<i32>} : memref<12x192xf32, #tpu.memory_space<vmem>>, vector<1x192xf32>,
    %50 = vector.extract_strided_slice %37 {offsets = [6, 0], sizes = [1, 192], strides = [1, 1]} : vector<24x192xf32> to vector<1x192xf32>
    %51 = vector.extract_strided_slice %37 {offsets = [7, 0], sizes = [1, 192], strides = [1, 1]} : vector<24x192xf32> to vector<1x192xf32>
    %52 = arith.maximumf %50, %51 : vector<1x192xf32>
    %c3_44 = arith.constant 3 : index
    %c0_45 = arith.constant 0 : index
    %53 = vector.load %arg16[%c3_44, %c0_45] : memref<12x192xf32, #tpu.memory_space<vmem>>, vector<1x192xf32>
    tpu.vector_store %arg16[%c3_44, %c0_45], %52 {strides = array<i32>} : memref<12x192xf32, #tpu.memory_space<vmem>>, vector<1x192xf32>,
    %54 = vector.extract_strided_slice %37 {offsets = [8, 0], sizes = [1, 192], strides = [1, 1]} : vector<24x192xf32> to vector<1x192xf32>
    %55 = vector.extract_strided_slice %37 {offsets = [9, 0], sizes = [1, 192], strides = [1, 1]} : vector<24x192xf32> to vector<1x192xf32>
    %56 = arith.maximumf %54, %55 : vector<1x192xf32>
    %c4_46 = arith.constant 4 : index
    %c0_47 = arith.constant 0 : index
    %57 = vector.load %arg16[%c4_46, %c0_47] : memref<12x192xf32, #tpu.memory_space<vmem>>, vector<1x192xf32>
    tpu.vector_store %arg16[%c4_46, %c0_47], %56 {strides = array<i32>} : memref<12x192xf32, #tpu.memory_space<vmem>>, vector<1x192xf32>,
    %58 = vector.extract_strided_slice %37 {offsets = [10, 0], sizes = [1, 192], strides = [1, 1]} : vector<24x192xf32> to vector<1x192xf32>
    %59 = vector.extract_strided_slice %37 {offsets = [11, 0], sizes = [1, 192], strides = [1, 1]} : vector<24x192xf32> to vector<1x192xf32>
    %60 = arith.maximumf %58, %59 : vector<1x192xf32>
    %c5 = arith.constant 5 : index
    %c0_48 = arith.constant 0 : index
    %61 = vector.load %arg16[%c5, %c0_48] : memref<12x192xf32, #tpu.memory_space<vmem>>, vector<1x192xf32>
    tpu.vector_store %arg16[%c5, %c0_48], %60 {strides = array<i32>} : memref<12x192xf32, #tpu.memory_space<vmem>>, vector<1x192xf32>,
    %62 = vector.extract_strided_slice %37 {offsets = [12, 0], sizes = [1, 192], strides = [1, 1]} : vector<24x192xf32> to vector<1x192xf32>
    %63 = vector.extract_strided_slice %37 {offsets = [13, 0], sizes = [1, 192], strides = [1, 1]} : vector<24x192xf32> to vector<1x192xf32>
    %64 = arith.maximumf %62, %63 : vector<1x192xf32>
    %c6 = arith.constant 6 : index
    %c0_49 = arith.constant 0 : index
    %65 = vector.load %arg16[%c6, %c0_49] : memref<12x192xf32, #tpu.memory_space<vmem>>, vector<1x192xf32>
    tpu.vector_store %arg16[%c6, %c0_49], %64 {strides = array<i32>} : memref<12x192xf32, #tpu.memory_space<vmem>>, vector<1x192xf32>,
    %66 = vector.extract_strided_slice %37 {offsets = [14, 0], sizes = [1, 192], strides = [1, 1]} : vector<24x192xf32> to vector<1x192xf32>
    %67 = vector.extract_strided_slice %37 {offsets = [15, 0], sizes = [1, 192], strides = [1, 1]} : vector<24x192xf32> to vector<1x192xf32>
    %68 = arith.maximumf %66, %67 : vector<1x192xf32>
    %c7 = arith.constant 7 : index
    %c0_50 = arith.constant 0 : index
    %69 = vector.load %arg16[%c7, %c0_50] : memref<12x192xf32, #tpu.memory_space<vmem>>, vector<1x192xf32>
    tpu.vector_store %arg16[%c7, %c0_50], %68 {strides = array<i32>} : memref<12x192xf32, #tpu.memory_space<vmem>>, vector<1x192xf32>,
    %70 = vector.extract_strided_slice %37 {offsets = [16, 0], sizes = [1, 192], strides = [1, 1]} : vector<24x192xf32> to vector<1x192xf32>
    %71 = vector.extract_strided_slice %37 {offsets = [17, 0], sizes = [1, 192], strides = [1, 1]} : vector<24x192xf32> to vector<1x192xf32>
    %72 = arith.maximumf %70, %71 : vector<1x192xf32>
    %c8 = arith.constant 8 : index
    %c0_51 = arith.constant 0 : index
    %73 = vector.load %arg16[%c8, %c0_51] : memref<12x192xf32, #tpu.memory_space<vmem>>, vector<1x192xf32>
    tpu.vector_store %arg16[%c8, %c0_51], %72 {strides = array<i32>} : memref<12x192xf32, #tpu.memory_space<vmem>>, vector<1x192xf32>,
    %74 = vector.extract_strided_slice %37 {offsets = [18, 0], sizes = [1, 192], strides = [1, 1]} : vector<24x192xf32> to vector<1x192xf32>
    %75 = vector.extract_strided_slice %37 {offsets = [19, 0], sizes = [1, 192], strides = [1, 1]} : vector<24x192xf32> to vector<1x192xf32>
    %76 = arith.maximumf %74, %75 : vector<1x192xf32>
    %c9 = arith.constant 9 : index
    %c0_52 = arith.constant 0 : index
    %77 = vector.load %arg16[%c9, %c0_52] : memref<12x192xf32, #tpu.memory_space<vmem>>, vector<1x192xf32>
    tpu.vector_store %arg16[%c9, %c0_52], %76 {strides = array<i32>} : memref<12x192xf32, #tpu.memory_space<vmem>>, vector<1x192xf32>,
    %78 = vector.extract_strided_slice %37 {offsets = [20, 0], sizes = [1, 192], strides = [1, 1]} : vector<24x192xf32> to vector<1x192xf32>
    %79 = vector.extract_strided_slice %37 {offsets = [21, 0], sizes = [1, 192], strides = [1, 1]} : vector<24x192xf32> to vector<1x192xf32>
    %80 = arith.maximumf %78, %79 : vector<1x192xf32>
    %c10 = arith.constant 10 : index
    %c0_53 = arith.constant 0 : index
    %81 = vector.load %arg16[%c10, %c0_53] : memref<12x192xf32, #tpu.memory_space<vmem>>, vector<1x192xf32>
    tpu.vector_store %arg16[%c10, %c0_53], %80 {strides = array<i32>} : memref<12x192xf32, #tpu.memory_space<vmem>>, vector<1x192xf32>,
    %82 = vector.extract_strided_slice %37 {offsets = [22, 0], sizes = [1, 192], strides = [1, 1]} : vector<24x192xf32> to vector<1x192xf32>
    %83 = vector.extract_strided_slice %37 {offsets = [23, 0], sizes = [1, 192], strides = [1, 1]} : vector<24x192xf32> to vector<1x192xf32>
    %84 = arith.maximumf %82, %83 : vector<1x192xf32>
    %c11 = arith.constant 11 : index
    %c0_54 = arith.constant 0 : index
    %85 = vector.load %arg16[%c11, %c0_54] : memref<12x192xf32, #tpu.memory_space<vmem>>, vector<1x192xf32>
    tpu.vector_store %arg16[%c11, %c0_54], %84 {strides = array<i32>} : memref<12x192xf32, #tpu.memory_space<vmem>>, vector<1x192xf32>,
    %c0_55 = arith.constant 0 : index
    %c0_56 = arith.constant 0 : index
    %86 = vector.load %arg16[%c0_55, %c0_56] : memref<12x192xf32, #tpu.memory_space<vmem>>, vector<12x8xf32>
    %c0_57 = arith.constant 0 : index
    %c8_58 = arith.constant 8 : index
    %87 = vector.load %arg16[%c0_57, %c8_58] : memref<12x192xf32, #tpu.memory_space<vmem>>, vector<12x8xf32>
    %88 = arith.maximumf %86, %87 : vector<12x8xf32>
    %c1_59 = arith.constant 1 : index
    %c8_60 = arith.constant 8 : index
    %89 = vector.load %arg14[%c1_59, %c8_60] : memref<14x112xf32, #tpu.memory_space<vmem>>, vector<12x8xf32>
    tpu.vector_store %arg14[%c1_59, %c8_60], %88 {strides = array<i32>} : memref<14x112xf32, #tpu.memory_space<vmem>>, vector<12x8xf32>,
    %c0_61 = arith.constant 0 : index
    %c16 = arith.constant 16 : index
    %90 = vector.load %arg16[%c0_61, %c16] : memref<12x192xf32, #tpu.memory_space<vmem>>, vector<12x8xf32>
    %c0_62 = arith.constant 0 : index
    %c24 = arith.constant 24 : index
    %91 = vector.load %arg16[%c0_62, %c24] : memref<12x192xf32, #tpu.memory_space<vmem>>, vector<12x8xf32>
    %92 = arith.maximumf %90, %91 : vector<12x8xf32>
    %c1_63 = arith.constant 1 : index
    %c16_64 = arith.constant 16 : index
    %93 = vector.load %arg14[%c1_63, %c16_64] : memref<14x112xf32, #tpu.memory_space<vmem>>, vector<12x8xf32>
    tpu.vector_store %arg14[%c1_63, %c16_64], %92 {strides = array<i32>} : memref<14x112xf32, #tpu.memory_space<vmem>>, vector<12x8xf32>,
    %c0_65 = arith.constant 0 : index
    %c32 = arith.constant 32 : index
    %94 = vector.load %arg16[%c0_65, %c32] : memref<12x192xf32, #tpu.memory_space<vmem>>, vector<12x8xf32>
    %c0_66 = arith.constant 0 : index
    %c40 = arith.constant 40 : index
    %95 = vector.load %arg16[%c0_66, %c40] : memref<12x192xf32, #tpu.memory_space<vmem>>, vector<12x8xf32>
    %96 = arith.maximumf %94, %95 : vector<12x8xf32>
    %c1_67 = arith.constant 1 : index
    %c24_68 = arith.constant 24 : index
    %97 = vector.load %arg14[%c1_67, %c24_68] : memref<14x112xf32, #tpu.memory_space<vmem>>, vector<12x8xf32>
    tpu.vector_store %arg14[%c1_67, %c24_68], %96 {strides = array<i32>} : memref<14x112xf32, #tpu.memory_space<vmem>>, vector<12x8xf32>,
    %c0_69 = arith.constant 0 : index
    %c48 = arith.constant 48 : index
    %98 = vector.load %arg16[%c0_69, %c48] : memref<12x192xf32, #tpu.memory_space<vmem>>, vector<12x8xf32>
    %c0_70 = arith.constant 0 : index
    %c56 = arith.constant 56 : index
    %99 = vector.load %arg16[%c0_70, %c56] : memref<12x192xf32, #tpu.memory_space<vmem>>, vector<12x8xf32>
    %100 = arith.maximumf %98, %99 : vector<12x8xf32>
    %c1_71 = arith.constant 1 : index
    %c32_72 = arith.constant 32 : index
    %101 = vector.load %arg14[%c1_71, %c32_72] : memref<14x112xf32, #tpu.memory_space<vmem>>, vector<12x8xf32>
    tpu.vector_store %arg14[%c1_71, %c32_72], %100 {strides = array<i32>} : memref<14x112xf32, #tpu.memory_space<vmem>>, vector<12x8xf32>,
    %c0_73 = arith.constant 0 : index
    %c64 = arith.constant 64 : index
    %102 = vector.load %arg16[%c0_73, %c64] : memref<12x192xf32, #tpu.memory_space<vmem>>, vector<12x8xf32>
    %c0_74 = arith.constant 0 : index
    %c72 = arith.constant 72 : index
    %103 = vector.load %arg16[%c0_74, %c72] : memref<12x192xf32, #tpu.memory_space<vmem>>, vector<12x8xf32>
    %104 = arith.maximumf %102, %103 : vector<12x8xf32>
    %c1_75 = arith.constant 1 : index
    %c40_76 = arith.constant 40 : index
    %105 = vector.load %arg14[%c1_75, %c40_76] : memref<14x112xf32, #tpu.memory_space<vmem>>, vector<12x8xf32>
    tpu.vector_store %arg14[%c1_75, %c40_76], %104 {strides = array<i32>} : memref<14x112xf32, #tpu.memory_space<vmem>>, vector<12x8xf32>,
    %c0_77 = arith.constant 0 : index
    %c80 = arith.constant 80 : index
    %106 = vector.load %arg16[%c0_77, %c80] : memref<12x192xf32, #tpu.memory_space<vmem>>, vector<12x8xf32>
    %c0_78 = arith.constant 0 : index
    %c88 = arith.constant 88 : index
    %107 = vector.load %arg16[%c0_78, %c88] : memref<12x192xf32, #tpu.memory_space<vmem>>, vector<12x8xf32>
    %108 = arith.maximumf %106, %107 : vector<12x8xf32>
    %c1_79 = arith.constant 1 : index
    %c48_80 = arith.constant 48 : index
    %109 = vector.load %arg14[%c1_79, %c48_80] : memref<14x112xf32, #tpu.memory_space<vmem>>, vector<12x8xf32>
    tpu.vector_store %arg14[%c1_79, %c48_80], %108 {strides = array<i32>} : memref<14x112xf32, #tpu.memory_space<vmem>>, vector<12x8xf32>,
    %c0_81 = arith.constant 0 : index
    %c96 = arith.constant 96 : index
    %110 = vector.load %arg16[%c0_81, %c96] : memref<12x192xf32, #tpu.memory_space<vmem>>, vector<12x8xf32>
    %c0_82 = arith.constant 0 : index
    %c104 = arith.constant 104 : index
    %111 = vector.load %arg16[%c0_82, %c104] : memref<12x192xf32, #tpu.memory_space<vmem>>, vector<12x8xf32>
    %112 = arith.maximumf %110, %111 : vector<12x8xf32>
    %c1_83 = arith.constant 1 : index
    %c56_84 = arith.constant 56 : index
    %113 = vector.load %arg14[%c1_83, %c56_84] : memref<14x112xf32, #tpu.memory_space<vmem>>, vector<12x8xf32>
    tpu.vector_store %arg14[%c1_83, %c56_84], %112 {strides = array<i32>} : memref<14x112xf32, #tpu.memory_space<vmem>>, vector<12x8xf32>,
    %c0_85 = arith.constant 0 : index
    %c112 = arith.constant 112 : index
    %114 = vector.load %arg16[%c0_85, %c112] : memref<12x192xf32, #tpu.memory_space<vmem>>, vector<12x8xf32>
    %c0_86 = arith.constant 0 : index
    %c120 = arith.constant 120 : index
    %115 = vector.load %arg16[%c0_86, %c120] : memref<12x192xf32, #tpu.memory_space<vmem>>, vector<12x8xf32>
    %116 = arith.maximumf %114, %115 : vector<12x8xf32>
    %c1_87 = arith.constant 1 : index
    %c64_88 = arith.constant 64 : index
    %117 = vector.load %arg14[%c1_87, %c64_88] : memref<14x112xf32, #tpu.memory_space<vmem>>, vector<12x8xf32>
    tpu.vector_store %arg14[%c1_87, %c64_88], %116 {strides = array<i32>} : memref<14x112xf32, #tpu.memory_space<vmem>>, vector<12x8xf32>,
    %c0_89 = arith.constant 0 : index
    %c128 = arith.constant 128 : index
    %118 = vector.load %arg16[%c0_89, %c128] : memref<12x192xf32, #tpu.memory_space<vmem>>, vector<12x8xf32>
    %c0_90 = arith.constant 0 : index
    %c136 = arith.constant 136 : index
    %119 = vector.load %arg16[%c0_90, %c136] : memref<12x192xf32, #tpu.memory_space<vmem>>, vector<12x8xf32>
    %120 = arith.maximumf %118, %119 : vector<12x8xf32>
    %c1_91 = arith.constant 1 : index
    %c72_92 = arith.constant 72 : index
    %121 = vector.load %arg14[%c1_91, %c72_92] : memref<14x112xf32, #tpu.memory_space<vmem>>, vector<12x8xf32>
    tpu.vector_store %arg14[%c1_91, %c72_92], %120 {strides = array<i32>} : memref<14x112xf32, #tpu.memory_space<vmem>>, vector<12x8xf32>,
    %c0_93 = arith.constant 0 : index
    %c144 = arith.constant 144 : index
    %122 = vector.load %arg16[%c0_93, %c144] : memref<12x192xf32, #tpu.memory_space<vmem>>, vector<12x8xf32>
    %c0_94 = arith.constant 0 : index
    %c152 = arith.constant 152 : index
    %123 = vector.load %arg16[%c0_94, %c152] : memref<12x192xf32, #tpu.memory_space<vmem>>, vector<12x8xf32>
    %124 = arith.maximumf %122, %123 : vector<12x8xf32>
    %c1_95 = arith.constant 1 : index
    %c80_96 = arith.constant 80 : index
    %125 = vector.load %arg14[%c1_95, %c80_96] : memref<14x112xf32, #tpu.memory_space<vmem>>, vector<12x8xf32>
    tpu.vector_store %arg14[%c1_95, %c80_96], %124 {strides = array<i32>} : memref<14x112xf32, #tpu.memory_space<vmem>>, vector<12x8xf32>,
    %c0_97 = arith.constant 0 : index
    %c160 = arith.constant 160 : index
    %126 = vector.load %arg16[%c0_97, %c160] : memref<12x192xf32, #tpu.memory_space<vmem>>, vector<12x8xf32>
    %c0_98 = arith.constant 0 : index
    %c168 = arith.constant 168 : index
    %127 = vector.load %arg16[%c0_98, %c168] : memref<12x192xf32, #tpu.memory_space<vmem>>, vector<12x8xf32>
    %128 = arith.maximumf %126, %127 : vector<12x8xf32>
    %c1_99 = arith.constant 1 : index
    %c88_100 = arith.constant 88 : index
    %129 = vector.load %arg14[%c1_99, %c88_100] : memref<14x112xf32, #tpu.memory_space<vmem>>, vector<12x8xf32>
    tpu.vector_store %arg14[%c1_99, %c88_100], %128 {strides = array<i32>} : memref<14x112xf32, #tpu.memory_space<vmem>>, vector<12x8xf32>,
    %c0_101 = arith.constant 0 : index
    %c176 = arith.constant 176 : index
    %130 = vector.load %arg16[%c0_101, %c176] : memref<12x192xf32, #tpu.memory_space<vmem>>, vector<12x8xf32>
    %c0_102 = arith.constant 0 : index
    %c184 = arith.constant 184 : index
    %131 = vector.load %arg16[%c0_102, %c184] : memref<12x192xf32, #tpu.memory_space<vmem>>, vector<12x8xf32>
    %132 = arith.maximumf %130, %131 : vector<12x8xf32>
    %c1_103 = arith.constant 1 : index
    %c96_104 = arith.constant 96 : index
    %133 = vector.load %arg14[%c1_103, %c96_104] : memref<14x112xf32, #tpu.memory_space<vmem>>, vector<12x8xf32>
    tpu.vector_store %arg14[%c1_103, %c96_104], %132 {strides = array<i32>} : memref<14x112xf32, #tpu.memory_space<vmem>>, vector<12x8xf32>,
    %c0_105 = arith.constant 0 : index
    %c0_106 = arith.constant 0 : index
    %134 = vector.load %arg14[%c0_105, %c0_106] : memref<14x112xf32, #tpu.memory_space<vmem>>, vector<12x112xf32>
    %c0_107 = arith.constant 0 : index
    %c0_108 = arith.constant 0 : index
    %c0_109 = arith.constant 0 : index
    %135 = vector.load %arg3[%c0_107, %c0_108, %c0_109] : memref<3x112x192xf32, #tpu.memory_space<vmem>>, vector<1x112x192xf32>
    %136 = vector.shape_cast %135 : vector<1x112x192xf32> to vector<112x192xf32>
    %cst_110 = arith.constant dense<0.000000e+00> : vector<12x192xf32>
    %137 = tpu.matmul %134, %136, %cst_110 {dimension_numbers = #tpu.dot_dimension_numbers<[1], [0], [0], [1], [0, 0, 1, 1], [], []>} : vector<12x112xf32>, vector<112x192xf32>, vector<12x192xf32> -> vector<12x192xf32>
    %c1_111 = arith.constant 1 : index
    %c0_112 = arith.constant 0 : index
    %138 = vector.load %arg14[%c1_111, %c0_112] : memref<14x112xf32, #tpu.memory_space<vmem>>, vector<12x112xf32>
    %c1_113 = arith.constant 1 : index
    %c0_114 = arith.constant 0 : index
    %c0_115 = arith.constant 0 : index
    %139 = vector.load %arg3[%c1_113, %c0_114, %c0_115] : memref<3x112x192xf32, #tpu.memory_space<vmem>>, vector<1x112x192xf32>
    %140 = vector.shape_cast %139 : vector<1x112x192xf32> to vector<112x192xf32>
    %cst_116 = arith.constant dense<0.000000e+00> : vector<12x192xf32>
    %141 = tpu.matmul %138, %140, %cst_116 {dimension_numbers = #tpu.dot_dimension_numbers<[1], [0], [0], [1], [0, 0, 1, 1], [], []>} : vector<12x112xf32>, vector<112x192xf32>, vector<12x192xf32> -> vector<12x192xf32>
    %142 = arith.addf %137, %141 : vector<12x192xf32>
    %c2_117 = arith.constant 2 : index
    %c0_118 = arith.constant 0 : index
    %143 = vector.load %arg14[%c2_117, %c0_118] : memref<14x112xf32, #tpu.memory_space<vmem>>, vector<12x112xf32>
    %c2_119 = arith.constant 2 : index
    %c0_120 = arith.constant 0 : index
    %c0_121 = arith.constant 0 : index
    %144 = vector.load %arg3[%c2_119, %c0_120, %c0_121] : memref<3x112x192xf32, #tpu.memory_space<vmem>>, vector<1x112x192xf32>
    %145 = vector.shape_cast %144 : vector<1x112x192xf32> to vector<112x192xf32>
    %cst_122 = arith.constant dense<0.000000e+00> : vector<12x192xf32>
    %146 = tpu.matmul %143, %145, %cst_122 {dimension_numbers = #tpu.dot_dimension_numbers<[1], [0], [0], [1], [0, 0, 1, 1], [], []>} : vector<12x112xf32>, vector<112x192xf32>, vector<12x192xf32> -> vector<12x192xf32>
    %147 = arith.addf %142, %146 : vector<12x192xf32>
    %c0_123 = arith.constant 0 : index
    %c0_124 = arith.constant 0 : index
    %148 = vector.load %arg4[%c0_123, %c0_124] : memref<1x192xf32, #tpu.memory_space<vmem>>, vector<1x192xf32>
    %149 = vector.broadcast %148 : vector<1x192xf32> to vector<12x192xf32>
    %150 = arith.addf %147, %149 : vector<12x192xf32>
    %cst_125 = arith.constant 0.000000e+00 : f32
    %151 = vector.broadcast %cst_125 : f32 to vector<12x192xf32>
    %152 = arith.maximumf %150, %151 : vector<12x192xf32>
    %153 = vector.extract_strided_slice %152 {offsets = [0, 0], sizes = [1, 192], strides = [1, 1]} : vector<12x192xf32> to vector<1x192xf32>
    %154 = vector.extract_strided_slice %152 {offsets = [1, 0], sizes = [1, 192], strides = [1, 1]} : vector<12x192xf32> to vector<1x192xf32>
    %155 = arith.maximumf %153, %154 : vector<1x192xf32>
    %c0_126 = arith.constant 0 : index
    %c0_127 = arith.constant 0 : index
    %156 = vector.load %arg16[%c0_126, %c0_127] : memref<12x192xf32, #tpu.memory_space<vmem>>, vector<1x192xf32>
    tpu.vector_store %arg16[%c0_126, %c0_127], %155 {strides = array<i32>} : memref<12x192xf32, #tpu.memory_space<vmem>>, vector<1x192xf32>,
    %157 = vector.extract_strided_slice %152 {offsets = [2, 0], sizes = [1, 192], strides = [1, 1]} : vector<12x192xf32> to vector<1x192xf32>
    %158 = vector.extract_strided_slice %152 {offsets = [3, 0], sizes = [1, 192], strides = [1, 1]} : vector<12x192xf32> to vector<1x192xf32>
    %159 = arith.maximumf %157, %158 : vector<1x192xf32>
    %c1_128 = arith.constant 1 : index
    %c0_129 = arith.constant 0 : index
    %160 = vector.load %arg16[%c1_128, %c0_129] : memref<12x192xf32, #tpu.memory_space<vmem>>, vector<1x192xf32>
    tpu.vector_store %arg16[%c1_128, %c0_129], %159 {strides = array<i32>} : memref<12x192xf32, #tpu.memory_space<vmem>>, vector<1x192xf32>,
    %161 = vector.extract_strided_slice %152 {offsets = [4, 0], sizes = [1, 192], strides = [1, 1]} : vector<12x192xf32> to vector<1x192xf32>
    %162 = vector.extract_strided_slice %152 {offsets = [5, 0], sizes = [1, 192], strides = [1, 1]} : vector<12x192xf32> to vector<1x192xf32>
    %163 = arith.maximumf %161, %162 : vector<1x192xf32>
    %c2_130 = arith.constant 2 : index
    %c0_131 = arith.constant 0 : index
    %164 = vector.load %arg16[%c2_130, %c0_131] : memref<12x192xf32, #tpu.memory_space<vmem>>, vector<1x192xf32>
    tpu.vector_store %arg16[%c2_130, %c0_131], %163 {strides = array<i32>} : memref<12x192xf32, #tpu.memory_space<vmem>>, vector<1x192xf32>,
    %165 = vector.extract_strided_slice %152 {offsets = [6, 0], sizes = [1, 192], strides = [1, 1]} : vector<12x192xf32> to vector<1x192xf32>
    %166 = vector.extract_strided_slice %152 {offsets = [7, 0], sizes = [1, 192], strides = [1, 1]} : vector<12x192xf32> to vector<1x192xf32>
    %167 = arith.maximumf %165, %166 : vector<1x192xf32>
    %c3_132 = arith.constant 3 : index
    %c0_133 = arith.constant 0 : index
    %168 = vector.load %arg16[%c3_132, %c0_133] : memref<12x192xf32, #tpu.memory_space<vmem>>, vector<1x192xf32>
    tpu.vector_store %arg16[%c3_132, %c0_133], %167 {strides = array<i32>} : memref<12x192xf32, #tpu.memory_space<vmem>>, vector<1x192xf32>,
    %169 = vector.extract_strided_slice %152 {offsets = [8, 0], sizes = [1, 192], strides = [1, 1]} : vector<12x192xf32> to vector<1x192xf32>
    %170 = vector.extract_strided_slice %152 {offsets = [9, 0], sizes = [1, 192], strides = [1, 1]} : vector<12x192xf32> to vector<1x192xf32>
    %171 = arith.maximumf %169, %170 : vector<1x192xf32>
    %c4_134 = arith.constant 4 : index
    %c0_135 = arith.constant 0 : index
    %172 = vector.load %arg16[%c4_134, %c0_135] : memref<12x192xf32, #tpu.memory_space<vmem>>, vector<1x192xf32>
    tpu.vector_store %arg16[%c4_134, %c0_135], %171 {strides = array<i32>} : memref<12x192xf32, #tpu.memory_space<vmem>>, vector<1x192xf32>,
    %173 = vector.extract_strided_slice %152 {offsets = [10, 0], sizes = [1, 192], strides = [1, 1]} : vector<12x192xf32> to vector<1x192xf32>
    %174 = vector.extract_strided_slice %152 {offsets = [11, 0], sizes = [1, 192], strides = [1, 1]} : vector<12x192xf32> to vector<1x192xf32>
    %175 = arith.maximumf %173, %174 : vector<1x192xf32>
    %c5_136 = arith.constant 5 : index
    %c0_137 = arith.constant 0 : index
    %176 = vector.load %arg16[%c5_136, %c0_137] : memref<12x192xf32, #tpu.memory_space<vmem>>, vector<1x192xf32>
    tpu.vector_store %arg16[%c5_136, %c0_137], %175 {strides = array<i32>} : memref<12x192xf32, #tpu.memory_space<vmem>>, vector<1x192xf32>,
    %c0_138 = arith.constant 0 : index
    %c0_139 = arith.constant 0 : index
    %177 = vector.load %arg16[%c0_138, %c0_139] : memref<12x192xf32, #tpu.memory_space<vmem>>, vector<6x16xf32>
    %c0_140 = arith.constant 0 : index
    %c16_141 = arith.constant 16 : index
    %178 = vector.load %arg16[%c0_140, %c16_141] : memref<12x192xf32, #tpu.memory_space<vmem>>, vector<6x16xf32>
    %179 = arith.maximumf %177, %178 : vector<6x16xf32>
    %c1_142 = arith.constant 1 : index
    %c16_143 = arith.constant 16 : index
    %180 = vector.load %arg15[%c1_142, %c16_143] : memref<8x128xf32, #tpu.memory_space<vmem>>, vector<6x16xf32>
    tpu.vector_store %arg15[%c1_142, %c16_143], %179 {strides = array<i32>} : memref<8x128xf32, #tpu.memory_space<vmem>>, vector<6x16xf32>,
    %c0_144 = arith.constant 0 : index
    %c32_145 = arith.constant 32 : index
    %181 = vector.load %arg16[%c0_144, %c32_145] : memref<12x192xf32, #tpu.memory_space<vmem>>, vector<6x16xf32>
    %c0_146 = arith.constant 0 : index
    %c48_147 = arith.constant 48 : index
    %182 = vector.load %arg16[%c0_146, %c48_147] : memref<12x192xf32, #tpu.memory_space<vmem>>, vector<6x16xf32>
    %183 = arith.maximumf %181, %182 : vector<6x16xf32>
    %c1_148 = arith.constant 1 : index
    %c32_149 = arith.constant 32 : index
    %184 = vector.load %arg15[%c1_148, %c32_149] : memref<8x128xf32, #tpu.memory_space<vmem>>, vector<6x16xf32>
    tpu.vector_store %arg15[%c1_148, %c32_149], %183 {strides = array<i32>} : memref<8x128xf32, #tpu.memory_space<vmem>>, vector<6x16xf32>,
    %c0_150 = arith.constant 0 : index
    %c64_151 = arith.constant 64 : index
    %185 = vector.load %arg16[%c0_150, %c64_151] : memref<12x192xf32, #tpu.memory_space<vmem>>, vector<6x16xf32>
    %c0_152 = arith.constant 0 : index
    %c80_153 = arith.constant 80 : index
    %186 = vector.load %arg16[%c0_152, %c80_153] : memref<12x192xf32, #tpu.memory_space<vmem>>, vector<6x16xf32>
    %187 = arith.maximumf %185, %186 : vector<6x16xf32>
    %c1_154 = arith.constant 1 : index
    %c48_155 = arith.constant 48 : index
    %188 = vector.load %arg15[%c1_154, %c48_155] : memref<8x128xf32, #tpu.memory_space<vmem>>, vector<6x16xf32>
    tpu.vector_store %arg15[%c1_154, %c48_155], %187 {strides = array<i32>} : memref<8x128xf32, #tpu.memory_space<vmem>>, vector<6x16xf32>,
    %c0_156 = arith.constant 0 : index
    %c96_157 = arith.constant 96 : index
    %189 = vector.load %arg16[%c0_156, %c96_157] : memref<12x192xf32, #tpu.memory_space<vmem>>, vector<6x16xf32>
    %c0_158 = arith.constant 0 : index
    %c112_159 = arith.constant 112 : index
    %190 = vector.load %arg16[%c0_158, %c112_159] : memref<12x192xf32, #tpu.memory_space<vmem>>, vector<6x16xf32>
    %191 = arith.maximumf %189, %190 : vector<6x16xf32>
    %c1_160 = arith.constant 1 : index
    %c64_161 = arith.constant 64 : index
    %192 = vector.load %arg15[%c1_160, %c64_161] : memref<8x128xf32, #tpu.memory_space<vmem>>, vector<6x16xf32>
    tpu.vector_store %arg15[%c1_160, %c64_161], %191 {strides = array<i32>} : memref<8x128xf32, #tpu.memory_space<vmem>>, vector<6x16xf32>,
    %c0_162 = arith.constant 0 : index
    %c128_163 = arith.constant 128 : index
    %193 = vector.load %arg16[%c0_162, %c128_163] : memref<12x192xf32, #tpu.memory_space<vmem>>, vector<6x16xf32>
    %c0_164 = arith.constant 0 : index
    %c144_165 = arith.constant 144 : index
    %194 = vector.load %arg16[%c0_164, %c144_165] : memref<12x192xf32, #tpu.memory_space<vmem>>, vector<6x16xf32>
    %195 = arith.maximumf %193, %194 : vector<6x16xf32>
    %c1_166 = arith.constant 1 : index
    %c80_167 = arith.constant 80 : index
    %196 = vector.load %arg15[%c1_166, %c80_167] : memref<8x128xf32, #tpu.memory_space<vmem>>, vector<6x16xf32>
    tpu.vector_store %arg15[%c1_166, %c80_167], %195 {strides = array<i32>} : memref<8x128xf32, #tpu.memory_space<vmem>>, vector<6x16xf32>,
    %c0_168 = arith.constant 0 : index
    %c160_169 = arith.constant 160 : index
    %197 = vector.load %arg16[%c0_168, %c160_169] : memref<12x192xf32, #tpu.memory_space<vmem>>, vector<6x16xf32>
    %c0_170 = arith.constant 0 : index
    %c176_171 = arith.constant 176 : index
    %198 = vector.load %arg16[%c0_170, %c176_171] : memref<12x192xf32, #tpu.memory_space<vmem>>, vector<6x16xf32>
    %199 = arith.maximumf %197, %198 : vector<6x16xf32>
    %c1_172 = arith.constant 1 : index
    %c96_173 = arith.constant 96 : index
    %200 = vector.load %arg15[%c1_172, %c96_173] : memref<8x128xf32, #tpu.memory_space<vmem>>, vector<6x16xf32>
    tpu.vector_store %arg15[%c1_172, %c96_173], %199 {strides = array<i32>} : memref<8x128xf32, #tpu.memory_space<vmem>>, vector<6x16xf32>,
    %c0_174 = arith.constant 0 : index
    %c0_175 = arith.constant 0 : index
    %201 = vector.load %arg15[%c0_174, %c0_175] : memref<8x128xf32, #tpu.memory_space<vmem>>, vector<6x128xf32>
    %c0_176 = arith.constant 0 : index
    %c0_177 = arith.constant 0 : index
    %c0_178 = arith.constant 0 : index
    %202 = vector.load %arg5[%c0_176, %c0_177, %c0_178] : memref<3x128x192xf32, #tpu.memory_space<vmem>>, vector<1x128x192xf32>
    %203 = vector.shape_cast %202 : vector<1x128x192xf32> to vector<128x192xf32>
    %cst_179 = arith.constant dense<0.000000e+00> : vector<6x192xf32>
    %204 = tpu.matmul %201, %203, %cst_179 {dimension_numbers = #tpu.dot_dimension_numbers<[1], [0], [0], [1], [0, 0, 1, 1], [], []>} : vector<6x128xf32>, vector<128x192xf32>, vector<6x192xf32> -> vector<6x192xf32>
    %c1_180 = arith.constant 1 : index
    %c0_181 = arith.constant 0 : index
    %205 = vector.load %arg15[%c1_180, %c0_181] : memref<8x128xf32, #tpu.memory_space<vmem>>, vector<6x128xf32>
    %c1_182 = arith.constant 1 : index
    %c0_183 = arith.constant 0 : index
    %c0_184 = arith.constant 0 : index
    %206 = vector.load %arg5[%c1_182, %c0_183, %c0_184] : memref<3x128x192xf32, #tpu.memory_space<vmem>>, vector<1x128x192xf32>
    %207 = vector.shape_cast %206 : vector<1x128x192xf32> to vector<128x192xf32>
    %cst_185 = arith.constant dense<0.000000e+00> : vector<6x192xf32>
    %208 = tpu.matmul %205, %207, %cst_185 {dimension_numbers = #tpu.dot_dimension_numbers<[1], [0], [0], [1], [0, 0, 1, 1], [], []>} : vector<6x128xf32>, vector<128x192xf32>, vector<6x192xf32> -> vector<6x192xf32>
    %209 = arith.addf %204, %208 : vector<6x192xf32>
    %c2_186 = arith.constant 2 : index
    %c0_187 = arith.constant 0 : index
    %210 = vector.load %arg15[%c2_186, %c0_187] : memref<8x128xf32, #tpu.memory_space<vmem>>, vector<6x128xf32>
    %c2_188 = arith.constant 2 : index
    %c0_189 = arith.constant 0 : index
    %c0_190 = arith.constant 0 : index
    %211 = vector.load %arg5[%c2_188, %c0_189, %c0_190] : memref<3x128x192xf32, #tpu.memory_space<vmem>>, vector<1x128x192xf32>
    %212 = vector.shape_cast %211 : vector<1x128x192xf32> to vector<128x192xf32>
    %cst_191 = arith.constant dense<0.000000e+00> : vector<6x192xf32>
    %213 = tpu.matmul %210, %212, %cst_191 {dimension_numbers = #tpu.dot_dimension_numbers<[1], [0], [0], [1], [0, 0, 1, 1], [], []>} : vector<6x128xf32>, vector<128x192xf32>, vector<6x192xf32> -> vector<6x192xf32>
    %214 = arith.addf %209, %213 : vector<6x192xf32>
    %c0_192 = arith.constant 0 : index
    %c0_193 = arith.constant 0 : index
    %215 = vector.load %arg6[%c0_192, %c0_193] : memref<1x192xf32, #tpu.memory_space<vmem>>, vector<1x192xf32>
    %216 = vector.broadcast %215 : vector<1x192xf32> to vector<6x192xf32>
    %217 = arith.addf %214, %216 : vector<6x192xf32>
    %cst_194 = arith.constant 0.000000e+00 : f32
    %218 = vector.broadcast %cst_194 : f32 to vector<6x192xf32>
    %219 = arith.maximumf %217, %218 : vector<6x192xf32>
    %220 = vector.extract_strided_slice %219 {offsets = [0, 0], sizes = [1, 192], strides = [1, 1]} : vector<6x192xf32> to vector<1x192xf32>
    %221 = vector.extract_strided_slice %219 {offsets = [1, 0], sizes = [1, 192], strides = [1, 1]} : vector<6x192xf32> to vector<1x192xf32>
    %222 = arith.maximumf %220, %221 : vector<1x192xf32>
    %c0_195 = arith.constant 0 : index
    %c0_196 = arith.constant 0 : index
    %223 = vector.load %arg16[%c0_195, %c0_196] : memref<12x192xf32, #tpu.memory_space<vmem>>, vector<1x192xf32>
    tpu.vector_store %arg16[%c0_195, %c0_196], %222 {strides = array<i32>} : memref<12x192xf32, #tpu.memory_space<vmem>>, vector<1x192xf32>,
    %224 = vector.extract_strided_slice %219 {offsets = [2, 0], sizes = [1, 192], strides = [1, 1]} : vector<6x192xf32> to vector<1x192xf32>
    %225 = vector.extract_strided_slice %219 {offsets = [3, 0], sizes = [1, 192], strides = [1, 1]} : vector<6x192xf32> to vector<1x192xf32>
    %226 = arith.maximumf %224, %225 : vector<1x192xf32>
    %c1_197 = arith.constant 1 : index
    %c0_198 = arith.constant 0 : index
    %227 = vector.load %arg16[%c1_197, %c0_198] : memref<12x192xf32, #tpu.memory_space<vmem>>, vector<1x192xf32>
    tpu.vector_store %arg16[%c1_197, %c0_198], %226 {strides = array<i32>} : memref<12x192xf32, #tpu.memory_space<vmem>>, vector<1x192xf32>,
    %228 = vector.extract_strided_slice %219 {offsets = [4, 0], sizes = [1, 192], strides = [1, 1]} : vector<6x192xf32> to vector<1x192xf32>
    %229 = vector.extract_strided_slice %219 {offsets = [5, 0], sizes = [1, 192], strides = [1, 1]} : vector<6x192xf32> to vector<1x192xf32>
    %230 = arith.maximumf %228, %229 : vector<1x192xf32>
    %c2_199 = arith.constant 2 : index
    %c0_200 = arith.constant 0 : index
    %231 = vector.load %arg16[%c2_199, %c0_200] : memref<12x192xf32, #tpu.memory_space<vmem>>, vector<1x192xf32>
    tpu.vector_store %arg16[%c2_199, %c0_200], %230 {strides = array<i32>} : memref<12x192xf32, #tpu.memory_space<vmem>>, vector<1x192xf32>,
    %c0_201 = arith.constant 0 : index
    %c0_202 = arith.constant 0 : index
    %232 = vector.load %arg16[%c0_201, %c0_202] : memref<12x192xf32, #tpu.memory_space<vmem>>, vector<3x32xf32>
    %c0_203 = arith.constant 0 : index
    %c32_204 = arith.constant 32 : index
    %233 = vector.load %arg16[%c0_203, %c32_204] : memref<12x192xf32, #tpu.memory_space<vmem>>, vector<3x32xf32>
    %234 = arith.maximumf %232, %233 : vector<3x32xf32>
    %c0_205 = arith.constant 0 : index
    %c0_206 = arith.constant 0 : index
    %235 = vector.load %arg17[%c0_205, %c0_206] : memref<3x96xf32, #tpu.memory_space<vmem>>, vector<3x32xf32>
    tpu.vector_store %arg17[%c0_205, %c0_206], %234 {strides = array<i32>} : memref<3x96xf32, #tpu.memory_space<vmem>>, vector<3x32xf32>,
    %c0_207 = arith.constant 0 : index
    %c64_208 = arith.constant 64 : index
    %236 = vector.load %arg16[%c0_207, %c64_208] : memref<12x192xf32, #tpu.memory_space<vmem>>, vector<3x32xf32>
    %c0_209 = arith.constant 0 : index
    %c96_210 = arith.constant 96 : index
    %237 = vector.load %arg16[%c0_209, %c96_210] : memref<12x192xf32, #tpu.memory_space<vmem>>, vector<3x32xf32>
    %238 = arith.maximumf %236, %237 : vector<3x32xf32>
    %c0_211 = arith.constant 0 : index
    %c32_212 = arith.constant 32 : index
    %239 = vector.load %arg17[%c0_211, %c32_212] : memref<3x96xf32, #tpu.memory_space<vmem>>, vector<3x32xf32>
    tpu.vector_store %arg17[%c0_211, %c32_212], %238 {strides = array<i32>} : memref<3x96xf32, #tpu.memory_space<vmem>>, vector<3x32xf32>,
    %c0_213 = arith.constant 0 : index
    %c128_214 = arith.constant 128 : index
    %240 = vector.load %arg16[%c0_213, %c128_214] : memref<12x192xf32, #tpu.memory_space<vmem>>, vector<3x32xf32>
    %c0_215 = arith.constant 0 : index
    %c160_216 = arith.constant 160 : index
    %241 = vector.load %arg16[%c0_215, %c160_216] : memref<12x192xf32, #tpu.memory_space<vmem>>, vector<3x32xf32>
    %242 = arith.maximumf %240, %241 : vector<3x32xf32>
    %c0_217 = arith.constant 0 : index
    %c64_218 = arith.constant 64 : index
    %243 = vector.load %arg17[%c0_217, %c64_218] : memref<3x96xf32, #tpu.memory_space<vmem>>, vector<3x32xf32>
    tpu.vector_store %arg17[%c0_217, %c64_218], %242 {strides = array<i32>} : memref<3x96xf32, #tpu.memory_space<vmem>>, vector<3x32xf32>,
    %c0_219 = arith.constant 0 : index
    %c0_220 = arith.constant 0 : index
    %244 = vector.load %arg17[%c0_219, %c0_220] : memref<3x96xf32, #tpu.memory_space<vmem>>, vector<1x96xf32>
    %c0_221 = arith.constant 0 : index
    %c0_222 = arith.constant 0 : index
    %245 = vector.load %arg18[%c0_221, %c0_222] : memref<2x288xf32, #tpu.memory_space<vmem>>, vector<1x96xf32>
    tpu.vector_store %arg18[%c0_221, %c0_222], %244 {strides = array<i32>} : memref<2x288xf32, #tpu.memory_space<vmem>>, vector<1x96xf32>,
    %c1_223 = arith.constant 1 : index
    %c0_224 = arith.constant 0 : index
    %246 = vector.load %arg17[%c1_223, %c0_224] : memref<3x96xf32, #tpu.memory_space<vmem>>, vector<1x96xf32>
    %c0_225 = arith.constant 0 : index
    %c96_226 = arith.constant 96 : index
    %247 = vector.load %arg18[%c0_225, %c96_226] : memref<2x288xf32, #tpu.memory_space<vmem>>, vector<1x96xf32>
    tpu.vector_store %arg18[%c0_225, %c96_226], %246 {strides = array<i32>} : memref<2x288xf32, #tpu.memory_space<vmem>>, vector<1x96xf32>,
    %c2_227 = arith.constant 2 : index
    %c0_228 = arith.constant 0 : index
    %248 = vector.load %arg17[%c2_227, %c0_228] : memref<3x96xf32, #tpu.memory_space<vmem>>, vector<1x96xf32>
    %c0_229 = arith.constant 0 : index
    %c192 = arith.constant 192 : index
    %249 = vector.load %arg18[%c0_229, %c192] : memref<2x288xf32, #tpu.memory_space<vmem>>, vector<1x96xf32>
    tpu.vector_store %arg18[%c0_229, %c192], %248 {strides = array<i32>} : memref<2x288xf32, #tpu.memory_space<vmem>>, vector<1x96xf32>,
    %c1_230 = arith.constant 1 : index
    %c0_231 = arith.constant 0 : index
    %c0_232 = arith.constant 0 : index
    %250 = vector.load %arg0[%c1_230, %c0_231, %c0_232] : memref<2x28x28xf32, #tpu.memory_space<vmem>>, vector<1x24x28xf32>
    %251 = vector.shape_cast %250 : vector<1x24x28xf32> to vector<24x28xf32>
    %c0_233 = arith.constant 0 : index
    %c0_234 = arith.constant 0 : index
    %c0_235 = arith.constant 0 : index
    %252 = vector.load %arg1[%c0_233, %c0_234, %c0_235] : memref<5x28x192xf32, #tpu.memory_space<vmem>>, vector<1x28x192xf32>
    %253 = vector.shape_cast %252 : vector<1x28x192xf32> to vector<28x192xf32>
    %cst_236 = arith.constant dense<0.000000e+00> : vector<24x192xf32>
    %254 = tpu.matmul %251, %253, %cst_236 {dimension_numbers = #tpu.dot_dimension_numbers<[1], [0], [0], [1], [0, 0, 1, 1], [], []>} : vector<24x28xf32>, vector<28x192xf32>, vector<24x192xf32> -> vector<24x192xf32>
    %c1_237 = arith.constant 1 : index
    %c1_238 = arith.constant 1 : index
    %c0_239 = arith.constant 0 : index
    %255 = vector.load %arg0[%c1_237, %c1_238, %c0_239] : memref<2x28x28xf32, #tpu.memory_space<vmem>>, vector<1x24x28xf32>
    %256 = vector.shape_cast %255 : vector<1x24x28xf32> to vector<24x28xf32>
    %c1_240 = arith.constant 1 : index
    %c0_241 = arith.constant 0 : index
    %c0_242 = arith.constant 0 : index
    %257 = vector.load %arg1[%c1_240, %c0_241, %c0_242] : memref<5x28x192xf32, #tpu.memory_space<vmem>>, vector<1x28x192xf32>
    %258 = vector.shape_cast %257 : vector<1x28x192xf32> to vector<28x192xf32>
    %cst_243 = arith.constant dense<0.000000e+00> : vector<24x192xf32>
    %259 = tpu.matmul %256, %258, %cst_243 {dimension_numbers = #tpu.dot_dimension_numbers<[1], [0], [0], [1], [0, 0, 1, 1], [], []>} : vector<24x28xf32>, vector<28x192xf32>, vector<24x192xf32> -> vector<24x192xf32>
    %260 = arith.addf %254, %259 : vector<24x192xf32>
    %c1_244 = arith.constant 1 : index
    %c2_245 = arith.constant 2 : index
    %c0_246 = arith.constant 0 : index
    %261 = vector.load %arg0[%c1_244, %c2_245, %c0_246] : memref<2x28x28xf32, #tpu.memory_space<vmem>>, vector<1x24x28xf32>
    %262 = vector.shape_cast %261 : vector<1x24x28xf32> to vector<24x28xf32>
    %c2_247 = arith.constant 2 : index
    %c0_248 = arith.constant 0 : index
    %c0_249 = arith.constant 0 : index
    %263 = vector.load %arg1[%c2_247, %c0_248, %c0_249] : memref<5x28x192xf32, #tpu.memory_space<vmem>>, vector<1x28x192xf32>
    %264 = vector.shape_cast %263 : vector<1x28x192xf32> to vector<28x192xf32>
    %cst_250 = arith.constant dense<0.000000e+00> : vector<24x192xf32>
    %265 = tpu.matmul %262, %264, %cst_250 {dimension_numbers = #tpu.dot_dimension_numbers<[1], [0], [0], [1], [0, 0, 1, 1], [], []>} : vector<24x28xf32>, vector<28x192xf32>, vector<24x192xf32> -> vector<24x192xf32>
    %266 = arith.addf %260, %265 : vector<24x192xf32>
    %c1_251 = arith.constant 1 : index
    %c3_252 = arith.constant 3 : index
    %c0_253 = arith.constant 0 : index
    %267 = vector.load %arg0[%c1_251, %c3_252, %c0_253] : memref<2x28x28xf32, #tpu.memory_space<vmem>>, vector<1x24x28xf32>
    %268 = vector.shape_cast %267 : vector<1x24x28xf32> to vector<24x28xf32>
    %c3_254 = arith.constant 3 : index
    %c0_255 = arith.constant 0 : index
    %c0_256 = arith.constant 0 : index
    %269 = vector.load %arg1[%c3_254, %c0_255, %c0_256] : memref<5x28x192xf32, #tpu.memory_space<vmem>>, vector<1x28x192xf32>
    %270 = vector.shape_cast %269 : vector<1x28x192xf32> to vector<28x192xf32>
    %cst_257 = arith.constant dense<0.000000e+00> : vector<24x192xf32>
    %271 = tpu.matmul %268, %270, %cst_257 {dimension_numbers = #tpu.dot_dimension_numbers<[1], [0], [0], [1], [0, 0, 1, 1], [], []>} : vector<24x28xf32>, vector<28x192xf32>, vector<24x192xf32> -> vector<24x192xf32>
    %272 = arith.addf %266, %271 : vector<24x192xf32>
    %c1_258 = arith.constant 1 : index
    %c4_259 = arith.constant 4 : index
    %c0_260 = arith.constant 0 : index
    %273 = vector.load %arg0[%c1_258, %c4_259, %c0_260] : memref<2x28x28xf32, #tpu.memory_space<vmem>>, vector<1x24x28xf32>
    %274 = vector.shape_cast %273 : vector<1x24x28xf32> to vector<24x28xf32>
    %c4_261 = arith.constant 4 : index
    %c0_262 = arith.constant 0 : index
    %c0_263 = arith.constant 0 : index
    %275 = vector.load %arg1[%c4_261, %c0_262, %c0_263] : memref<5x28x192xf32, #tpu.memory_space<vmem>>, vector<1x28x192xf32>
    %276 = vector.shape_cast %275 : vector<1x28x192xf32> to vector<28x192xf32>
    %cst_264 = arith.constant dense<0.000000e+00> : vector<24x192xf32>
    %277 = tpu.matmul %274, %276, %cst_264 {dimension_numbers = #tpu.dot_dimension_numbers<[1], [0], [0], [1], [0, 0, 1, 1], [], []>} : vector<24x28xf32>, vector<28x192xf32>, vector<24x192xf32> -> vector<24x192xf32>
    %278 = arith.addf %272, %277 : vector<24x192xf32>
    %c0_265 = arith.constant 0 : index
    %c0_266 = arith.constant 0 : index
    %279 = vector.load %arg2[%c0_265, %c0_266] : memref<1x192xf32, #tpu.memory_space<vmem>>, vector<1x192xf32>
    %280 = vector.broadcast %279 : vector<1x192xf32> to vector<24x192xf32>
    %281 = arith.addf %278, %280 : vector<24x192xf32>
    %cst_267 = arith.constant 0.000000e+00 : f32
    %282 = vector.broadcast %cst_267 : f32 to vector<24x192xf32>
    %283 = arith.maximumf %281, %282 : vector<24x192xf32>
    %284 = vector.extract_strided_slice %283 {offsets = [0, 0], sizes = [1, 192], strides = [1, 1]} : vector<24x192xf32> to vector<1x192xf32>
    %285 = vector.extract_strided_slice %283 {offsets = [1, 0], sizes = [1, 192], strides = [1, 1]} : vector<24x192xf32> to vector<1x192xf32>
    %286 = arith.maximumf %284, %285 : vector<1x192xf32>
    %c0_268 = arith.constant 0 : index
    %c0_269 = arith.constant 0 : index
    %287 = vector.load %arg16[%c0_268, %c0_269] : memref<12x192xf32, #tpu.memory_space<vmem>>, vector<1x192xf32>
    tpu.vector_store %arg16[%c0_268, %c0_269], %286 {strides = array<i32>} : memref<12x192xf32, #tpu.memory_space<vmem>>, vector<1x192xf32>,
    %288 = vector.extract_strided_slice %283 {offsets = [2, 0], sizes = [1, 192], strides = [1, 1]} : vector<24x192xf32> to vector<1x192xf32>
    %289 = vector.extract_strided_slice %283 {offsets = [3, 0], sizes = [1, 192], strides = [1, 1]} : vector<24x192xf32> to vector<1x192xf32>
    %290 = arith.maximumf %288, %289 : vector<1x192xf32>
    %c1_270 = arith.constant 1 : index
    %c0_271 = arith.constant 0 : index
    %291 = vector.load %arg16[%c1_270, %c0_271] : memref<12x192xf32, #tpu.memory_space<vmem>>, vector<1x192xf32>
    tpu.vector_store %arg16[%c1_270, %c0_271], %290 {strides = array<i32>} : memref<12x192xf32, #tpu.memory_space<vmem>>, vector<1x192xf32>,
    %292 = vector.extract_strided_slice %283 {offsets = [4, 0], sizes = [1, 192], strides = [1, 1]} : vector<24x192xf32> to vector<1x192xf32>
    %293 = vector.extract_strided_slice %283 {offsets = [5, 0], sizes = [1, 192], strides = [1, 1]} : vector<24x192xf32> to vector<1x192xf32>
    %294 = arith.maximumf %292, %293 : vector<1x192xf32>
    %c2_272 = arith.constant 2 : index
    %c0_273 = arith.constant 0 : index
    %295 = vector.load %arg16[%c2_272, %c0_273] : memref<12x192xf32, #tpu.memory_space<vmem>>, vector<1x192xf32>
    tpu.vector_store %arg16[%c2_272, %c0_273], %294 {strides = array<i32>} : memref<12x192xf32, #tpu.memory_space<vmem>>, vector<1x192xf32>,
    %296 = vector.extract_strided_slice %283 {offsets = [6, 0], sizes = [1, 192], strides = [1, 1]} : vector<24x192xf32> to vector<1x192xf32>
    %297 = vector.extract_strided_slice %283 {offsets = [7, 0], sizes = [1, 192], strides = [1, 1]} : vector<24x192xf32> to vector<1x192xf32>
    %298 = arith.maximumf %296, %297 : vector<1x192xf32>
    %c3_274 = arith.constant 3 : index
    %c0_275 = arith.constant 0 : index
    %299 = vector.load %arg16[%c3_274, %c0_275] : memref<12x192xf32, #tpu.memory_space<vmem>>, vector<1x192xf32>
    tpu.vector_store %arg16[%c3_274, %c0_275], %298 {strides = array<i32>} : memref<12x192xf32, #tpu.memory_space<vmem>>, vector<1x192xf32>,
    %300 = vector.extract_strided_slice %283 {offsets = [8, 0], sizes = [1, 192], strides = [1, 1]} : vector<24x192xf32> to vector<1x192xf32>
    %301 = vector.extract_strided_slice %283 {offsets = [9, 0], sizes = [1, 192], strides = [1, 1]} : vector<24x192xf32> to vector<1x192xf32>
    %302 = arith.maximumf %300, %301 : vector<1x192xf32>
    %c4_276 = arith.constant 4 : index
    %c0_277 = arith.constant 0 : index
    %303 = vector.load %arg16[%c4_276, %c0_277] : memref<12x192xf32, #tpu.memory_space<vmem>>, vector<1x192xf32>
    tpu.vector_store %arg16[%c4_276, %c0_277], %302 {strides = array<i32>} : memref<12x192xf32, #tpu.memory_space<vmem>>, vector<1x192xf32>,
    %304 = vector.extract_strided_slice %283 {offsets = [10, 0], sizes = [1, 192], strides = [1, 1]} : vector<24x192xf32> to vector<1x192xf32>
    %305 = vector.extract_strided_slice %283 {offsets = [11, 0], sizes = [1, 192], strides = [1, 1]} : vector<24x192xf32> to vector<1x192xf32>
    %306 = arith.maximumf %304, %305 : vector<1x192xf32>
    %c5_278 = arith.constant 5 : index
    %c0_279 = arith.constant 0 : index
    %307 = vector.load %arg16[%c5_278, %c0_279] : memref<12x192xf32, #tpu.memory_space<vmem>>, vector<1x192xf32>
    tpu.vector_store %arg16[%c5_278, %c0_279], %306 {strides = array<i32>} : memref<12x192xf32, #tpu.memory_space<vmem>>, vector<1x192xf32>,
    %308 = vector.extract_strided_slice %283 {offsets = [12, 0], sizes = [1, 192], strides = [1, 1]} : vector<24x192xf32> to vector<1x192xf32>
    %309 = vector.extract_strided_slice %283 {offsets = [13, 0], sizes = [1, 192], strides = [1, 1]} : vector<24x192xf32> to vector<1x192xf32>
    %310 = arith.maximumf %308, %309 : vector<1x192xf32>
    %c6_280 = arith.constant 6 : index
    %c0_281 = arith.constant 0 : index
    %311 = vector.load %arg16[%c6_280, %c0_281] : memref<12x192xf32, #tpu.memory_space<vmem>>, vector<1x192xf32>
    tpu.vector_store %arg16[%c6_280, %c0_281], %310 {strides = array<i32>} : memref<12x192xf32, #tpu.memory_space<vmem>>, vector<1x192xf32>,
    %312 = vector.extract_strided_slice %283 {offsets = [14, 0], sizes = [1, 192], strides = [1, 1]} : vector<24x192xf32> to vector<1x192xf32>
    %313 = vector.extract_strided_slice %283 {offsets = [15, 0], sizes = [1, 192], strides = [1, 1]} : vector<24x192xf32> to vector<1x192xf32>
    %314 = arith.maximumf %312, %313 : vector<1x192xf32>
    %c7_282 = arith.constant 7 : index
    %c0_283 = arith.constant 0 : index
    %315 = vector.load %arg16[%c7_282, %c0_283] : memref<12x192xf32, #tpu.memory_space<vmem>>, vector<1x192xf32>
    tpu.vector_store %arg16[%c7_282, %c0_283], %314 {strides = array<i32>} : memref<12x192xf32, #tpu.memory_space<vmem>>, vector<1x192xf32>,
    %316 = vector.extract_strided_slice %283 {offsets = [16, 0], sizes = [1, 192], strides = [1, 1]} : vector<24x192xf32> to vector<1x192xf32>
    %317 = vector.extract_strided_slice %283 {offsets = [17, 0], sizes = [1, 192], strides = [1, 1]} : vector<24x192xf32> to vector<1x192xf32>
    %318 = arith.maximumf %316, %317 : vector<1x192xf32>
    %c8_284 = arith.constant 8 : index
    %c0_285 = arith.constant 0 : index
    %319 = vector.load %arg16[%c8_284, %c0_285] : memref<12x192xf32, #tpu.memory_space<vmem>>, vector<1x192xf32>
    tpu.vector_store %arg16[%c8_284, %c0_285], %318 {strides = array<i32>} : memref<12x192xf32, #tpu.memory_space<vmem>>, vector<1x192xf32>,
    %320 = vector.extract_strided_slice %283 {offsets = [18, 0], sizes = [1, 192], strides = [1, 1]} : vector<24x192xf32> to vector<1x192xf32>
    %321 = vector.extract_strided_slice %283 {offsets = [19, 0], sizes = [1, 192], strides = [1, 1]} : vector<24x192xf32> to vector<1x192xf32>
    %322 = arith.maximumf %320, %321 : vector<1x192xf32>
    %c9_286 = arith.constant 9 : index
    %c0_287 = arith.constant 0 : index
    %323 = vector.load %arg16[%c9_286, %c0_287] : memref<12x192xf32, #tpu.memory_space<vmem>>, vector<1x192xf32>
    tpu.vector_store %arg16[%c9_286, %c0_287], %322 {strides = array<i32>} : memref<12x192xf32, #tpu.memory_space<vmem>>, vector<1x192xf32>,
    %324 = vector.extract_strided_slice %283 {offsets = [20, 0], sizes = [1, 192], strides = [1, 1]} : vector<24x192xf32> to vector<1x192xf32>
    %325 = vector.extract_strided_slice %283 {offsets = [21, 0], sizes = [1, 192], strides = [1, 1]} : vector<24x192xf32> to vector<1x192xf32>
    %326 = arith.maximumf %324, %325 : vector<1x192xf32>
    %c10_288 = arith.constant 10 : index
    %c0_289 = arith.constant 0 : index
    %327 = vector.load %arg16[%c10_288, %c0_289] : memref<12x192xf32, #tpu.memory_space<vmem>>, vector<1x192xf32>
    tpu.vector_store %arg16[%c10_288, %c0_289], %326 {strides = array<i32>} : memref<12x192xf32, #tpu.memory_space<vmem>>, vector<1x192xf32>,
    %328 = vector.extract_strided_slice %283 {offsets = [22, 0], sizes = [1, 192], strides = [1, 1]} : vector<24x192xf32> to vector<1x192xf32>
    %329 = vector.extract_strided_slice %283 {offsets = [23, 0], sizes = [1, 192], strides = [1, 1]} : vector<24x192xf32> to vector<1x192xf32>
    %330 = arith.maximumf %328, %329 : vector<1x192xf32>
    %c11_290 = arith.constant 11 : index
    %c0_291 = arith.constant 0 : index
    %331 = vector.load %arg16[%c11_290, %c0_291] : memref<12x192xf32, #tpu.memory_space<vmem>>, vector<1x192xf32>
    tpu.vector_store %arg16[%c11_290, %c0_291], %330 {strides = array<i32>} : memref<12x192xf32, #tpu.memory_space<vmem>>, vector<1x192xf32>,
    %c0_292 = arith.constant 0 : index
    %c0_293 = arith.constant 0 : index
    %332 = vector.load %arg16[%c0_292, %c0_293] : memref<12x192xf32, #tpu.memory_space<vmem>>, vector<12x8xf32>
    %c0_294 = arith.constant 0 : index
    %c8_295 = arith.constant 8 : index
    %333 = vector.load %arg16[%c0_294, %c8_295] : memref<12x192xf32, #tpu.memory_space<vmem>>, vector<12x8xf32>
    %334 = arith.maximumf %332, %333 : vector<12x8xf32>
    %c1_296 = arith.constant 1 : index
    %c8_297 = arith.constant 8 : index
    %335 = vector.load %arg14[%c1_296, %c8_297] : memref<14x112xf32, #tpu.memory_space<vmem>>, vector<12x8xf32>
    tpu.vector_store %arg14[%c1_296, %c8_297], %334 {strides = array<i32>} : memref<14x112xf32, #tpu.memory_space<vmem>>, vector<12x8xf32>,
    %c0_298 = arith.constant 0 : index
    %c16_299 = arith.constant 16 : index
    %336 = vector.load %arg16[%c0_298, %c16_299] : memref<12x192xf32, #tpu.memory_space<vmem>>, vector<12x8xf32>
    %c0_300 = arith.constant 0 : index
    %c24_301 = arith.constant 24 : index
    %337 = vector.load %arg16[%c0_300, %c24_301] : memref<12x192xf32, #tpu.memory_space<vmem>>, vector<12x8xf32>
    %338 = arith.maximumf %336, %337 : vector<12x8xf32>
    %c1_302 = arith.constant 1 : index
    %c16_303 = arith.constant 16 : index
    %339 = vector.load %arg14[%c1_302, %c16_303] : memref<14x112xf32, #tpu.memory_space<vmem>>, vector<12x8xf32>
    tpu.vector_store %arg14[%c1_302, %c16_303], %338 {strides = array<i32>} : memref<14x112xf32, #tpu.memory_space<vmem>>, vector<12x8xf32>,
    %c0_304 = arith.constant 0 : index
    %c32_305 = arith.constant 32 : index
    %340 = vector.load %arg16[%c0_304, %c32_305] : memref<12x192xf32, #tpu.memory_space<vmem>>, vector<12x8xf32>
    %c0_306 = arith.constant 0 : index
    %c40_307 = arith.constant 40 : index
    %341 = vector.load %arg16[%c0_306, %c40_307] : memref<12x192xf32, #tpu.memory_space<vmem>>, vector<12x8xf32>
    %342 = arith.maximumf %340, %341 : vector<12x8xf32>
    %c1_308 = arith.constant 1 : index
    %c24_309 = arith.constant 24 : index
    %343 = vector.load %arg14[%c1_308, %c24_309] : memref<14x112xf32, #tpu.memory_space<vmem>>, vector<12x8xf32>
    tpu.vector_store %arg14[%c1_308, %c24_309], %342 {strides = array<i32>} : memref<14x112xf32, #tpu.memory_space<vmem>>, vector<12x8xf32>,
    %c0_310 = arith.constant 0 : index
    %c48_311 = arith.constant 48 : index
    %344 = vector.load %arg16[%c0_310, %c48_311] : memref<12x192xf32, #tpu.memory_space<vmem>>, vector<12x8xf32>
    %c0_312 = arith.constant 0 : index
    %c56_313 = arith.constant 56 : index
    %345 = vector.load %arg16[%c0_312, %c56_313] : memref<12x192xf32, #tpu.memory_space<vmem>>, vector<12x8xf32>
    %346 = arith.maximumf %344, %345 : vector<12x8xf32>
    %c1_314 = arith.constant 1 : index
    %c32_315 = arith.constant 32 : index
    %347 = vector.load %arg14[%c1_314, %c32_315] : memref<14x112xf32, #tpu.memory_space<vmem>>, vector<12x8xf32>
    tpu.vector_store %arg14[%c1_314, %c32_315], %346 {strides = array<i32>} : memref<14x112xf32, #tpu.memory_space<vmem>>, vector<12x8xf32>,
    %c0_316 = arith.constant 0 : index
    %c64_317 = arith.constant 64 : index
    %348 = vector.load %arg16[%c0_316, %c64_317] : memref<12x192xf32, #tpu.memory_space<vmem>>, vector<12x8xf32>
    %c0_318 = arith.constant 0 : index
    %c72_319 = arith.constant 72 : index
    %349 = vector.load %arg16[%c0_318, %c72_319] : memref<12x192xf32, #tpu.memory_space<vmem>>, vector<12x8xf32>
    %350 = arith.maximumf %348, %349 : vector<12x8xf32>
    %c1_320 = arith.constant 1 : index
    %c40_321 = arith.constant 40 : index
    %351 = vector.load %arg14[%c1_320, %c40_321] : memref<14x112xf32, #tpu.memory_space<vmem>>, vector<12x8xf32>
    tpu.vector_store %arg14[%c1_320, %c40_321], %350 {strides = array<i32>} : memref<14x112xf32, #tpu.memory_space<vmem>>, vector<12x8xf32>,
    %c0_322 = arith.constant 0 : index
    %c80_323 = arith.constant 80 : index
    %352 = vector.load %arg16[%c0_322, %c80_323] : memref<12x192xf32, #tpu.memory_space<vmem>>, vector<12x8xf32>
    %c0_324 = arith.constant 0 : index
    %c88_325 = arith.constant 88 : index
    %353 = vector.load %arg16[%c0_324, %c88_325] : memref<12x192xf32, #tpu.memory_space<vmem>>, vector<12x8xf32>
    %354 = arith.maximumf %352, %353 : vector<12x8xf32>
    %c1_326 = arith.constant 1 : index
    %c48_327 = arith.constant 48 : index
    %355 = vector.load %arg14[%c1_326, %c48_327] : memref<14x112xf32, #tpu.memory_space<vmem>>, vector<12x8xf32>
    tpu.vector_store %arg14[%c1_326, %c48_327], %354 {strides = array<i32>} : memref<14x112xf32, #tpu.memory_space<vmem>>, vector<12x8xf32>,
    %c0_328 = arith.constant 0 : index
    %c96_329 = arith.constant 96 : index
    %356 = vector.load %arg16[%c0_328, %c96_329] : memref<12x192xf32, #tpu.memory_space<vmem>>, vector<12x8xf32>
    %c0_330 = arith.constant 0 : index
    %c104_331 = arith.constant 104 : index
    %357 = vector.load %arg16[%c0_330, %c104_331] : memref<12x192xf32, #tpu.memory_space<vmem>>, vector<12x8xf32>
    %358 = arith.maximumf %356, %357 : vector<12x8xf32>
    %c1_332 = arith.constant 1 : index
    %c56_333 = arith.constant 56 : index
    %359 = vector.load %arg14[%c1_332, %c56_333] : memref<14x112xf32, #tpu.memory_space<vmem>>, vector<12x8xf32>
    tpu.vector_store %arg14[%c1_332, %c56_333], %358 {strides = array<i32>} : memref<14x112xf32, #tpu.memory_space<vmem>>, vector<12x8xf32>,
    %c0_334 = arith.constant 0 : index
    %c112_335 = arith.constant 112 : index
    %360 = vector.load %arg16[%c0_334, %c112_335] : memref<12x192xf32, #tpu.memory_space<vmem>>, vector<12x8xf32>
    %c0_336 = arith.constant 0 : index
    %c120_337 = arith.constant 120 : index
    %361 = vector.load %arg16[%c0_336, %c120_337] : memref<12x192xf32, #tpu.memory_space<vmem>>, vector<12x8xf32>
    %362 = arith.maximumf %360, %361 : vector<12x8xf32>
    %c1_338 = arith.constant 1 : index
    %c64_339 = arith.constant 64 : index
    %363 = vector.load %arg14[%c1_338, %c64_339] : memref<14x112xf32, #tpu.memory_space<vmem>>, vector<12x8xf32>
    tpu.vector_store %arg14[%c1_338, %c64_339], %362 {strides = array<i32>} : memref<14x112xf32, #tpu.memory_space<vmem>>, vector<12x8xf32>,
    %c0_340 = arith.constant 0 : index
    %c128_341 = arith.constant 128 : index
    %364 = vector.load %arg16[%c0_340, %c128_341] : memref<12x192xf32, #tpu.memory_space<vmem>>, vector<12x8xf32>
    %c0_342 = arith.constant 0 : index
    %c136_343 = arith.constant 136 : index
    %365 = vector.load %arg16[%c0_342, %c136_343] : memref<12x192xf32, #tpu.memory_space<vmem>>, vector<12x8xf32>
    %366 = arith.maximumf %364, %365 : vector<12x8xf32>
    %c1_344 = arith.constant 1 : index
    %c72_345 = arith.constant 72 : index
    %367 = vector.load %arg14[%c1_344, %c72_345] : memref<14x112xf32, #tpu.memory_space<vmem>>, vector<12x8xf32>
    tpu.vector_store %arg14[%c1_344, %c72_345], %366 {strides = array<i32>} : memref<14x112xf32, #tpu.memory_space<vmem>>, vector<12x8xf32>,
    %c0_346 = arith.constant 0 : index
    %c144_347 = arith.constant 144 : index
    %368 = vector.load %arg16[%c0_346, %c144_347] : memref<12x192xf32, #tpu.memory_space<vmem>>, vector<12x8xf32>
    %c0_348 = arith.constant 0 : index
    %c152_349 = arith.constant 152 : index
    %369 = vector.load %arg16[%c0_348, %c152_349] : memref<12x192xf32, #tpu.memory_space<vmem>>, vector<12x8xf32>
    %370 = arith.maximumf %368, %369 : vector<12x8xf32>
    %c1_350 = arith.constant 1 : index
    %c80_351 = arith.constant 80 : index
    %371 = vector.load %arg14[%c1_350, %c80_351] : memref<14x112xf32, #tpu.memory_space<vmem>>, vector<12x8xf32>
    tpu.vector_store %arg14[%c1_350, %c80_351], %370 {strides = array<i32>} : memref<14x112xf32, #tpu.memory_space<vmem>>, vector<12x8xf32>,
    %c0_352 = arith.constant 0 : index
    %c160_353 = arith.constant 160 : index
    %372 = vector.load %arg16[%c0_352, %c160_353] : memref<12x192xf32, #tpu.memory_space<vmem>>, vector<12x8xf32>
    %c0_354 = arith.constant 0 : index
    %c168_355 = arith.constant 168 : index
    %373 = vector.load %arg16[%c0_354, %c168_355] : memref<12x192xf32, #tpu.memory_space<vmem>>, vector<12x8xf32>
    %374 = arith.maximumf %372, %373 : vector<12x8xf32>
    %c1_356 = arith.constant 1 : index
    %c88_357 = arith.constant 88 : index
    %375 = vector.load %arg14[%c1_356, %c88_357] : memref<14x112xf32, #tpu.memory_space<vmem>>, vector<12x8xf32>
    tpu.vector_store %arg14[%c1_356, %c88_357], %374 {strides = array<i32>} : memref<14x112xf32, #tpu.memory_space<vmem>>, vector<12x8xf32>,
    %c0_358 = arith.constant 0 : index
    %c176_359 = arith.constant 176 : index
    %376 = vector.load %arg16[%c0_358, %c176_359] : memref<12x192xf32, #tpu.memory_space<vmem>>, vector<12x8xf32>
    %c0_360 = arith.constant 0 : index
    %c184_361 = arith.constant 184 : index
    %377 = vector.load %arg16[%c0_360, %c184_361] : memref<12x192xf32, #tpu.memory_space<vmem>>, vector<12x8xf32>
    %378 = arith.maximumf %376, %377 : vector<12x8xf32>
    %c1_362 = arith.constant 1 : index
    %c96_363 = arith.constant 96 : index
    %379 = vector.load %arg14[%c1_362, %c96_363] : memref<14x112xf32, #tpu.memory_space<vmem>>, vector<12x8xf32>
    tpu.vector_store %arg14[%c1_362, %c96_363], %378 {strides = array<i32>} : memref<14x112xf32, #tpu.memory_space<vmem>>, vector<12x8xf32>,
    %c0_364 = arith.constant 0 : index
    %c0_365 = arith.constant 0 : index
    %380 = vector.load %arg14[%c0_364, %c0_365] : memref<14x112xf32, #tpu.memory_space<vmem>>, vector<12x112xf32>
    %c0_366 = arith.constant 0 : index
    %c0_367 = arith.constant 0 : index
    %c0_368 = arith.constant 0 : index
    %381 = vector.load %arg3[%c0_366, %c0_367, %c0_368] : memref<3x112x192xf32, #tpu.memory_space<vmem>>, vector<1x112x192xf32>
    %382 = vector.shape_cast %381 : vector<1x112x192xf32> to vector<112x192xf32>
    %cst_369 = arith.constant dense<0.000000e+00> : vector<12x192xf32>
    %383 = tpu.matmul %380, %382, %cst_369 {dimension_numbers = #tpu.dot_dimension_numbers<[1], [0], [0], [1], [0, 0, 1, 1], [], []>} : vector<12x112xf32>, vector<112x192xf32>, vector<12x192xf32> -> vector<12x192xf32>
    %c1_370 = arith.constant 1 : index
    %c0_371 = arith.constant 0 : index
    %384 = vector.load %arg14[%c1_370, %c0_371] : memref<14x112xf32, #tpu.memory_space<vmem>>, vector<12x112xf32>
    %c1_372 = arith.constant 1 : index
    %c0_373 = arith.constant 0 : index
    %c0_374 = arith.constant 0 : index
    %385 = vector.load %arg3[%c1_372, %c0_373, %c0_374] : memref<3x112x192xf32, #tpu.memory_space<vmem>>, vector<1x112x192xf32>
    %386 = vector.shape_cast %385 : vector<1x112x192xf32> to vector<112x192xf32>
    %cst_375 = arith.constant dense<0.000000e+00> : vector<12x192xf32>
    %387 = tpu.matmul %384, %386, %cst_375 {dimension_numbers = #tpu.dot_dimension_numbers<[1], [0], [0], [1], [0, 0, 1, 1], [], []>} : vector<12x112xf32>, vector<112x192xf32>, vector<12x192xf32> -> vector<12x192xf32>
    %388 = arith.addf %383, %387 : vector<12x192xf32>
    %c2_376 = arith.constant 2 : index
    %c0_377 = arith.constant 0 : index
    %389 = vector.load %arg14[%c2_376, %c0_377] : memref<14x112xf32, #tpu.memory_space<vmem>>, vector<12x112xf32>
    %c2_378 = arith.constant 2 : index
    %c0_379 = arith.constant 0 : index
    %c0_380 = arith.constant 0 : index
    %390 = vector.load %arg3[%c2_378, %c0_379, %c0_380] : memref<3x112x192xf32, #tpu.memory_space<vmem>>, vector<1x112x192xf32>
    %391 = vector.shape_cast %390 : vector<1x112x192xf32> to vector<112x192xf32>
    %cst_381 = arith.constant dense<0.000000e+00> : vector<12x192xf32>
    %392 = tpu.matmul %389, %391, %cst_381 {dimension_numbers = #tpu.dot_dimension_numbers<[1], [0], [0], [1], [0, 0, 1, 1], [], []>} : vector<12x112xf32>, vector<112x192xf32>, vector<12x192xf32> -> vector<12x192xf32>
    %393 = arith.addf %388, %392 : vector<12x192xf32>
    %c0_382 = arith.constant 0 : index
    %c0_383 = arith.constant 0 : index
    %394 = vector.load %arg4[%c0_382, %c0_383] : memref<1x192xf32, #tpu.memory_space<vmem>>, vector<1x192xf32>
    %395 = vector.broadcast %394 : vector<1x192xf32> to vector<12x192xf32>
    %396 = arith.addf %393, %395 : vector<12x192xf32>
    %cst_384 = arith.constant 0.000000e+00 : f32
    %397 = vector.broadcast %cst_384 : f32 to vector<12x192xf32>
    %398 = arith.maximumf %396, %397 : vector<12x192xf32>
    %399 = vector.extract_strided_slice %398 {offsets = [0, 0], sizes = [1, 192], strides = [1, 1]} : vector<12x192xf32> to vector<1x192xf32>
    %400 = vector.extract_strided_slice %398 {offsets = [1, 0], sizes = [1, 192], strides = [1, 1]} : vector<12x192xf32> to vector<1x192xf32>
    %401 = arith.maximumf %399, %400 : vector<1x192xf32>
    %c0_385 = arith.constant 0 : index
    %c0_386 = arith.constant 0 : index
    %402 = vector.load %arg16[%c0_385, %c0_386] : memref<12x192xf32, #tpu.memory_space<vmem>>, vector<1x192xf32>
    tpu.vector_store %arg16[%c0_385, %c0_386], %401 {strides = array<i32>} : memref<12x192xf32, #tpu.memory_space<vmem>>, vector<1x192xf32>,
    %403 = vector.extract_strided_slice %398 {offsets = [2, 0], sizes = [1, 192], strides = [1, 1]} : vector<12x192xf32> to vector<1x192xf32>
    %404 = vector.extract_strided_slice %398 {offsets = [3, 0], sizes = [1, 192], strides = [1, 1]} : vector<12x192xf32> to vector<1x192xf32>
    %405 = arith.maximumf %403, %404 : vector<1x192xf32>
    %c1_387 = arith.constant 1 : index
    %c0_388 = arith.constant 0 : index
    %406 = vector.load %arg16[%c1_387, %c0_388] : memref<12x192xf32, #tpu.memory_space<vmem>>, vector<1x192xf32>
    tpu.vector_store %arg16[%c1_387, %c0_388], %405 {strides = array<i32>} : memref<12x192xf32, #tpu.memory_space<vmem>>, vector<1x192xf32>,
    %407 = vector.extract_strided_slice %398 {offsets = [4, 0], sizes = [1, 192], strides = [1, 1]} : vector<12x192xf32> to vector<1x192xf32>
    %408 = vector.extract_strided_slice %398 {offsets = [5, 0], sizes = [1, 192], strides = [1, 1]} : vector<12x192xf32> to vector<1x192xf32>
    %409 = arith.maximumf %407, %408 : vector<1x192xf32>
    %c2_389 = arith.constant 2 : index
    %c0_390 = arith.constant 0 : index
    %410 = vector.load %arg16[%c2_389, %c0_390] : memref<12x192xf32, #tpu.memory_space<vmem>>, vector<1x192xf32>
    tpu.vector_store %arg16[%c2_389, %c0_390], %409 {strides = array<i32>} : memref<12x192xf32, #tpu.memory_space<vmem>>, vector<1x192xf32>,
    %411 = vector.extract_strided_slice %398 {offsets = [6, 0], sizes = [1, 192], strides = [1, 1]} : vector<12x192xf32> to vector<1x192xf32>
    %412 = vector.extract_strided_slice %398 {offsets = [7, 0], sizes = [1, 192], strides = [1, 1]} : vector<12x192xf32> to vector<1x192xf32>
    %413 = arith.maximumf %411, %412 : vector<1x192xf32>
    %c3_391 = arith.constant 3 : index
    %c0_392 = arith.constant 0 : index
    %414 = vector.load %arg16[%c3_391, %c0_392] : memref<12x192xf32, #tpu.memory_space<vmem>>, vector<1x192xf32>
    tpu.vector_store %arg16[%c3_391, %c0_392], %413 {strides = array<i32>} : memref<12x192xf32, #tpu.memory_space<vmem>>, vector<1x192xf32>,
    %415 = vector.extract_strided_slice %398 {offsets = [8, 0], sizes = [1, 192], strides = [1, 1]} : vector<12x192xf32> to vector<1x192xf32>
    %416 = vector.extract_strided_slice %398 {offsets = [9, 0], sizes = [1, 192], strides = [1, 1]} : vector<12x192xf32> to vector<1x192xf32>
    %417 = arith.maximumf %415, %416 : vector<1x192xf32>
    %c4_393 = arith.constant 4 : index
    %c0_394 = arith.constant 0 : index
    %418 = vector.load %arg16[%c4_393, %c0_394] : memref<12x192xf32, #tpu.memory_space<vmem>>, vector<1x192xf32>
    tpu.vector_store %arg16[%c4_393, %c0_394], %417 {strides = array<i32>} : memref<12x192xf32, #tpu.memory_space<vmem>>, vector<1x192xf32>,
    %419 = vector.extract_strided_slice %398 {offsets = [10, 0], sizes = [1, 192], strides = [1, 1]} : vector<12x192xf32> to vector<1x192xf32>
    %420 = vector.extract_strided_slice %398 {offsets = [11, 0], sizes = [1, 192], strides = [1, 1]} : vector<12x192xf32> to vector<1x192xf32>
    %421 = arith.maximumf %419, %420 : vector<1x192xf32>
    %c5_395 = arith.constant 5 : index
    %c0_396 = arith.constant 0 : index
    %422 = vector.load %arg16[%c5_395, %c0_396] : memref<12x192xf32, #tpu.memory_space<vmem>>, vector<1x192xf32>
    tpu.vector_store %arg16[%c5_395, %c0_396], %421 {strides = array<i32>} : memref<12x192xf32, #tpu.memory_space<vmem>>, vector<1x192xf32>,
    %c0_397 = arith.constant 0 : index
    %c0_398 = arith.constant 0 : index
    %423 = vector.load %arg16[%c0_397, %c0_398] : memref<12x192xf32, #tpu.memory_space<vmem>>, vector<6x16xf32>
    %c0_399 = arith.constant 0 : index
    %c16_400 = arith.constant 16 : index
    %424 = vector.load %arg16[%c0_399, %c16_400] : memref<12x192xf32, #tpu.memory_space<vmem>>, vector<6x16xf32>
    %425 = arith.maximumf %423, %424 : vector<6x16xf32>
    %c1_401 = arith.constant 1 : index
    %c16_402 = arith.constant 16 : index
    %426 = vector.load %arg15[%c1_401, %c16_402] : memref<8x128xf32, #tpu.memory_space<vmem>>, vector<6x16xf32>
    tpu.vector_store %arg15[%c1_401, %c16_402], %425 {strides = array<i32>} : memref<8x128xf32, #tpu.memory_space<vmem>>, vector<6x16xf32>,
    %c0_403 = arith.constant 0 : index
    %c32_404 = arith.constant 32 : index
    %427 = vector.load %arg16[%c0_403, %c32_404] : memref<12x192xf32, #tpu.memory_space<vmem>>, vector<6x16xf32>
    %c0_405 = arith.constant 0 : index
    %c48_406 = arith.constant 48 : index
    %428 = vector.load %arg16[%c0_405, %c48_406] : memref<12x192xf32, #tpu.memory_space<vmem>>, vector<6x16xf32>
    %429 = arith.maximumf %427, %428 : vector<6x16xf32>
    %c1_407 = arith.constant 1 : index
    %c32_408 = arith.constant 32 : index
    %430 = vector.load %arg15[%c1_407, %c32_408] : memref<8x128xf32, #tpu.memory_space<vmem>>, vector<6x16xf32>
    tpu.vector_store %arg15[%c1_407, %c32_408], %429 {strides = array<i32>} : memref<8x128xf32, #tpu.memory_space<vmem>>, vector<6x16xf32>,
    %c0_409 = arith.constant 0 : index
    %c64_410 = arith.constant 64 : index
    %431 = vector.load %arg16[%c0_409, %c64_410] : memref<12x192xf32, #tpu.memory_space<vmem>>, vector<6x16xf32>
    %c0_411 = arith.constant 0 : index
    %c80_412 = arith.constant 80 : index
    %432 = vector.load %arg16[%c0_411, %c80_412] : memref<12x192xf32, #tpu.memory_space<vmem>>, vector<6x16xf32>
    %433 = arith.maximumf %431, %432 : vector<6x16xf32>
    %c1_413 = arith.constant 1 : index
    %c48_414 = arith.constant 48 : index
    %434 = vector.load %arg15[%c1_413, %c48_414] : memref<8x128xf32, #tpu.memory_space<vmem>>, vector<6x16xf32>
    tpu.vector_store %arg15[%c1_413, %c48_414], %433 {strides = array<i32>} : memref<8x128xf32, #tpu.memory_space<vmem>>, vector<6x16xf32>,
    %c0_415 = arith.constant 0 : index
    %c96_416 = arith.constant 96 : index
    %435 = vector.load %arg16[%c0_415, %c96_416] : memref<12x192xf32, #tpu.memory_space<vmem>>, vector<6x16xf32>
    %c0_417 = arith.constant 0 : index
    %c112_418 = arith.constant 112 : index
    %436 = vector.load %arg16[%c0_417, %c112_418] : memref<12x192xf32, #tpu.memory_space<vmem>>, vector<6x16xf32>
    %437 = arith.maximumf %435, %436 : vector<6x16xf32>
    %c1_419 = arith.constant 1 : index
    %c64_420 = arith.constant 64 : index
    %438 = vector.load %arg15[%c1_419, %c64_420] : memref<8x128xf32, #tpu.memory_space<vmem>>, vector<6x16xf32>
    tpu.vector_store %arg15[%c1_419, %c64_420], %437 {strides = array<i32>} : memref<8x128xf32, #tpu.memory_space<vmem>>, vector<6x16xf32>,
    %c0_421 = arith.constant 0 : index
    %c128_422 = arith.constant 128 : index
    %439 = vector.load %arg16[%c0_421, %c128_422] : memref<12x192xf32, #tpu.memory_space<vmem>>, vector<6x16xf32>
    %c0_423 = arith.constant 0 : index
    %c144_424 = arith.constant 144 : index
    %440 = vector.load %arg16[%c0_423, %c144_424] : memref<12x192xf32, #tpu.memory_space<vmem>>, vector<6x16xf32>
    %441 = arith.maximumf %439, %440 : vector<6x16xf32>
    %c1_425 = arith.constant 1 : index
    %c80_426 = arith.constant 80 : index
    %442 = vector.load %arg15[%c1_425, %c80_426] : memref<8x128xf32, #tpu.memory_space<vmem>>, vector<6x16xf32>
    tpu.vector_store %arg15[%c1_425, %c80_426], %441 {strides = array<i32>} : memref<8x128xf32, #tpu.memory_space<vmem>>, vector<6x16xf32>,
    %c0_427 = arith.constant 0 : index
    %c160_428 = arith.constant 160 : index
    %443 = vector.load %arg16[%c0_427, %c160_428] : memref<12x192xf32, #tpu.memory_space<vmem>>, vector<6x16xf32>
    %c0_429 = arith.constant 0 : index
    %c176_430 = arith.constant 176 : index
    %444 = vector.load %arg16[%c0_429, %c176_430] : memref<12x192xf32, #tpu.memory_space<vmem>>, vector<6x16xf32>
    %445 = arith.maximumf %443, %444 : vector<6x16xf32>
    %c1_431 = arith.constant 1 : index
    %c96_432 = arith.constant 96 : index
    %446 = vector.load %arg15[%c1_431, %c96_432] : memref<8x128xf32, #tpu.memory_space<vmem>>, vector<6x16xf32>
    tpu.vector_store %arg15[%c1_431, %c96_432], %445 {strides = array<i32>} : memref<8x128xf32, #tpu.memory_space<vmem>>, vector<6x16xf32>,
    %c0_433 = arith.constant 0 : index
    %c0_434 = arith.constant 0 : index
    %447 = vector.load %arg15[%c0_433, %c0_434] : memref<8x128xf32, #tpu.memory_space<vmem>>, vector<6x128xf32>
    %c0_435 = arith.constant 0 : index
    %c0_436 = arith.constant 0 : index
    %c0_437 = arith.constant 0 : index
    %448 = vector.load %arg5[%c0_435, %c0_436, %c0_437] : memref<3x128x192xf32, #tpu.memory_space<vmem>>, vector<1x128x192xf32>
    %449 = vector.shape_cast %448 : vector<1x128x192xf32> to vector<128x192xf32>
    %cst_438 = arith.constant dense<0.000000e+00> : vector<6x192xf32>
    %450 = tpu.matmul %447, %449, %cst_438 {dimension_numbers = #tpu.dot_dimension_numbers<[1], [0], [0], [1], [0, 0, 1, 1], [], []>} : vector<6x128xf32>, vector<128x192xf32>, vector<6x192xf32> -> vector<6x192xf32>
    %c1_439 = arith.constant 1 : index
    %c0_440 = arith.constant 0 : index
    %451 = vector.load %arg15[%c1_439, %c0_440] : memref<8x128xf32, #tpu.memory_space<vmem>>, vector<6x128xf32>
    %c1_441 = arith.constant 1 : index
    %c0_442 = arith.constant 0 : index
    %c0_443 = arith.constant 0 : index
    %452 = vector.load %arg5[%c1_441, %c0_442, %c0_443] : memref<3x128x192xf32, #tpu.memory_space<vmem>>, vector<1x128x192xf32>
    %453 = vector.shape_cast %452 : vector<1x128x192xf32> to vector<128x192xf32>
    %cst_444 = arith.constant dense<0.000000e+00> : vector<6x192xf32>
    %454 = tpu.matmul %451, %453, %cst_444 {dimension_numbers = #tpu.dot_dimension_numbers<[1], [0], [0], [1], [0, 0, 1, 1], [], []>} : vector<6x128xf32>, vector<128x192xf32>, vector<6x192xf32> -> vector<6x192xf32>
    %455 = arith.addf %450, %454 : vector<6x192xf32>
    %c2_445 = arith.constant 2 : index
    %c0_446 = arith.constant 0 : index
    %456 = vector.load %arg15[%c2_445, %c0_446] : memref<8x128xf32, #tpu.memory_space<vmem>>, vector<6x128xf32>
    %c2_447 = arith.constant 2 : index
    %c0_448 = arith.constant 0 : index
    %c0_449 = arith.constant 0 : index
    %457 = vector.load %arg5[%c2_447, %c0_448, %c0_449] : memref<3x128x192xf32, #tpu.memory_space<vmem>>, vector<1x128x192xf32>
    %458 = vector.shape_cast %457 : vector<1x128x192xf32> to vector<128x192xf32>
    %cst_450 = arith.constant dense<0.000000e+00> : vector<6x192xf32>
    %459 = tpu.matmul %456, %458, %cst_450 {dimension_numbers = #tpu.dot_dimension_numbers<[1], [0], [0], [1], [0, 0, 1, 1], [], []>} : vector<6x128xf32>, vector<128x192xf32>, vector<6x192xf32> -> vector<6x192xf32>
    %460 = arith.addf %455, %459 : vector<6x192xf32>
    %c0_451 = arith.constant 0 : index
    %c0_452 = arith.constant 0 : index
    %461 = vector.load %arg6[%c0_451, %c0_452] : memref<1x192xf32, #tpu.memory_space<vmem>>, vector<1x192xf32>
    %462 = vector.broadcast %461 : vector<1x192xf32> to vector<6x192xf32>
    %463 = arith.addf %460, %462 : vector<6x192xf32>
    %cst_453 = arith.constant 0.000000e+00 : f32
    %464 = vector.broadcast %cst_453 : f32 to vector<6x192xf32>
    %465 = arith.maximumf %463, %464 : vector<6x192xf32>
    %466 = vector.extract_strided_slice %465 {offsets = [0, 0], sizes = [1, 192], strides = [1, 1]} : vector<6x192xf32> to vector<1x192xf32>
    %467 = vector.extract_strided_slice %465 {offsets = [1, 0], sizes = [1, 192], strides = [1, 1]} : vector<6x192xf32> to vector<1x192xf32>
    %468 = arith.maximumf %466, %467 : vector<1x192xf32>
    %c0_454 = arith.constant 0 : index
    %c0_455 = arith.constant 0 : index
    %469 = vector.load %arg16[%c0_454, %c0_455] : memref<12x192xf32, #tpu.memory_space<vmem>>, vector<1x192xf32>
    tpu.vector_store %arg16[%c0_454, %c0_455], %468 {strides = array<i32>} : memref<12x192xf32, #tpu.memory_space<vmem>>, vector<1x192xf32>,
    %470 = vector.extract_strided_slice %465 {offsets = [2, 0], sizes = [1, 192], strides = [1, 1]} : vector<6x192xf32> to vector<1x192xf32>
    %471 = vector.extract_strided_slice %465 {offsets = [3, 0], sizes = [1, 192], strides = [1, 1]} : vector<6x192xf32> to vector<1x192xf32>
    %472 = arith.maximumf %470, %471 : vector<1x192xf32>
    %c1_456 = arith.constant 1 : index
    %c0_457 = arith.constant 0 : index
    %473 = vector.load %arg16[%c1_456, %c0_457] : memref<12x192xf32, #tpu.memory_space<vmem>>, vector<1x192xf32>
    tpu.vector_store %arg16[%c1_456, %c0_457], %472 {strides = array<i32>} : memref<12x192xf32, #tpu.memory_space<vmem>>, vector<1x192xf32>,
    %474 = vector.extract_strided_slice %465 {offsets = [4, 0], sizes = [1, 192], strides = [1, 1]} : vector<6x192xf32> to vector<1x192xf32>
    %475 = vector.extract_strided_slice %465 {offsets = [5, 0], sizes = [1, 192], strides = [1, 1]} : vector<6x192xf32> to vector<1x192xf32>
    %476 = arith.maximumf %474, %475 : vector<1x192xf32>
    %c2_458 = arith.constant 2 : index
    %c0_459 = arith.constant 0 : index
    %477 = vector.load %arg16[%c2_458, %c0_459] : memref<12x192xf32, #tpu.memory_space<vmem>>, vector<1x192xf32>
    tpu.vector_store %arg16[%c2_458, %c0_459], %476 {strides = array<i32>} : memref<12x192xf32, #tpu.memory_space<vmem>>, vector<1x192xf32>,
    %c0_460 = arith.constant 0 : index
    %c0_461 = arith.constant 0 : index
    %478 = vector.load %arg16[%c0_460, %c0_461] : memref<12x192xf32, #tpu.memory_space<vmem>>, vector<3x32xf32>
    %c0_462 = arith.constant 0 : index
    %c32_463 = arith.constant 32 : index
    %479 = vector.load %arg16[%c0_462, %c32_463] : memref<12x192xf32, #tpu.memory_space<vmem>>, vector<3x32xf32>
    %480 = arith.maximumf %478, %479 : vector<3x32xf32>
    %c0_464 = arith.constant 0 : index
    %c0_465 = arith.constant 0 : index
    %481 = vector.load %arg17[%c0_464, %c0_465] : memref<3x96xf32, #tpu.memory_space<vmem>>, vector<3x32xf32>
    tpu.vector_store %arg17[%c0_464, %c0_465], %480 {strides = array<i32>} : memref<3x96xf32, #tpu.memory_space<vmem>>, vector<3x32xf32>,
    %c0_466 = arith.constant 0 : index
    %c64_467 = arith.constant 64 : index
    %482 = vector.load %arg16[%c0_466, %c64_467] : memref<12x192xf32, #tpu.memory_space<vmem>>, vector<3x32xf32>
    %c0_468 = arith.constant 0 : index
    %c96_469 = arith.constant 96 : index
    %483 = vector.load %arg16[%c0_468, %c96_469] : memref<12x192xf32, #tpu.memory_space<vmem>>, vector<3x32xf32>
    %484 = arith.maximumf %482, %483 : vector<3x32xf32>
    %c0_470 = arith.constant 0 : index
    %c32_471 = arith.constant 32 : index
    %485 = vector.load %arg17[%c0_470, %c32_471] : memref<3x96xf32, #tpu.memory_space<vmem>>, vector<3x32xf32>
    tpu.vector_store %arg17[%c0_470, %c32_471], %484 {strides = array<i32>} : memref<3x96xf32, #tpu.memory_space<vmem>>, vector<3x32xf32>,
    %c0_472 = arith.constant 0 : index
    %c128_473 = arith.constant 128 : index
    %486 = vector.load %arg16[%c0_472, %c128_473] : memref<12x192xf32, #tpu.memory_space<vmem>>, vector<3x32xf32>
    %c0_474 = arith.constant 0 : index
    %c160_475 = arith.constant 160 : index
    %487 = vector.load %arg16[%c0_474, %c160_475] : memref<12x192xf32, #tpu.memory_space<vmem>>, vector<3x32xf32>
    %488 = arith.maximumf %486, %487 : vector<3x32xf32>
    %c0_476 = arith.constant 0 : index
    %c64_477 = arith.constant 64 : index
    %489 = vector.load %arg17[%c0_476, %c64_477] : memref<3x96xf32, #tpu.memory_space<vmem>>, vector<3x32xf32>
    tpu.vector_store %arg17[%c0_476, %c64_477], %488 {strides = array<i32>} : memref<3x96xf32, #tpu.memory_space<vmem>>, vector<3x32xf32>,
    %c0_478 = arith.constant 0 : index
    %c0_479 = arith.constant 0 : index
    %490 = vector.load %arg17[%c0_478, %c0_479] : memref<3x96xf32, #tpu.memory_space<vmem>>, vector<1x96xf32>
    %c1_480 = arith.constant 1 : index
    %c0_481 = arith.constant 0 : index
    %491 = vector.load %arg18[%c1_480, %c0_481] : memref<2x288xf32, #tpu.memory_space<vmem>>, vector<1x96xf32>
    tpu.vector_store %arg18[%c1_480, %c0_481], %490 {strides = array<i32>} : memref<2x288xf32, #tpu.memory_space<vmem>>, vector<1x96xf32>,
    %c1_482 = arith.constant 1 : index
    %c0_483 = arith.constant 0 : index
    %492 = vector.load %arg17[%c1_482, %c0_483] : memref<3x96xf32, #tpu.memory_space<vmem>>, vector<1x96xf32>
    %c1_484 = arith.constant 1 : index
    %c96_485 = arith.constant 96 : index
    %493 = vector.load %arg18[%c1_484, %c96_485] : memref<2x288xf32, #tpu.memory_space<vmem>>, vector<1x96xf32>
    tpu.vector_store %arg18[%c1_484, %c96_485], %492 {strides = array<i32>} : memref<2x288xf32, #tpu.memory_space<vmem>>, vector<1x96xf32>,
    %c2_486 = arith.constant 2 : index
    %c0_487 = arith.constant 0 : index
    %494 = vector.load %arg17[%c2_486, %c0_487] : memref<3x96xf32, #tpu.memory_space<vmem>>, vector<1x96xf32>
    %c1_488 = arith.constant 1 : index
    %c192_489 = arith.constant 192 : index
    %495 = vector.load %arg18[%c1_488, %c192_489] : memref<2x288xf32, #tpu.memory_space<vmem>>, vector<1x96xf32>
    tpu.vector_store %arg18[%c1_488, %c192_489], %494 {strides = array<i32>} : memref<2x288xf32, #tpu.memory_space<vmem>>, vector<1x96xf32>,
    %c0_490 = arith.constant 0 : index
    %c0_491 = arith.constant 0 : index
    %496 = vector.load %arg18[%c0_490, %c0_491] : memref<2x288xf32, #tpu.memory_space<vmem>>, vector<2x288xf32>
    %c0_492 = arith.constant 0 : index
    %c0_493 = arith.constant 0 : index
    %497 = vector.load %arg7[%c0_492, %c0_493] : memref<288x120xf32, #tpu.memory_space<vmem>>, vector<288x120xf32>
    %cst_494 = arith.constant dense<0.000000e+00> : vector<2x120xf32>
    %498 = tpu.matmul %496, %497, %cst_494 {dimension_numbers = #tpu.dot_dimension_numbers<[1], [0], [0], [1], [0, 0, 1, 1], [], []>} : vector<2x288xf32>, vector<288x120xf32>, vector<2x120xf32> -> vector<2x120xf32>
    %c0_495 = arith.constant 0 : index
    %c0_496 = arith.constant 0 : index
    %499 = vector.load %arg8[%c0_495, %c0_496] : memref<1x120xf32, #tpu.memory_space<vmem>>, vector<1x120xf32>
    %500 = vector.broadcast %499 : vector<1x120xf32> to vector<2x120xf32>
    %501 = arith.addf %498, %500 : vector<2x120xf32>
    %cst_497 = arith.constant 0.000000e+00 : f32
    %502 = vector.broadcast %cst_497 : f32 to vector<2x120xf32>
    %503 = arith.maximumf %501, %502 : vector<2x120xf32>
    %c0_498 = arith.constant 0 : index
    %c0_499 = arith.constant 0 : index
    %504 = vector.load %arg9[%c0_498, %c0_499] : memref<120x84xf32, #tpu.memory_space<vmem>>, vector<120x84xf32>
    %cst_500 = arith.constant dense<0.000000e+00> : vector<2x84xf32>
    %505 = tpu.matmul %503, %504, %cst_500 {dimension_numbers = #tpu.dot_dimension_numbers<[1], [0], [0], [1], [0, 0, 1, 1], [], []>} : vector<2x120xf32>, vector<120x84xf32>, vector<2x84xf32> -> vector<2x84xf32>
    %c0_501 = arith.constant 0 : index
    %c0_502 = arith.constant 0 : index
    %506 = vector.load %arg10[%c0_501, %c0_502] : memref<1x84xf32, #tpu.memory_space<vmem>>, vector<1x84xf32>
    %507 = vector.broadcast %506 : vector<1x84xf32> to vector<2x84xf32>
    %508 = arith.addf %505, %507 : vector<2x84xf32>
    %cst_503 = arith.constant 0.000000e+00 : f32
    %509 = vector.broadcast %cst_503 : f32 to vector<2x84xf32>
    %510 = arith.maximumf %508, %509 : vector<2x84xf32>
    %c0_504 = arith.constant 0 : index
    %c0_505 = arith.constant 0 : index
    %511 = vector.load %arg11[%c0_504, %c0_505] : memref<84x10xf32, #tpu.memory_space<vmem>>, vector<84x10xf32>
    %cst_506 = arith.constant dense<0.000000e+00> : vector<2x10xf32>
    %512 = tpu.matmul %510, %511, %cst_506 {dimension_numbers = #tpu.dot_dimension_numbers<[1], [0], [0], [1], [0, 0, 1, 1], [], []>} : vector<2x84xf32>, vector<84x10xf32>, vector<2x10xf32> -> vector<2x10xf32>
    %c0_507 = arith.constant 0 : index
    %c0_508 = arith.constant 0 : index
    %513 = vector.load %arg12[%c0_507, %c0_508] : memref<1x10xf32, #tpu.memory_space<vmem>>, vector<1x10xf32>
    %514 = vector.broadcast %513 : vector<1x10xf32> to vector<2x10xf32>
    %515 = arith.addf %512, %514 : vector<2x10xf32>
    %c0_509 = arith.constant 0 : index
    %c0_510 = arith.constant 0 : index
    %516 = vector.load %arg13[%c0_509, %c0_510] : memref<2x10xf32, #tpu.memory_space<vmem>>, vector<2x10xf32>
    tpu.vector_store %arg13[%c0_509, %c0_510], %515 {strides = array<i32>} : memref<2x10xf32, #tpu.memory_space<vmem>>, vector<2x10xf32>,
    return
  }
}

</mosaic_0001>

<llo_original>
// kernel: cnn_forward.1
$region0: #{cnn_forward.1}
  #allocation0 [shape = 'u32[]', space=smem, size = 0x4, offset = 0x4, fixed_abs, tag = 'smem constant byte address 0x4 - core index']
  #allocation1 [shape = 'u32[144,128]{1,0:T(1,128)}', space=vmem, size = 0x12000, scoped, tag = 'internal scratch']
  #allocation2 [shape = 'f32[14,112]{1,0:T(8,128)}', space=vmem, size = 0x2000, scoped, tag = 'scratch operand']
  #allocation3 [shape = 'f32[8,128]{1,0:T(8,128)}', space=vmem, size = 0x1000, scoped, tag = 'scratch operand']
  #allocation4 [shape = 'f32[12,192]{1,0:T(8,128)}', space=vmem, size = 0x4000, scoped, tag = 'scratch operand']
  #allocation5 [shape = 'f32[3,96]{1,0:T(4,128)}', space=vmem, size = 0x800, scoped, tag = 'scratch operand']
  #allocation6 [shape = 'f32[2,288]{1,0:T(2,128)}', space=vmem, size = 0xc00, scoped, tag = 'scratch operand']
  %s0 = inlined_call_operand.vmem [shape: f32[2,28,28], index: 0, kind: input, shape index: {}]
  %s1 = inlined_call_operand.vmem [shape: f32[5,28,192], index: 1, kind: input, shape index: {}]
  %s2 = inlined_call_operand.vmem [shape: f32[1,192], index: 2, kind: input, shape index: {}]
  %s3 = inlined_call_operand.vmem [shape: f32[3,112,192], index: 3, kind: input, shape index: {}]
  %s4 = inlined_call_operand.vmem [shape: f32[1,192], index: 4, kind: input, shape index: {}]
  %s5 = inlined_call_operand.vmem [shape: f32[3,128,192], index: 5, kind: input, shape index: {}]
  %s6 = inlined_call_operand.vmem [shape: f32[1,192], index: 6, kind: input, shape index: {}]
  %s7 = inlined_call_operand.vmem [shape: f32[288,120], index: 7, kind: input, shape index: {}]
  %s8 = inlined_call_operand.vmem [shape: f32[1,120], index: 8, kind: input, shape index: {}]
  %s9 = inlined_call_operand.vmem [shape: f32[120,84], index: 9, kind: input, shape index: {}]
  %s10 = inlined_call_operand.vmem [shape: f32[1,84], index: 10, kind: input, shape index: {}]
  %s11 = inlined_call_operand.vmem [shape: f32[84,10], index: 11, kind: input, shape index: {}]
  %s12 = inlined_call_operand.vmem [shape: f32[1,10], index: 12, kind: input, shape index: {}]
  %s13 = inlined_call_operand.hbm [shape: f32[2,10], index: 13, kind: output, shape index: {}]
  %s14 = sld [smem:[#allocation0]]
  $region62: #{cnn_forward.1} parent=0
    _
  %s16 = ssub.s32 1, %s14
  %s17 = scalar_select 0, %s16, %s14
  $region1: #{cnn_forward.1} parent=0
    #allocation7 [shape = 'u8[1024]{0}', space=vmem, size = 0x400, scoped, tag = 'output window, operand 0, single buffered']
    #allocation8 [shape = 's32[1]{0}', space=sflag, size = 0x4, scoped, tag = 'scoped memory for cnn_forward.1']
    %18 = vsyncpa [#allocation8], 0
    // Predicated region
    $region2: #{cnn_forward.1} parent=1 // pred_check
      _
    $region3: #{cnn_forward.1} parent=1 // pred_check_branch
      %20 = sbr.rel (0) target = $region5
    $region4: #{cnn_forward.1} parent=1 // pred_region
      _
    $region5: #{cnn_forward.1} parent=1 // pred_fallthru
      _
    // Predicated region
    $region6: #{cnn_forward.1} parent=1 // pred_check
      _
    $region7: #{cnn_forward.1} parent=1 // pred_check_branch
      %22 = sbr.rel (0) target = $region9
    $region8: #{cnn_forward.1} parent=1 // pred_region
      _
    $region9: #{cnn_forward.1} parent=1 // pred_fallthru
      _
    // Predicated region
    $region10: #{cnn_forward.1} parent=1 // pred_check
      _
    $region11: #{cnn_forward.1} parent=1 // pred_check_branch
      %24 = sbr.rel (0) target = $region13
    $region12: #{cnn_forward.1} parent=1 // pred_region
      _
    $region13: #{cnn_forward.1} parent=1 // pred_fallthru
      _
    // Predicated region
    $region14: #{cnn_forward.1} parent=1 // pred_check
      _
    $region15: #{cnn_forward.1} parent=1 // pred_check_branch
      %26 = sbr.rel (0) target = $region17
    $region16: #{cnn_forward.1} parent=1 // pred_region
      _
    $region17: #{cnn_forward.1} parent=1 // pred_fallthru
      _
    // Predicated region
    $region18: #{cnn_forward.1} parent=1 // pred_check
      _
    $region19: #{cnn_forward.1} parent=1 // pred_check_branch
      %28 = sbr.rel (0) target = $region21
    $region20: #{cnn_forward.1} parent=1 // pred_region
      _
    $region21: #{cnn_forward.1} parent=1 // pred_fallthru
      _
    // Predicated region
    $region22: #{cnn_forward.1} parent=1 // pred_check
      _
    $region23: #{cnn_forward.1} parent=1 // pred_check_branch
      %30 = sbr.rel (0) target = $region25
    $region24: #{cnn_forward.1} parent=1 // pred_region
      _
    $region25: #{cnn_forward.1} parent=1 // pred_fallthru
      _
    // Predicated region
    $region26: #{cnn_forward.1} parent=1 // pred_check
      _
    $region27: #{cnn_forward.1} parent=1 // pred_check_branch
      %32 = sbr.rel (0) target = $region29
    $region28: #{cnn_forward.1} parent=1 // pred_region
      _
    $region29: #{cnn_forward.1} parent=1 // pred_fallthru
      _
    // Predicated region
    $region30: #{cnn_forward.1} parent=1 // pred_check
      _
    $region31: #{cnn_forward.1} parent=1 // pred_check_branch
      %34 = sbr.rel (0) target = $region33
    $region32: #{cnn_forward.1} parent=1 // pred_region
      _
    $region33: #{cnn_forward.1} parent=1 // pred_fallthru
      _
    // Predicated region
    $region34: #{cnn_forward.1} parent=1 // pred_check
      _
    $region35: #{cnn_forward.1} parent=1 // pred_check_branch
      %36 = sbr.rel (0) target = $region37
    $region36: #{cnn_forward.1} parent=1 // pred_region
      _
    $region37: #{cnn_forward.1} parent=1 // pred_fallthru
      _
    // Predicated region
    $region38: #{cnn_forward.1} parent=1 // pred_check
      _
    $region39: #{cnn_forward.1} parent=1 // pred_check_branch
      %38 = sbr.rel (0) target = $region41
    $region40: #{cnn_forward.1} parent=1 // pred_region
      _
    $region41: #{cnn_forward.1} parent=1 // pred_fallthru
      _
    // Predicated region
    $region42: #{cnn_forward.1} parent=1 // pred_check
      _
    $region43: #{cnn_forward.1} parent=1 // pred_check_branch
      %40 = sbr.rel (0) target = $region45
    $region44: #{cnn_forward.1} parent=1 // pred_region
      _
    $region45: #{cnn_forward.1} parent=1 // pred_fallthru
      _
    // Predicated region
    $region46: #{cnn_forward.1} parent=1 // pred_check
      _
    $region47: #{cnn_forward.1} parent=1 // pred_check_branch
      %42 = sbr.rel (0) target = $region49
    $region48: #{cnn_forward.1} parent=1 // pred_region
      _
    $region49: #{cnn_forward.1} parent=1 // pred_fallthru
      _
    // Predicated region
    $region50: #{cnn_forward.1} parent=1 // pred_check
      _
    $region51: #{cnn_forward.1} parent=1 // pred_check_branch
      %44 = sbr.rel (0) target = $region53
    $region52: #{cnn_forward.1} parent=1 // pred_region
      _
    $region53: #{cnn_forward.1} parent=1 // pred_fallthru
      _
    %vm45 = vcmask 916480
    %46 = vst.msk [vmem:[#allocation2] sm:$0xff] %vm45, 0.0
    %vm47 = vcmask 914432
    %48 = vst.msk [vmem:[#allocation2 + $0x8] sm:$0x3f] %vm47, 0.0
    %49 = vst [vmem:[#allocation3] sm:$0xff] 0.0
    %v50 = vld [vmem:[%s0] sm:$0xff]
    %v51 = vld [vmem:[%s0 + $0x8] sm:$0xff]
    %v52 = vld [vmem:[%s0 + $0x10] sm:$0xff]
    %v53 = vld [vmem:[%s1] sm:$0xff]
    %v54 = vld [vmem:[%s1 + $0x8] sm:$0xff]
    %v55 = vld [vmem:[%s1 + $0x10] sm:$0xff]
    %v56 = vld [vmem:[%s1 + $0x18] sm:$0xff]
    %v57 = vld [vmem:[%s1 + $0x20] sm:$0xff]
    %v58 = vld [vmem:[%s1 + $0x28] sm:$0xff]
    %v59 = vld [vmem:[%s1 + $0x30] sm:$0xf]
    %v60 = vld [vmem:[%s1 + $0x38] sm:$0xf]
    %v61 = vld [vmem:[%s0 + $0x1] sm:$0xff]
    %v62 = vld [vmem:[%s0 + $0x9] sm:$0xff]
    %v63 = vld [vmem:[%s0 + $0x11] sm:$0xff]
    %s64 = scalar_lea.vmem %s1, 64
    %v65 = vld [vmem:[%s64] sm:$0xff]
    %v66 = vld [vmem:[%s64 + $0x8] sm:$0xff]
    %v67 = vld [vmem:[%s64 + $0x10] sm:$0xff]
    %v68 = vld [vmem:[%s64 + $0x18] sm:$0xff]
    %v69 = vld [vmem:[%s64 + $0x20] sm:$0xff]
    %v70 = vld [vmem:[%s64 + $0x28] sm:$0xff]
    %v71 = vld [vmem:[%s64 + $0x30] sm:$0xf]
    %v72 = vld [vmem:[%s64 + $0x38] sm:$0xf]
    %vm73 = vcmask 228352
    %v75 = vsel %vm73, %v61, 0
    %v78 = vsel %vm73, %v62, 0
    %v81 = vsel %vm73, %v63, 0
    %vm83 = vcmask 1043456
    %v85 = vsel %vm83, %v71, 0
    %v88 = vsel %vm83, %v72, 0
    %90 = vmatprep.subr.mxu0 %v66
    %91 = vmatpush1.msra.mxu0 %v65
    %92 = vmatprep.subr.mxu0 %v68
    %93 = vmatpush1.msra.mxu0 %v67
    %94 = vmatprep.subr.mxu0 %v70
    %95 = vmatpush1.msra.mxu0 %v69
    %96 = vmatprep.subr.mxu0 %v88
    %97 = vmatpush1.msra.mxu0 %v85
    %98 = vmatprep.subr.mxu0 0.0
    %99 = vmatpush1.msra.mxu0 0.0
    %100 = vmatprep.subr.mxu0 0.0
    %101 = vmatpush1.msra.mxu0 0.0
    %102 = vmatprep.subr.mxu0 0.0
    %103 = vmatpush1.msra.mxu0 0.0
    %104 = vmatprep.subr.mxu0 0.0
    %105 = vmatpush1.msra.mxu0 0.0
    %106 = vmatprep.subr.mxu0 0.0
    %107 = vmatpush1.msra.mxu0 0.0
    %108 = vmatprep.subr.mxu0 0.0
    %109 = vmatpush1.msra.mxu0 0.0
    %110 = vmatprep.subr.mxu0 0.0
    %111 = vmatpush1.msra.mxu0 0.0
    %112 = vmatprep.subr.mxu0 0.0
    %113 = vmatpush1.msra.mxu0 0.0
    %114 = vmatprep.subr.mxu0 0.0
    %115 = vmatpush1.msra.mxu0 0.0
    %116 = vmatprep.subr.mxu0 0.0
    %117 = vmatpush1.msra.mxu0 0.0
    %118 = vmatprep.subr.mxu0 0.0
    %119 = vmatpush1.msra.mxu0 0.0
    %120 = vmatprep.subr.mxu0 0.0
    %121 = vmatpush1.msra.mxu0 0.0
    %122 = vmatprep.subr.mxu0 0.0
    %123 = vmatpush1.msra.mxu0 0.0
    %124 = vmatprep.subr.mxu0 0.0
    %125 = vmatpush1.msra.mxu0 0.0
    %126 = vmatprep.subr.mxu0 0.0
    %127 = vmatpush1.msra.mxu0 0.0
    %128 = vmatprep.subr.mxu0 0.0
    %129 = vmatpush1.msra.mxu0 0.0
    %130 = vmatprep.subr.mxu0 0.0
    %131 = vmatpush1.msra.mxu0 0.0
    %132 = vmatprep.subr.mxu0 0.0
    %133 = vmatpush1.msra.mxu0 0.0
    %134 = vmatprep.subr.mxu0 0.0
    %135 = vmatpush1.msra.mxu0 0.0
    %136 = vmatprep.subr.mxu0 0.0
    %137 = vmatpush1.msra.mxu0 0.0
    %138 = vmatprep.subr.mxu0 0.0
    %139 = vmatpush1.msra.mxu0 0.0
    %140 = vmatprep.subr.mxu0 0.0
    %141 = vmatpush1.msra.mxu0 0.0
    %142 = vmatprep.subr.mxu0 0.0
    %143 = vmatpush1.msra.mxu0 0.0
    %144 = vmatprep.subr.mxu0 0.0
    %145 = vmatpush1.msra.mxu0 0.0
    %146 = vmatprep.subr.mxu0 0.0
    %147 = vmatpush1.msra.mxu0 0.0
    %148 = vmatprep.subr.mxu0 0.0
    %149 = vmatpush1.msra.mxu0 0.0
    %150 = vmatprep.subr.mxu0 0.0
    %151 = vmatpush1.msra.mxu0 0.0
    %152 = vmatprep.subr.mxu0 0.0
    %153 = vmatpush1.msra.mxu0 0.0
    %154 = vmatprep.mubr.f32.mxu0 0.0
    %155 = vmatmul.mubr.f32.gmra.mrb[0].mxu0 %v75
    %v156 = vpop.f32.mrb[0].mxu0
    %v157 = vadd.f32 0.0, %v156
    %v158 = vpop.f32.mrb[0].mxu0
    %v159 = vadd.f32 0.0, %v158
    %160 = vmatprep.mubr.f32.mxu0 0.0
    %161 = vmatmul.mubr.f32.gmra.mrb[0].mxu0 %v78
    %v162 = vpop.f32.mrb[0].mxu0
    %v163 = vadd.f32 0.0, %v162
    %v164 = vpop.f32.mrb[0].mxu0
    %v165 = vadd.f32 0.0, %v164
    %166 = vmatprep.mubr.f32.mxu0 0.0
    %167 = vmatmul.mubr.f32.gmra.mrb[0].mxu0 %v81
    %v168 = vpop.f32.mrb[0].mxu0
    %v169 = vadd.f32 0.0, %v168
    %v170 = vpop.f32.mrb[0].mxu0
    %v171 = vadd.f32 0.0, %v170
    %172 = vdwg.mxu0
    %v174 = vsel %vm73, %v50, 0
    %v177 = vsel %vm73, %v51, 0
    %v180 = vsel %vm73, %v52, 0
    %v183 = vsel %vm83, %v59, 0
    %v186 = vsel %vm83, %v60, 0
    %188 = vmatprep.subr.mxu0 %v54
    %189 = vmatpush1.msra.mxu0 %v53
    %190 = vmatprep.subr.mxu0 %v56
    %191 = vmatpush1.msra.mxu0 %v55
    %192 = vmatprep.subr.mxu0 %v58
    %193 = vmatpush1.msra.mxu0 %v57
    %194 = vmatprep.subr.mxu0 %v186
    %195 = vmatpush1.msra.mxu0 %v183
    %196 = vmatprep.subr.mxu0 0.0
    %197 = vmatpush1.msra.mxu0 0.0
    %198 = vmatprep.subr.mxu0 0.0
    %199 = vmatpush1.msra.mxu0 0.0
    %200 = vmatprep.subr.mxu0 0.0
    %201 = vmatpush1.msra.mxu0 0.0
    %202 = vmatprep.subr.mxu0 0.0
    %203 = vmatpush1.msra.mxu0 0.0
    %204 = vmatprep.subr.mxu0 0.0
    %205 = vmatpush1.msra.mxu0 0.0
    %206 = vmatprep.subr.mxu0 0.0
    %207 = vmatpush1.msra.mxu0 0.0
    %208 = vmatprep.subr.mxu0 0.0
    %209 = vmatpush1.msra.mxu0 0.0
    %210 = vmatprep.subr.mxu0 0.0
    %211 = vmatpush1.msra.mxu0 0.0
    %212 = vmatprep.subr.mxu0 0.0
    %213 = vmatpush1.msra.mxu0 0.0
    %214 = vmatprep.subr.mxu0 0.0
    %215 = vmatpush1.msra.mxu0 0.0
    %216 = vmatprep.subr.mxu0 0.0
    %217 = vmatpush1.msra.mxu0 0.0
    %218 = vmatprep.subr.mxu0 0.0
    %219 = vmatpush1.msra.mxu0 0.0
    %220 = vmatprep.subr.mxu0 0.0
    %221 = vmatpush1.msra.mxu0 0.0
    %222 = vmatprep.subr.mxu0 0.0
    %223 = vmatpush1.msra.mxu0 0.0
    %224 = vmatprep.subr.mxu0 0.0
    %225 = vmatpush1.msra.mxu0 0.0
    %226 = vmatprep.subr.mxu0 0.0
    %227 = vmatpush1.msra.mxu0 0.0
    %228 = vmatprep.subr.mxu0 0.0
    %229 = vmatpush1.msra.mxu0 0.0
    %230 = vmatprep.subr.mxu0 0.0
    %231 = vmatpush1.msra.mxu0 0.0
    %232 = vmatprep.subr.mxu0 0.0
    %233 = vmatpush1.msra.mxu0 0.0
    %234 = vmatprep.subr.mxu0 0.0
    %235 = vmatpush1.msra.mxu0 0.0
    %236 = vmatprep.subr.mxu0 0.0
    %237 = vmatpush1.msra.mxu0 0.0
    %238 = vmatprep.subr.mxu0 0.0
    %239 = vmatpush1.msra.mxu0 0.0
    %240 = vmatprep.subr.mxu0 0.0
    %241 = vmatpush1.msra.mxu0 0.0
    %242 = vmatprep.subr.mxu0 0.0
    %243 = vmatpush1.msra.mxu0 0.0
    %244 = vmatprep.subr.mxu0 0.0
    %245 = vmatpush1.msra.mxu0 0.0
    %246 = vmatprep.subr.mxu0 0.0
    %247 = vmatpush1.msra.mxu0 0.0
    %248 = vmatprep.subr.mxu0 0.0
    %249 = vmatpush1.msra.mxu0 0.0
    %250 = vmatprep.subr.mxu0 0.0
    %251 = vmatpush1.msra.mxu0 0.0
    %252 = vmatprep.mubr.f32.mxu0 0.0
    %253 = vmatmul.mubr.f32.gmra.mrb[0].mxu0 %v174
    %v254 = vpop.f32.mrb[0].mxu0
    %v255 = vadd.f32 %v157, %v254
    %v256 = vpop.f32.mrb[0].mxu0
    %v257 = vadd.f32 %v159, %v256
    %258 = vmatprep.mubr.f32.mxu0 0.0
    %259 = vmatmul.mubr.f32.gmra.mrb[0].mxu0 %v177
    %v260 = vpop.f32.mrb[0].mxu0
    %v261 = vadd.f32 %v163, %v260
    %v262 = vpop.f32.mrb[0].mxu0
    %v263 = vadd.f32 %v165, %v262
    %264 = vmatprep.mubr.f32.mxu0 0.0
    %265 = vmatmul.mubr.f32.gmra.mrb[0].mxu0 %v180
    %v266 = vpop.f32.mrb[0].mxu0
    %v267 = vadd.f32 %v169, %v266
    %v268 = vpop.f32.mrb[0].mxu0
    %v269 = vadd.f32 %v171, %v268
    %270 = vdwg.mxu0
    %v271 = vld [vmem:[%s0 + $0x2] sm:$0xff]
    %v272 = vld [vmem:[%s0 + $0xa] sm:$0xff]
    %v273 = vld [vmem:[%s0 + $0x12] sm:$0xff]
    %s274 = scalar_lea.vmem %s1, 128
    %v275 = vld [vmem:[%s274] sm:$0xff]
    %v276 = vld [vmem:[%s274 + $0x8] sm:$0xff]
    %v277 = vld [vmem:[%s274 + $0x10] sm:$0xff]
    %v278 = vld [vmem:[%s274 + $0x18] sm:$0xff]
    %v279 = vld [vmem:[%s274 + $0x20] sm:$0xff]
    %v280 = vld [vmem:[%s274 + $0x28] sm:$0xff]
    %v281 = vld [vmem:[%s274 + $0x30] sm:$0xf]
    %v282 = vld [vmem:[%s274 + $0x38] sm:$0xf]
    %v284 = vsel %vm73, %v271, 0
    %v287 = vsel %vm73, %v272, 0
    %v290 = vsel %vm73, %v273, 0
    %v293 = vsel %vm83, %v281, 0
    %v296 = vsel %vm83, %v282, 0
    %298 = vmatprep.subr.mxu0 %v276
    %299 = vmatpush1.msra.mxu0 %v275
    %300 = vmatprep.subr.mxu0 %v278
    %301 = vmatpush1.msra.mxu0 %v277
    %302 = vmatprep.subr.mxu0 %v280
    %303 = vmatpush1.msra.mxu0 %v279
    %304 = vmatprep.subr.mxu0 %v296
    %305 = vmatpush1.msra.mxu0 %v293
    %306 = vmatprep.subr.mxu0 0.0
    %307 = vmatpush1.msra.mxu0 0.0
    %308 = vmatprep.subr.mxu0 0.0
    %309 = vmatpush1.msra.mxu0 0.0
    %310 = vmatprep.subr.mxu0 0.0
    %311 = vmatpush1.msra.mxu0 0.0
    %312 = vmatprep.subr.mxu0 0.0
    %313 = vmatpush1.msra.mxu0 0.0
    %314 = vmatprep.subr.mxu0 0.0
    %315 = vmatpush1.msra.mxu0 0.0
    %316 = vmatprep.subr.mxu0 0.0
    %317 = vmatpush1.msra.mxu0 0.0
    %318 = vmatprep.subr.mxu0 0.0
    %319 = vmatpush1.msra.mxu0 0.0
    %320 = vmatprep.subr.mxu0 0.0
    %321 = vmatpush1.msra.mxu0 0.0
    %322 = vmatprep.subr.mxu0 0.0
    %323 = vmatpush1.msra.mxu0 0.0
    %324 = vmatprep.subr.mxu0 0.0
    %325 = vmatpush1.msra.mxu0 0.0
    %326 = vmatprep.subr.mxu0 0.0
    %327 = vmatpush1.msra.mxu0 0.0
    %328 = vmatprep.subr.mxu0 0.0
    %329 = vmatpush1.msra.mxu0 0.0
    %330 = vmatprep.subr.mxu0 0.0
    %331 = vmatpush1.msra.mxu0 0.0
    %332 = vmatprep.subr.mxu0 0.0
    %333 = vmatpush1.msra.mxu0 0.0
    %334 = vmatprep.subr.mxu0 0.0
    %335 = vmatpush1.msra.mxu0 0.0
    %336 = vmatprep.subr.mxu0 0.0
    %337 = vmatpush1.msra.mxu0 0.0
    %338 = vmatprep.subr.mxu0 0.0
    %339 = vmatpush1.msra.mxu0 0.0
    %340 = vmatprep.subr.mxu0 0.0
    %341 = vmatpush1.msra.mxu0 0.0
    %342 = vmatprep.subr.mxu0 0.0
    %343 = vmatpush1.msra.mxu0 0.0
    %344 = vmatprep.subr.mxu0 0.0
    %345 = vmatpush1.msra.mxu0 0.0
    %346 = vmatprep.subr.mxu0 0.0
    %347 = vmatpush1.msra.mxu0 0.0
    %348 = vmatprep.subr.mxu0 0.0
    %349 = vmatpush1.msra.mxu0 0.0
    %350 = vmatprep.subr.mxu0 0.0
    %351 = vmatpush1.msra.mxu0 0.0
    %352 = vmatprep.subr.mxu0 0.0
    %353 = vmatpush1.msra.mxu0 0.0
    %354 = vmatprep.subr.mxu0 0.0
    %355 = vmatpush1.msra.mxu0 0.0
    %356 = vmatprep.subr.mxu0 0.0
    %357 = vmatpush1.msra.mxu0 0.0
    %358 = vmatprep.subr.mxu0 0.0
    %359 = vmatpush1.msra.mxu0 0.0
    %360 = vmatprep.subr.mxu0 0.0
    %361 = vmatpush1.msra.mxu0 0.0
    %362 = vmatprep.mubr.f32.mxu0 0.0
    %363 = vmatmul.mubr.f32.gmra.mrb[0].mxu0 %v284
    %v364 = vpop.f32.mrb[0].mxu0
    %v365 = vadd.f32 0.0, %v364
    %v366 = vpop.f32.mrb[0].mxu0
    %v367 = vadd.f32 0.0, %v366
    %368 = vmatprep.mubr.f32.mxu0 0.0
    %369 = vmatmul.mubr.f32.gmra.mrb[0].mxu0 %v287
    %v370 = vpop.f32.mrb[0].mxu0
    %v371 = vadd.f32 0.0, %v370
    %v372 = vpop.f32.mrb[0].mxu0
    %v373 = vadd.f32 0.0, %v372
    %374 = vmatprep.mubr.f32.mxu0 0.0
    %375 = vmatmul.mubr.f32.gmra.mrb[0].mxu0 %v290
    %v376 = vpop.f32.mrb[0].mxu0
    %v377 = vadd.f32 0.0, %v376
    %v378 = vpop.f32.mrb[0].mxu0
    %v379 = vadd.f32 0.0, %v378
    %380 = vdwg.mxu0
    %v381 = vadd.f32 %v255, %v365
    %v382 = vadd.f32 %v257, %v367
    %v383 = vadd.f32 %v261, %v371
    %v384 = vadd.f32 %v263, %v373
    %v385 = vadd.f32 %v267, %v377
    %v386 = vadd.f32 %v269, %v379
    %v387 = vld [vmem:[%s0 + $0x3] sm:$0xff]
    %v388 = vld [vmem:[%s0 + $0xb] sm:$0xff]
    %v389 = vld [vmem:[%s0 + $0x13] sm:$0xff]
    %s390 = scalar_lea.vmem %s1, 192
    %v391 = vld [vmem:[%s390] sm:$0xff]
    %v392 = vld [vmem:[%s390 + $0x8] sm:$0xff]
    %v393 = vld [vmem:[%s390 + $0x10] sm:$0xff]
    %v394 = vld [vmem:[%s390 + $0x18] sm:$0xff]
    %v395 = vld [vmem:[%s390 + $0x20] sm:$0xff]
    %v396 = vld [vmem:[%s390 + $0x28] sm:$0xff]
    %v397 = vld [vmem:[%s390 + $0x30] sm:$0xf]
    %v398 = vld [vmem:[%s390 + $0x38] sm:$0xf]
    %v400 = vsel %vm73, %v387, 0
    %v403 = vsel %vm73, %v388, 0
    %v406 = vsel %vm73, %v389, 0
    %v409 = vsel %vm83, %v397, 0
    %v412 = vsel %vm83, %v398, 0
    %414 = vmatprep.subr.mxu0 %v392
    %415 = vmatpush1.msra.mxu0 %v391
    %416 = vmatprep.subr.mxu0 %v394
    %417 = vmatpush1.msra.mxu0 %v393
    %418 = vmatprep.subr.mxu0 %v396
    %419 = vmatpush1.msra.mxu0 %v395
    %420 = vmatprep.subr.mxu0 %v412
    %421 = vmatpush1.msra.mxu0 %v409
    %422 = vmatprep.subr.mxu0 0.0
    %423 = vmatpush1.msra.mxu0 0.0
    %424 = vmatprep.subr.mxu0 0.0
    %425 = vmatpush1.msra.mxu0 0.0
    %426 = vmatprep.subr.mxu0 0.0
    %427 = vmatpush1.msra.mxu0 0.0
    %428 = vmatprep.subr.mxu0 0.0
    %429 = vmatpush1.msra.mxu0 0.0
    %430 = vmatprep.subr.mxu0 0.0
    %431 = vmatpush1.msra.mxu0 0.0
    %432 = vmatprep.subr.mxu0 0.0
    %433 = vmatpush1.msra.mxu0 0.0
    %434 = vmatprep.subr.mxu0 0.0
    %435 = vmatpush1.msra.mxu0 0.0
    %436 = vmatprep.subr.mxu0 0.0
    %437 = vmatpush1.msra.mxu0 0.0
    %438 = vmatprep.subr.mxu0 0.0
    %439 = vmatpush1.msra.mxu0 0.0
    %440 = vmatprep.subr.mxu0 0.0
    %441 = vmatpush1.msra.mxu0 0.0
    %442 = vmatprep.subr.mxu0 0.0
    %443 = vmatpush1.msra.mxu0 0.0
    %444 = vmatprep.subr.mxu0 0.0
    %445 = vmatpush1.msra.mxu0 0.0
    %446 = vmatprep.subr.mxu0 0.0
    %447 = vmatpush1.msra.mxu0 0.0
    %448 = vmatprep.subr.mxu0 0.0
    %449 = vmatpush1.msra.mxu0 0.0
    %450 = vmatprep.subr.mxu0 0.0
    %451 = vmatpush1.msra.mxu0 0.0
    %452 = vmatprep.subr.mxu0 0.0
    %453 = vmatpush1.msra.mxu0 0.0
    %454 = vmatprep.subr.mxu0 0.0
    %455 = vmatpush1.msra.mxu0 0.0
    %456 = vmatprep.subr.mxu0 0.0
    %457 = vmatpush1.msra.mxu0 0.0
    %458 = vmatprep.subr.mxu0 0.0
    %459 = vmatpush1.msra.mxu0 0.0
    %460 = vmatprep.subr.mxu0 0.0
    %461 = vmatpush1.msra.mxu0 0.0
    %462 = vmatprep.subr.mxu0 0.0
    %463 = vmatpush1.msra.mxu0 0.0
    %464 = vmatprep.subr.mxu0 0.0
    %465 = vmatpush1.msra.mxu0 0.0
    %466 = vmatprep.subr.mxu0 0.0
    %467 = vmatpush1.msra.mxu0 0.0
    %468 = vmatprep.subr.mxu0 0.0
    %469 = vmatpush1.msra.mxu0 0.0
    %470 = vmatprep.subr.mxu0 0.0
    %471 = vmatpush1.msra.mxu0 0.0
    %472 = vmatprep.subr.mxu0 0.0
    %473 = vmatpush1.msra.mxu0 0.0
    %474 = vmatprep.subr.mxu0 0.0
    %475 = vmatpush1.msra.mxu0 0.0
    %476 = vmatprep.subr.mxu0 0.0
    %477 = vmatpush1.msra.mxu0 0.0
    %478 = vmatprep.mubr.f32.mxu0 0.0
    %479 = vmatmul.mubr.f32.gmra.mrb[0].mxu0 %v400
    %v480 = vpop.f32.mrb[0].mxu0
    %v481 = vadd.f32 0.0, %v480
    %v482 = vpop.f32.mrb[0].mxu0
    %v483 = vadd.f32 0.0, %v482
    %484 = vmatprep.mubr.f32.mxu0 0.0
    %485 = vmatmul.mubr.f32.gmra.mrb[0].mxu0 %v403
    %v486 = vpop.f32.mrb[0].mxu0
    %v487 = vadd.f32 0.0, %v486
    %v488 = vpop.f32.mrb[0].mxu0
    %v489 = vadd.f32 0.0, %v488
    %490 = vmatprep.mubr.f32.mxu0 0.0
    %491 = vmatmul.mubr.f32.gmra.mrb[0].mxu0 %v406
    %v492 = vpop.f32.mrb[0].mxu0
    %v493 = vadd.f32 0.0, %v492
    %v494 = vpop.f32.mrb[0].mxu0
    %v495 = vadd.f32 0.0, %v494
    %496 = vdwg.mxu0
    %v497 = vadd.f32 %v381, %v481
    %v498 = vadd.f32 %v382, %v483
    %v499 = vadd.f32 %v383, %v487
    %v500 = vadd.f32 %v384, %v489
    %v501 = vadd.f32 %v385, %v493
    %v502 = vadd.f32 %v386, %v495
    %v503 = vld [vmem:[%s0 + $0x4] sm:$0xff]
    %v504 = vld [vmem:[%s0 + $0xc] sm:$0xff]
    %v505 = vld [vmem:[%s0 + $0x14] sm:$0xff]
    %s506 = scalar_lea.vmem %s1, 256
    %v507 = vld [vmem:[%s506] sm:$0xff]
    %v508 = vld [vmem:[%s506 + $0x8] sm:$0xff]
    %v509 = vld [vmem:[%s506 + $0x10] sm:$0xff]
    %v510 = vld [vmem:[%s506 + $0x18] sm:$0xff]
    %v511 = vld [vmem:[%s506 + $0x20] sm:$0xff]
    %v512 = vld [vmem:[%s506 + $0x28] sm:$0xff]
    %v513 = vld [vmem:[%s506 + $0x30] sm:$0xf]
    %v514 = vld [vmem:[%s506 + $0x38] sm:$0xf]
    %v516 = vsel %vm73, %v503, 0
    %v519 = vsel %vm73, %v504, 0
    %v522 = vsel %vm73, %v505, 0
    %v525 = vsel %vm83, %v513, 0
    %v528 = vsel %vm83, %v514, 0
    %530 = vmatprep.subr.mxu0 %v508
    %531 = vmatpush1.msra.mxu0 %v507
    %532 = vmatprep.subr.mxu0 %v510
    %533 = vmatpush1.msra.mxu0 %v509
    %534 = vmatprep.subr.mxu0 %v512
    %535 = vmatpush1.msra.mxu0 %v511
    %536 = vmatprep.subr.mxu0 %v528
    %537 = vmatpush1.msra.mxu0 %v525
    %538 = vmatprep.subr.mxu0 0.0
    %539 = vmatpush1.msra.mxu0 0.0
    %540 = vmatprep.subr.mxu0 0.0
    %541 = vmatpush1.msra.mxu0 0.0
    %542 = vmatprep.subr.mxu0 0.0
    %543 = vmatpush1.msra.mxu0 0.0
    %544 = vmatprep.subr.mxu0 0.0
    %545 = vmatpush1.msra.mxu0 0.0
    %546 = vmatprep.subr.mxu0 0.0
    %547 = vmatpush1.msra.mxu0 0.0
    %548 = vmatprep.subr.mxu0 0.0
    %549 = vmatpush1.msra.mxu0 0.0
    %550 = vmatprep.subr.mxu0 0.0
    %551 = vmatpush1.msra.mxu0 0.0
    %552 = vmatprep.subr.mxu0 0.0
    %553 = vmatpush1.msra.mxu0 0.0
    %554 = vmatprep.subr.mxu0 0.0
    %555 = vmatpush1.msra.mxu0 0.0
    %556 = vmatprep.subr.mxu0 0.0
    %557 = vmatpush1.msra.mxu0 0.0
    %558 = vmatprep.subr.mxu0 0.0
    %559 = vmatpush1.msra.mxu0 0.0
    %560 = vmatprep.subr.mxu0 0.0
    %561 = vmatpush1.msra.mxu0 0.0
    %562 = vmatprep.subr.mxu0 0.0
    %563 = vmatpush1.msra.mxu0 0.0
    %564 = vmatprep.subr.mxu0 0.0
    %565 = vmatpush1.msra.mxu0 0.0
    %566 = vmatprep.subr.mxu0 0.0
    %567 = vmatpush1.msra.mxu0 0.0
    %568 = vmatprep.subr.mxu0 0.0
    %569 = vmatpush1.msra.mxu0 0.0
    %570 = vmatprep.subr.mxu0 0.0
    %571 = vmatpush1.msra.mxu0 0.0
    %572 = vmatprep.subr.mxu0 0.0
    %573 = vmatpush1.msra.mxu0 0.0
    %574 = vmatprep.subr.mxu0 0.0
    %575 = vmatpush1.msra.mxu0 0.0
    %576 = vmatprep.subr.mxu0 0.0
    %577 = vmatpush1.msra.mxu0 0.0
    %578 = vmatprep.subr.mxu0 0.0
    %579 = vmatpush1.msra.mxu0 0.0
    %580 = vmatprep.subr.mxu0 0.0
    %581 = vmatpush1.msra.mxu0 0.0
    %582 = vmatprep.subr.mxu0 0.0
    %583 = vmatpush1.msra.mxu0 0.0
    %584 = vmatprep.subr.mxu0 0.0
    %585 = vmatpush1.msra.mxu0 0.0
    %586 = vmatprep.subr.mxu0 0.0
    %587 = vmatpush1.msra.mxu0 0.0
    %588 = vmatprep.subr.mxu0 0.0
    %589 = vmatpush1.msra.mxu0 0.0
    %590 = vmatprep.subr.mxu0 0.0
    %591 = vmatpush1.msra.mxu0 0.0
    %592 = vmatprep.subr.mxu0 0.0
    %593 = vmatpush1.msra.mxu0 0.0
    %594 = vmatprep.mubr.f32.mxu0 0.0
    %595 = vmatmul.mubr.f32.gmra.mrb[0].mxu0 %v516
    %v596 = vpop.f32.mrb[0].mxu0
    %v597 = vadd.f32 0.0, %v596
    %v598 = vpop.f32.mrb[0].mxu0
    %v599 = vadd.f32 0.0, %v598
    %600 = vmatprep.mubr.f32.mxu0 0.0
    %601 = vmatmul.mubr.f32.gmra.mrb[0].mxu0 %v519
    %v602 = vpop.f32.mrb[0].mxu0
    %v603 = vadd.f32 0.0, %v602
    %v604 = vpop.f32.mrb[0].mxu0
    %v605 = vadd.f32 0.0, %v604
    %606 = vmatprep.mubr.f32.mxu0 0.0
    %607 = vmatmul.mubr.f32.gmra.mrb[0].mxu0 %v522
    %v608 = vpop.f32.mrb[0].mxu0
    %v609 = vadd.f32 0.0, %v608
    %v610 = vpop.f32.mrb[0].mxu0
    %v611 = vadd.f32 0.0, %v610
    %612 = vdwg.mxu0
    %v613 = vadd.f32 %v497, %v597
    %v614 = vadd.f32 %v498, %v599
    %v615 = vadd.f32 %v499, %v603
    %v616 = vadd.f32 %v500, %v605
    %v617 = vadd.f32 %v501, %v609
    %v618 = vadd.f32 %v502, %v611
    %v619 = vld [vmem:[%s2] sm:$0x3]
    %v621 = vlaneseq
    %v622 = vshrl.u32 %v621, 7
    %v623 = vsub.s32 0, %v622
    %v624 = vrot.slane %v619, %v623
    %v625 = vlaneseq
    %v626 = vshrl.u32 %v625, 7
    %v627 = vsub.s32 1, %v626
    %v628 = vrot.slane %v619, %v627
    %v631 = vadd.f32 %v613, %v624
    %v632 = vadd.f32 %v614, %v628
    %v633 = vadd.f32 %v615, %v624
    %v634 = vadd.f32 %v616, %v628
    %v635 = vadd.f32 %v617, %v624
    %v636 = vadd.f32 %v618, %v628
    %v637 = vmax.f32 %v631, 0.0
    %v638 = vmax.f32 %v632, 0.0
    %v639 = vmax.f32 %v633, 0.0
    %v640 = vmax.f32 %v634, 0.0
    %v641 = vmax.f32 %v635, 0.0
    %v642 = vmax.f32 %v636, 0.0
    %v645 = vrot.slane %v637, 1
    %v646 = vrot.slane %v638, 1
    %v649 = vmax.f32 %v637, %v645
    %v650 = vmax.f32 %v638, %v646
    %v653 = vcombine.low %v649, %v650
    %v655 = vunpack.c.l.s4 1966171168
    %v656 = vunpack.c.0.s8 %v655
    %v657 = vlaneseq
    %v658 = vshrl.u32 %v657, 7
    %v659 = vsub.s32 %v656, %v658
    %v660 = vrot.slane %v653, %v659
    %v662 = vunpack.c.l.s4 1966171168
    %v663 = vunpack.c.0.s8 %v662
    %v664 = vlaneseq
    %v665 = vshrl.u32 %v664, 7
    %v666 = vsub.s32 %v663, %v665
    %v667 = vrot.slane %v660, %v666
    %v669 = vlaneseq
    %vm670 = vcmp.ge.s32.totalorder %v669, 0
    %vm671 = vcmp.lt.s32.totalorder %v669, 192
    %vm672 = vmand %vm670, %vm671
    %673 = vst.msk [vmem:[#allocation4] ss:$8 sm:$0x3] %vm672, %v667
    %674 = vst.msk [vmem:[#allocation4] ss:$8 sm:$0x0] %vm672, %v667
    %v675 = vcombine.high %v667, %v667
    %s677 = scalar_lea.vmem [#allocation4], 1
    %678 = vst.msk [vmem:[%s677] ss:$8 sm:$0x3] %vm672, %v675
    %679 = vst.msk [vmem:[%s677] ss:$8 sm:$0x0] %vm672, %v675
    %v680 = vcombine.high %v649, %v650
    %v682 = vunpack.c.l.s4 1966171168
    %v683 = vunpack.c.0.s8 %v682
    %v684 = vlaneseq
    %v685 = vshrl.u32 %v684, 7
    %v686 = vsub.s32 %v683, %v685
    %v687 = vrot.slane %v680, %v686
    %v689 = vunpack.c.l.s4 1966171168
    %v690 = vunpack.c.0.s8 %v689
    %v691 = vlaneseq
    %v692 = vshrl.u32 %v691, 7
    %v693 = vsub.s32 %v690, %v692
    %v694 = vrot.slane %v687, %v693
    %s696 = scalar_lea.vmem [#allocation4], 2
    %697 = vst.msk [vmem:[%s696] ss:$8 sm:$0x3] %vm672, %v694
    %698 = vst.msk [vmem:[%s696] ss:$8 sm:$0x0] %vm672, %v694
    %v699 = vcombine.high %v694, %v694
    %s701 = scalar_lea.vmem [#allocation4], 3
    %702 = vst.msk [vmem:[%s701] ss:$8 sm:$0x3] %vm672, %v699
    %703 = vst.msk [vmem:[%s701] ss:$8 sm:$0x0] %vm672, %v699
    %v706 = vrot.slane %v639, 1
    %v707 = vrot.slane %v640, 1
    %v710 = vmax.f32 %v639, %v706
    %v711 = vmax.f32 %v640, %v707
    %v714 = vcombine.low %v710, %v711
    %v716 = vunpack.c.l.s4 1966171168
    %v717 = vunpack.c.0.s8 %v716
    %v718 = vlaneseq
    %v719 = vshrl.u32 %v718, 7
    %v720 = vsub.s32 %v717, %v719
    %v721 = vrot.slane %v714, %v720
    %v723 = vunpack.c.l.s4 1966171168
    %v724 = vunpack.c.0.s8 %v723
    %v725 = vlaneseq
    %v726 = vshrl.u32 %v725, 7
    %v727 = vsub.s32 %v724, %v726
    %v728 = vrot.slane %v721, %v727
    %s730 = scalar_lea.vmem [#allocation4], 4
    %731 = vst.msk [vmem:[%s730] ss:$8 sm:$0x3] %vm672, %v728
    %732 = vst.msk [vmem:[%s730] ss:$8 sm:$0x0] %vm672, %v728
    %v733 = vcombine.high %v728, %v728
    %s735 = scalar_lea.vmem [#allocation4], 5
    %736 = vst.msk [vmem:[%s735] ss:$8 sm:$0x3] %vm672, %v733
    %737 = vst.msk [vmem:[%s735] ss:$8 sm:$0x0] %vm672, %v733
    %v738 = vcombine.high %v710, %v711
    %v740 = vunpack.c.l.s4 1966171168
    %v741 = vunpack.c.0.s8 %v740
    %v742 = vlaneseq
    %v743 = vshrl.u32 %v742, 7
    %v744 = vsub.s32 %v741, %v743
    %v745 = vrot.slane %v738, %v744
    %v747 = vunpack.c.l.s4 1966171168
    %v748 = vunpack.c.0.s8 %v747
    %v749 = vlaneseq
    %v750 = vshrl.u32 %v749, 7
    %v751 = vsub.s32 %v748, %v750
    %v752 = vrot.slane %v745, %v751
    %s754 = scalar_lea.vmem [#allocation4], 6
    %755 = vst.msk [vmem:[%s754] ss:$8 sm:$0x3] %vm672, %v752
    %756 = vst.msk [vmem:[%s754] ss:$8 sm:$0x0] %vm672, %v752
    %v757 = vcombine.high %v752, %v752
    %s759 = scalar_lea.vmem [#allocation4], 7
    %760 = vst.msk [vmem:[%s759] ss:$8 sm:$0x3] %vm672, %v757
    %761 = vst.msk [vmem:[%s759] ss:$8 sm:$0x0] %vm672, %v757
    %v764 = vrot.slane %v641, 1
    %v765 = vrot.slane %v642, 1
    %v768 = vmax.f32 %v641, %v764
    %v769 = vmax.f32 %v642, %v765
    %v772 = vcombine.low %v768, %v769
    %v774 = vunpack.c.l.s4 1966171168
    %v775 = vunpack.c.0.s8 %v774
    %v776 = vlaneseq
    %v777 = vshrl.u32 %v776, 7
    %v778 = vsub.s32 %v775, %v777
    %v779 = vrot.slane %v772, %v778
    %v781 = vunpack.c.l.s4 1966171168
    %v782 = vunpack.c.0.s8 %v781
    %v783 = vlaneseq
    %v784 = vshrl.u32 %v783, 7
    %v785 = vsub.s32 %v782, %v784
    %v786 = vrot.slane %v779, %v785
    %s788 = scalar_lea.vmem [#allocation4], 16
    %789 = vst.msk [vmem:[%s788] ss:$8 sm:$0x3] %vm672, %v786
    %790 = vst.msk [vmem:[%s788] ss:$8 sm:$0x0] %vm672, %v786
    %v791 = vcombine.high %v786, %v786
    %s793 = scalar_lea.vmem [#allocation4], 17
    %794 = vst.msk [vmem:[%s793] ss:$8 sm:$0x3] %vm672, %v791
    %795 = vst.msk [vmem:[%s793] ss:$8 sm:$0x0] %vm672, %v791
    %v796 = vcombine.high %v768, %v769
    %v798 = vunpack.c.l.s4 1966171168
    %v799 = vunpack.c.0.s8 %v798
    %v800 = vlaneseq
    %v801 = vshrl.u32 %v800, 7
    %v802 = vsub.s32 %v799, %v801
    %v803 = vrot.slane %v796, %v802
    %v805 = vunpack.c.l.s4 1966171168
    %v806 = vunpack.c.0.s8 %v805
    %v807 = vlaneseq
    %v808 = vshrl.u32 %v807, 7
    %v809 = vsub.s32 %v806, %v808
    %v810 = vrot.slane %v803, %v809
    %s812 = scalar_lea.vmem [#allocation4], 18
    %813 = vst.msk [vmem:[%s812] ss:$8 sm:$0x3] %vm672, %v810
    %814 = vst.msk [vmem:[%s812] ss:$8 sm:$0x0] %vm672, %v810
    %v815 = vcombine.high %v810, %v810
    %s817 = scalar_lea.vmem [#allocation4], 19
    %818 = vst.msk [vmem:[%s817] ss:$8 sm:$0x3] %vm672, %v815
    %819 = vst.msk [vmem:[%s817] ss:$8 sm:$0x0] %vm672, %v815
    %v820 = vld [vmem:[#allocation4] sm:$0xff]
    %v821 = vld [vmem:[#allocation4 + $0x10] sm:$0xf]
    %824 = vrot.lane.b32.xlu0 %v820, 120
    %v825 = vpop.permute.xlu0 %824
    %826 = vrot.lane.b32.xlu0 %v821, 120
    %v827 = vpop.permute.xlu0 %826
    %v830 = vmax.f32 %v820, %v825
    %v831 = vmax.f32 %v821, %v827
    %834 = vrot.lane.b32.xlu0 %v830, 8
    %v835 = vpop.permute.xlu0 %834
    %836 = vrot.lane.b32.xlu0 %v831, 8
    %v837 = vpop.permute.xlu0 %836
    %vm840 = vcmask 130112
    %841 = vst.msk [vmem:[#allocation2 + $0x1] sm:$0xff] %vm840, %v835
    %vm842 = vcmask 126016
    %843 = vst.msk [vmem:[#allocation2 + $0x9] sm:$0xf] %vm842, %v837
    %v844 = vld [vmem:[#allocation4] sm:$0xff]
    %v845 = vld [vmem:[#allocation4 + $0x10] sm:$0xf]
    %848 = vrot.lane.b32.xlu0 %v844, 120
    %v849 = vpop.permute.xlu0 %848
    %850 = vrot.lane.b32.xlu0 %v845, 120
    %v851 = vpop.permute.xlu0 %850
    %v854 = vmax.f32 %v844, %v849
    %v855 = vmax.f32 %v845, %v851
    %vm856 = vcmask 195712
    %857 = vst.msk [vmem:[#allocation2 + $0x1] sm:$0xff] %vm856, %v854
    %vm858 = vcmask 191616
    %859 = vst.msk [vmem:[#allocation2 + $0x9] sm:$0xf] %vm858, %v855
    %v860 = vld [vmem:[#allocation4] sm:$0xff]
    %v861 = vld [vmem:[#allocation4 + $0x10] sm:$0xf]
    %864 = vrot.lane.b32.xlu0 %v860, 120
    %v865 = vpop.permute.xlu0 %864
    %866 = vrot.lane.b32.xlu0 %v861, 120
    %v867 = vpop.permute.xlu0 %866
    %v870 = vmax.f32 %v860, %v865
    %v871 = vmax.f32 %v861, %v867
    %874 = vrot.lane.b32.xlu0 %v870, 120
    %v875 = vpop.permute.xlu0 %874
    %876 = vrot.lane.b32.xlu0 %v871, 120
    %v877 = vpop.permute.xlu0 %876
    %vm880 = vcmask 261312
    %881 = vst.msk [vmem:[#allocation2 + $0x1] sm:$0xff] %vm880, %v875
    %vm882 = vcmask 257216
    %883 = vst.msk [vmem:[#allocation2 + $0x9] sm:$0xf] %vm882, %v877
    %v884 = vld [vmem:[#allocation4] sm:$0xff]
    %v885 = vld [vmem:[#allocation4 + $0x10] sm:$0xf]
    %888 = vrot.lane.b32.xlu0 %v884, 120
    %v889 = vpop.permute.xlu0 %888
    %890 = vrot.lane.b32.xlu0 %v885, 120
    %v891 = vpop.permute.xlu0 %890
    %v894 = vmax.f32 %v884, %v889
    %v895 = vmax.f32 %v885, %v891
    %898 = vrot.lane.b32.xlu0 %v894, 112
    %v899 = vpop.permute.xlu0 %898
    %900 = vrot.lane.b32.xlu0 %v895, 112
    %v901 = vpop.permute.xlu0 %900
    %vm904 = vcmask 326912
    %905 = vst.msk [vmem:[#allocation2 + $0x1] sm:$0xff] %vm904, %v899
    %vm906 = vcmask 322816
    %907 = vst.msk [vmem:[#allocation2 + $0x9] sm:$0xf] %vm906, %v901
    %v908 = vld [vmem:[#allocation4] sm:$0xff]
    %v909 = vld [vmem:[#allocation4 + $0x10] sm:$0xf]
    %912 = vrot.lane.b32.xlu0 %v908, 120
    %v913 = vpop.permute.xlu0 %912
    %914 = vrot.lane.b32.xlu0 %v909, 120
    %v915 = vpop.permute.xlu0 %914
    %v918 = vmax.f32 %v908, %v913
    %v919 = vmax.f32 %v909, %v915
    %922 = vrot.lane.b32.xlu0 %v918, 104
    %v923 = vpop.permute.xlu0 %922
    %924 = vrot.lane.b32.xlu0 %v919, 104
    %v925 = vpop.permute.xlu0 %924
    %vm928 = vcmask 392512
    %929 = vst.msk [vmem:[#allocation2 + $0x1] sm:$0xff] %vm928, %v923
    %vm930 = vcmask 388416
    %931 = vst.msk [vmem:[#allocation2 + $0x9] sm:$0xf] %vm930, %v925
    %v932 = vld [vmem:[#allocation4] sm:$0xff]
    %v933 = vld [vmem:[#allocation4 + $0x10] sm:$0xf]
    %936 = vrot.lane.b32.xlu0 %v932, 120
    %v937 = vpop.permute.xlu0 %936
    %938 = vrot.lane.b32.xlu0 %v933, 120
    %v939 = vpop.permute.xlu0 %938
    %v942 = vmax.f32 %v932, %v937
    %v943 = vmax.f32 %v933, %v939
    %946 = vrot.lane.b32.xlu0 %v942, 96
    %v947 = vpop.permute.xlu0 %946
    %948 = vrot.lane.b32.xlu0 %v943, 96
    %v949 = vpop.permute.xlu0 %948
    %vm952 = vcmask 458112
    %953 = vst.msk [vmem:[#allocation2 + $0x1] sm:$0xff] %vm952, %v947
    %vm954 = vcmask 454016
    %955 = vst.msk [vmem:[#allocation2 + $0x9] sm:$0xf] %vm954, %v949
    %v956 = vld [vmem:[#allocation4] sm:$0xff]
    %v957 = vld [vmem:[#allocation4 + $0x10] sm:$0xf]
    %960 = vrot.lane.b32.xlu0 %v956, 120
    %v961 = vpop.permute.xlu0 %960
    %962 = vrot.lane.b32.xlu0 %v957, 120
    %v963 = vpop.permute.xlu0 %962
    %v966 = vmax.f32 %v956, %v961
    %v967 = vmax.f32 %v957, %v963
    %970 = vrot.lane.b32.xlu0 %v966, 88
    %v971 = vpop.permute.xlu0 %970
    %972 = vrot.lane.b32.xlu0 %v967, 88
    %v973 = vpop.permute.xlu0 %972
    %vm976 = vcmask 523712
    %977 = vst.msk [vmem:[#allocation2 + $0x1] sm:$0xff] %vm976, %v971
    %vm978 = vcmask 519616
    %979 = vst.msk [vmem:[#allocation2 + $0x9] sm:$0xf] %vm978, %v973
    %v980 = vld [vmem:[#allocation4] sm:$0xff]
    %v981 = vld [vmem:[#allocation4 + $0x10] sm:$0xf]
    %984 = vrot.lane.b32.xlu0 %v980, 120
    %v985 = vpop.permute.xlu0 %984
    %986 = vrot.lane.b32.xlu0 %v981, 120
    %v987 = vpop.permute.xlu0 %986
    %v990 = vmax.f32 %v980, %v985
    %v991 = vmax.f32 %v981, %v987
    %994 = vrot.lane.b32.xlu0 %v990, 80
    %v995 = vpop.permute.xlu0 %994
    %996 = vrot.lane.b32.xlu0 %v991, 80
    %v997 = vpop.permute.xlu0 %996
    %vm1000 = vcmask 589312
    %1001 = vst.msk [vmem:[#allocation2 + $0x1] sm:$0xff] %vm1000, %v995
    %vm1002 = vcmask 585216
    %1003 = vst.msk [vmem:[#allocation2 + $0x9] sm:$0xf] %vm1002, %v997
    %v1004 = vld [vmem:[#allocation4 + $0x8] sm:$0xff]
    %v1005 = vld [vmem:[#allocation4 + $0x18] sm:$0xf]
    %1008 = vrot.lane.b32.xlu0 %v1004, 120
    %v1009 = vpop.permute.xlu0 %1008
    %1010 = vrot.lane.b32.xlu0 %v1005, 120
    %v1011 = vpop.permute.xlu0 %1010
    %v1014 = vmax.f32 %v1004, %v1009
    %v1015 = vmax.f32 %v1005, %v1011
    %1018 = vrot.lane.b32.xlu0 %v1014, 72
    %v1019 = vpop.permute.xlu0 %1018
    %1020 = vrot.lane.b32.xlu0 %v1015, 72
    %v1021 = vpop.permute.xlu0 %1020
    %vm1024 = vcmask 654912
    %1025 = vst.msk [vmem:[#allocation2 + $0x1] sm:$0xff] %vm1024, %v1019
    %vm1026 = vcmask 650816
    %1027 = vst.msk [vmem:[#allocation2 + $0x9] sm:$0xf] %vm1026, %v1021
    %v1028 = vld [vmem:[#allocation4 + $0x8] sm:$0xff]
    %v1029 = vld [vmem:[#allocation4 + $0x18] sm:$0xf]
    %1032 = vrot.lane.b32.xlu0 %v1028, 120
    %v1033 = vpop.permute.xlu0 %1032
    %1034 = vrot.lane.b32.xlu0 %v1029, 120
    %v1035 = vpop.permute.xlu0 %1034
    %v1038 = vmax.f32 %v1028, %v1033
    %v1039 = vmax.f32 %v1029, %v1035
    %1042 = vrot.lane.b32.xlu0 %v1038, 64
    %v1043 = vpop.permute.xlu0 %1042
    %1044 = vrot.lane.b32.xlu0 %v1039, 64
    %v1045 = vpop.permute.xlu0 %1044
    %vm1048 = vcmask 720512
    %1049 = vst.msk [vmem:[#allocation2 + $0x1] sm:$0xff] %vm1048, %v1043
    %vm1050 = vcmask 716416
    %1051 = vst.msk [vmem:[#allocation2 + $0x9] sm:$0xf] %vm1050, %v1045
    %v1052 = vld [vmem:[#allocation4 + $0x8] sm:$0xff]
    %v1053 = vld [vmem:[#allocation4 + $0x18] sm:$0xf]
    %1056 = vrot.lane.b32.xlu0 %v1052, 120
    %v1057 = vpop.permute.xlu0 %1056
    %1058 = vrot.lane.b32.xlu0 %v1053, 120
    %v1059 = vpop.permute.xlu0 %1058
    %v1062 = vmax.f32 %v1052, %v1057
    %v1063 = vmax.f32 %v1053, %v1059
    %1066 = vrot.lane.b32.xlu0 %v1062, 56
    %v1067 = vpop.permute.xlu0 %1066
    %1068 = vrot.lane.b32.xlu0 %v1063, 56
    %v1069 = vpop.permute.xlu0 %1068
    %vm1072 = vcmask 786112
    %1073 = vst.msk [vmem:[#allocation2 + $0x1] sm:$0xff] %vm1072, %v1067
    %vm1074 = vcmask 782016
    %1075 = vst.msk [vmem:[#allocation2 + $0x9] sm:$0xf] %vm1074, %v1069
    %v1076 = vld [vmem:[#allocation4 + $0x8] sm:$0xff]
    %v1077 = vld [vmem:[#allocation4 + $0x18] sm:$0xf]
    %1080 = vrot.lane.b32.xlu0 %v1076, 120
    %v1081 = vpop.permute.xlu0 %1080
    %1082 = vrot.lane.b32.xlu0 %v1077, 120
    %v1083 = vpop.permute.xlu0 %1082
    %v1086 = vmax.f32 %v1076, %v1081
    %v1087 = vmax.f32 %v1077, %v1083
    %1090 = vrot.lane.b32.xlu0 %v1086, 48
    %v1091 = vpop.permute.xlu0 %1090
    %1092 = vrot.lane.b32.xlu0 %v1087, 48
    %v1093 = vpop.permute.xlu0 %1092
    %vm1096 = vcmask 851712
    %1097 = vst.msk [vmem:[#allocation2 + $0x1] sm:$0xff] %vm1096, %v1091
    %vm1098 = vcmask 847616
    %1099 = vst.msk [vmem:[#allocation2 + $0x9] sm:$0xf] %vm1098, %v1093
    %v1100 = vld [vmem:[#allocation2] sm:$0xff]
    %v1101 = vld [vmem:[#allocation2 + $0x8] sm:$0xf]
    %v1102 = vld [vmem:[%s3] sm:$0xff]
    %v1103 = vld [vmem:[%s3 + $0x8] sm:$0xff]
    %v1104 = vld [vmem:[%s3 + $0x10] sm:$0xff]
    %v1105 = vld [vmem:[%s3 + $0x18] sm:$0xff]
    %v1106 = vld [vmem:[%s3 + $0x20] sm:$0xff]
    %v1107 = vld [vmem:[%s3 + $0x28] sm:$0xff]
    %v1108 = vld [vmem:[%s3 + $0x30] sm:$0xff]
    %v1109 = vld [vmem:[%s3 + $0x38] sm:$0xff]
    %v1110 = vld [vmem:[%s3 + $0x40] sm:$0xff]
    %v1111 = vld [vmem:[%s3 + $0x48] sm:$0xff]
    %v1112 = vld [vmem:[%s3 + $0x50] sm:$0xff]
    %v1113 = vld [vmem:[%s3 + $0x58] sm:$0xff]
    %v1114 = vld [vmem:[%s3 + $0x60] sm:$0xff]
    %v1115 = vld [vmem:[%s3 + $0x68] sm:$0xff]
    %v1116 = vld [vmem:[%s3 + $0x70] sm:$0xff]
    %v1117 = vld [vmem:[%s3 + $0x78] sm:$0xff]
    %v1118 = vld [vmem:[%s3 + $0x80] sm:$0xff]
    %v1119 = vld [vmem:[%s3 + $0x88] sm:$0xff]
    %v1120 = vld [vmem:[%s3 + $0x90] sm:$0xff]
    %v1121 = vld [vmem:[%s3 + $0x98] sm:$0xff]
    %v1122 = vld [vmem:[%s3 + $0xa0] sm:$0xff]
    %v1123 = vld [vmem:[%s3 + $0xa8] sm:$0xff]
    %v1124 = vld [vmem:[%s3 + $0xb0] sm:$0xff]
    %v1125 = vld [vmem:[%s3 + $0xb8] sm:$0xff]
    %v1126 = vld [vmem:[%s3 + $0xc0] sm:$0xff]
    %v1127 = vld [vmem:[%s3 + $0xc8] sm:$0xff]
    %v1128 = vld [vmem:[%s3 + $0xd0] sm:$0xff]
    %v1129 = vld [vmem:[%s3 + $0xd8] sm:$0xff]
    %v1130 = vld [vmem:[#allocation2 + $0x1] sm:$0xff]
    %v1131 = vld [vmem:[#allocation2 + $0x9] sm:$0xf]
    %s1132 = scalar_lea.vmem %s3, 224
    %v1133 = vld [vmem:[%s1132] sm:$0xff]
    %v1134 = vld [vmem:[%s1132 + $0x8] sm:$0xff]
    %v1135 = vld [vmem:[%s1132 + $0x10] sm:$0xff]
    %v1136 = vld [vmem:[%s1132 + $0x18] sm:$0xff]
    %v1137 = vld [vmem:[%s1132 + $0x20] sm:$0xff]
    %v1138 = vld [vmem:[%s1132 + $0x28] sm:$0xff]
    %v1139 = vld [vmem:[%s1132 + $0x30] sm:$0xff]
    %v1140 = vld [vmem:[%s1132 + $0x38] sm:$0xff]
    %v1141 = vld [vmem:[%s1132 + $0x40] sm:$0xff]
    %v1142 = vld [vmem:[%s1132 + $0x48] sm:$0xff]
    %v1143 = vld [vmem:[%s1132 + $0x50] sm:$0xff]
    %v1144 = vld [vmem:[%s1132 + $0x58] sm:$0xff]
    %v1145 = vld [vmem:[%s1132 + $0x60] sm:$0xff]
    %v1146 = vld [vmem:[%s1132 + $0x68] sm:$0xff]
    %v1147 = vld [vmem:[%s1132 + $0x70] sm:$0xff]
    %v1148 = vld [vmem:[%s1132 + $0x78] sm:$0xff]
    %v1149 = vld [vmem:[%s1132 + $0x80] sm:$0xff]
    %v1150 = vld [vmem:[%s1132 + $0x88] sm:$0xff]
    %v1151 = vld [vmem:[%s1132 + $0x90] sm:$0xff]
    %v1152 = vld [vmem:[%s1132 + $0x98] sm:$0xff]
    %v1153 = vld [vmem:[%s1132 + $0xa0] sm:$0xff]
    %v1154 = vld [vmem:[%s1132 + $0xa8] sm:$0xff]
    %v1155 = vld [vmem:[%s1132 + $0xb0] sm:$0xff]
    %v1156 = vld [vmem:[%s1132 + $0xb8] sm:$0xff]
    %v1157 = vld [vmem:[%s1132 + $0xc0] sm:$0xff]
    %v1158 = vld [vmem:[%s1132 + $0xc8] sm:$0xff]
    %v1159 = vld [vmem:[%s1132 + $0xd0] sm:$0xff]
    %v1160 = vld [vmem:[%s1132 + $0xd8] sm:$0xff]
    %v1162 = vsel %vm45, %v1130, 0
    %v1165 = vsel %vm45, %v1131, 0
    %1167 = vmatprep.subr.mxu0 %v1134
    %1168 = vmatpush1.msra.mxu0 %v1133
    %1169 = vmatprep.subr.mxu0 %v1136
    %1170 = vmatpush1.msra.mxu0 %v1135
    %1171 = vmatprep.subr.mxu0 %v1138
    %1172 = vmatpush1.msra.mxu0 %v1137
    %1173 = vmatprep.subr.mxu0 %v1140
    %1174 = vmatpush1.msra.mxu0 %v1139
    %1175 = vmatprep.subr.mxu0 %v1142
    %1176 = vmatpush1.msra.mxu0 %v1141
    %1177 = vmatprep.subr.mxu0 %v1144
    %1178 = vmatpush1.msra.mxu0 %v1143
    %1179 = vmatprep.subr.mxu0 %v1146
    %1180 = vmatpush1.msra.mxu0 %v1145
    %1181 = vmatprep.subr.mxu0 %v1148
    %1182 = vmatpush1.msra.mxu0 %v1147
    %1183 = vmatprep.subr.mxu0 %v1150
    %1184 = vmatpush1.msra.mxu0 %v1149
    %1185 = vmatprep.subr.mxu0 %v1152
    %1186 = vmatpush1.msra.mxu0 %v1151
    %1187 = vmatprep.subr.mxu0 %v1154
    %1188 = vmatpush1.msra.mxu0 %v1153
    %1189 = vmatprep.subr.mxu0 %v1156
    %1190 = vmatpush1.msra.mxu0 %v1155
    %1191 = vmatprep.subr.mxu0 %v1158
    %1192 = vmatpush1.msra.mxu0 %v1157
    %1193 = vmatprep.subr.mxu0 %v1160
    %1194 = vmatpush1.msra.mxu0 %v1159
    %1195 = vmatprep.subr.mxu0 0.0
    %1196 = vmatpush1.msra.mxu0 0.0
    %1197 = vmatprep.subr.mxu0 0.0
    %1198 = vmatpush1.msra.mxu0 0.0
    %1199 = vmatprep.subr.mxu0 0.0
    %1200 = vmatpush1.msra.mxu0 0.0
    %1201 = vmatprep.subr.mxu0 0.0
    %1202 = vmatpush1.msra.mxu0 0.0
    %1203 = vmatprep.subr.mxu0 0.0
    %1204 = vmatpush1.msra.mxu0 0.0
    %1205 = vmatprep.subr.mxu0 0.0
    %1206 = vmatpush1.msra.mxu0 0.0
    %1207 = vmatprep.subr.mxu0 0.0
    %1208 = vmatpush1.msra.mxu0 0.0
    %1209 = vmatprep.subr.mxu0 0.0
    %1210 = vmatpush1.msra.mxu0 0.0
    %1211 = vmatprep.subr.mxu0 0.0
    %1212 = vmatpush1.msra.mxu0 0.0
    %1213 = vmatprep.subr.mxu0 0.0
    %1214 = vmatpush1.msra.mxu0 0.0
    %1215 = vmatprep.subr.mxu0 0.0
    %1216 = vmatpush1.msra.mxu0 0.0
    %1217 = vmatprep.subr.mxu0 0.0
    %1218 = vmatpush1.msra.mxu0 0.0
    %1219 = vmatprep.subr.mxu0 0.0
    %1220 = vmatpush1.msra.mxu0 0.0
    %1221 = vmatprep.subr.mxu0 0.0
    %1222 = vmatpush1.msra.mxu0 0.0
    %1223 = vmatprep.subr.mxu0 0.0
    %1224 = vmatpush1.msra.mxu0 0.0
    %1225 = vmatprep.subr.mxu0 0.0
    %1226 = vmatpush1.msra.mxu0 0.0
    %1227 = vmatprep.subr.mxu0 0.0
    %1228 = vmatpush1.msra.mxu0 0.0
    %1229 = vmatprep.subr.mxu0 0.0
    %1230 = vmatpush1.msra.mxu0 0.0
    %1231 = vmatprep.mubr.f32.mxu0 0.0
    %1232 = vmatmul.mubr.f32.gmra.mrb[0].mxu0 %v1162
    %v1233 = vpop.f32.mrb[0].mxu0
    %v1234 = vadd.f32 0.0, %v1233
    %v1235 = vpop.f32.mrb[0].mxu0
    %v1236 = vadd.f32 0.0, %v1235
    %1237 = vmatprep.mubr.f32.mxu0 0.0
    %1238 = vmatmul.mubr.f32.gmra.mrb[0].mxu0 %v1165
    %v1239 = vpop.f32.mrb[0].mxu0
    %v1240 = vadd.f32 0.0, %v1239
    %v1241 = vpop.f32.mrb[0].mxu0
    %v1242 = vadd.f32 0.0, %v1241
    %1243 = vdwg.mxu0
    %v1245 = vsel %vm45, %v1100, 0
    %v1248 = vsel %vm45, %v1101, 0
    %1250 = vmatprep.subr.mxu0 %v1103
    %1251 = vmatpush1.msra.mxu0 %v1102
    %1252 = vmatprep.subr.mxu0 %v1105
    %1253 = vmatpush1.msra.mxu0 %v1104
    %1254 = vmatprep.subr.mxu0 %v1107
    %1255 = vmatpush1.msra.mxu0 %v1106
    %1256 = vmatprep.subr.mxu0 %v1109
    %1257 = vmatpush1.msra.mxu0 %v1108
    %1258 = vmatprep.subr.mxu0 %v1111
    %1259 = vmatpush1.msra.mxu0 %v1110
    %1260 = vmatprep.subr.mxu0 %v1113
    %1261 = vmatpush1.msra.mxu0 %v1112
    %1262 = vmatprep.subr.mxu0 %v1115
    %1263 = vmatpush1.msra.mxu0 %v1114
    %1264 = vmatprep.subr.mxu0 %v1117
    %1265 = vmatpush1.msra.mxu0 %v1116
    %1266 = vmatprep.subr.mxu0 %v1119
    %1267 = vmatpush1.msra.mxu0 %v1118
    %1268 = vmatprep.subr.mxu0 %v1121
    %1269 = vmatpush1.msra.mxu0 %v1120
    %1270 = vmatprep.subr.mxu0 %v1123
    %1271 = vmatpush1.msra.mxu0 %v1122
    %1272 = vmatprep.subr.mxu0 %v1125
    %1273 = vmatpush1.msra.mxu0 %v1124
    %1274 = vmatprep.subr.mxu0 %v1127
    %1275 = vmatpush1.msra.mxu0 %v1126
    %1276 = vmatprep.subr.mxu0 %v1129
    %1277 = vmatpush1.msra.mxu0 %v1128
    %1278 = vmatprep.subr.mxu0 0.0
    %1279 = vmatpush1.msra.mxu0 0.0
    %1280 = vmatprep.subr.mxu0 0.0
    %1281 = vmatpush1.msra.mxu0 0.0
    %1282 = vmatprep.subr.mxu0 0.0
    %1283 = vmatpush1.msra.mxu0 0.0
    %1284 = vmatprep.subr.mxu0 0.0
    %1285 = vmatpush1.msra.mxu0 0.0
    %1286 = vmatprep.subr.mxu0 0.0
    %1287 = vmatpush1.msra.mxu0 0.0
    %1288 = vmatprep.subr.mxu0 0.0
    %1289 = vmatpush1.msra.mxu0 0.0
    %1290 = vmatprep.subr.mxu0 0.0
    %1291 = vmatpush1.msra.mxu0 0.0
    %1292 = vmatprep.subr.mxu0 0.0
    %1293 = vmatpush1.msra.mxu0 0.0
    %1294 = vmatprep.subr.mxu0 0.0
    %1295 = vmatpush1.msra.mxu0 0.0
    %1296 = vmatprep.subr.mxu0 0.0
    %1297 = vmatpush1.msra.mxu0 0.0
    %1298 = vmatprep.subr.mxu0 0.0
    %1299 = vmatpush1.msra.mxu0 0.0
    %1300 = vmatprep.subr.mxu0 0.0
    %1301 = vmatpush1.msra.mxu0 0.0
    %1302 = vmatprep.subr.mxu0 0.0
    %1303 = vmatpush1.msra.mxu0 0.0
    %1304 = vmatprep.subr.mxu0 0.0
    %1305 = vmatpush1.msra.mxu0 0.0
    %1306 = vmatprep.subr.mxu0 0.0
    %1307 = vmatpush1.msra.mxu0 0.0
    %1308 = vmatprep.subr.mxu0 0.0
    %1309 = vmatpush1.msra.mxu0 0.0
    %1310 = vmatprep.subr.mxu0 0.0
    %1311 = vmatpush1.msra.mxu0 0.0
    %1312 = vmatprep.subr.mxu0 0.0
    %1313 = vmatpush1.msra.mxu0 0.0
    %1314 = vmatprep.mubr.f32.mxu0 0.0
    %1315 = vmatmul.mubr.f32.gmra.mrb[0].mxu0 %v1245
    %v1316 = vpop.f32.mrb[0].mxu0
    %v1317 = vadd.f32 %v1234, %v1316
    %v1318 = vpop.f32.mrb[0].mxu0
    %v1319 = vadd.f32 %v1236, %v1318
    %1320 = vmatprep.mubr.f32.mxu0 0.0
    %1321 = vmatmul.mubr.f32.gmra.mrb[0].mxu0 %v1248
    %v1322 = vpop.f32.mrb[0].mxu0
    %v1323 = vadd.f32 %v1240, %v1322
    %v1324 = vpop.f32.mrb[0].mxu0
    %v1325 = vadd.f32 %v1242, %v1324
    %1326 = vdwg.mxu0
    %v1327 = vld [vmem:[#allocation2 + $0x2] sm:$0xff]
    %v1328 = vld [vmem:[#allocation2 + $0xa] sm:$0xf]
    %s1329 = scalar_lea.vmem %s3, 448
    %v1330 = vld [vmem:[%s1329] sm:$0xff]
    %v1331 = vld [vmem:[%s1329 + $0x8] sm:$0xff]
    %v1332 = vld [vmem:[%s1329 + $0x10] sm:$0xff]
    %v1333 = vld [vmem:[%s1329 + $0x18] sm:$0xff]
    %v1334 = vld [vmem:[%s1329 + $0x20] sm:$0xff]
    %v1335 = vld [vmem:[%s1329 + $0x28] sm:$0xff]
    %v1336 = vld [vmem:[%s1329 + $0x30] sm:$0xff]
    %v1337 = vld [vmem:[%s1329 + $0x38] sm:$0xff]
    %v1338 = vld [vmem:[%s1329 + $0x40] sm:$0xff]
    %v1339 = vld [vmem:[%s1329 + $0x48] sm:$0xff]
    %v1340 = vld [vmem:[%s1329 + $0x50] sm:$0xff]
    %v1341 = vld [vmem:[%s1329 + $0x58] sm:$0xff]
    %v1342 = vld [vmem:[%s1329 + $0x60] sm:$0xff]
    %v1343 = vld [vmem:[%s1329 + $0x68] sm:$0xff]
    %v1344 = vld [vmem:[%s1329 + $0x70] sm:$0xff]
    %v1345 = vld [vmem:[%s1329 + $0x78] sm:$0xff]
    %v1346 = vld [vmem:[%s1329 + $0x80] sm:$0xff]
    %v1347 = vld [vmem:[%s1329 + $0x88] sm:$0xff]
    %v1348 = vld [vmem:[%s1329 + $0x90] sm:$0xff]
    %v1349 = vld [vmem:[%s1329 + $0x98] sm:$0xff]
    %v1350 = vld [vmem:[%s1329 + $0xa0] sm:$0xff]
    %v1351 = vld [vmem:[%s1329 + $0xa8] sm:$0xff]
    %v1352 = vld [vmem:[%s1329 + $0xb0] sm:$0xff]
    %v1353 = vld [vmem:[%s1329 + $0xb8] sm:$0xff]
    %v1354 = vld [vmem:[%s1329 + $0xc0] sm:$0xff]
    %v1355 = vld [vmem:[%s1329 + $0xc8] sm:$0xff]
    %v1356 = vld [vmem:[%s1329 + $0xd0] sm:$0xff]
    %v1357 = vld [vmem:[%s1329 + $0xd8] sm:$0xff]
    %v1359 = vsel %vm45, %v1327, 0
    %v1362 = vsel %vm45, %v1328, 0
    %1364 = vmatprep.subr.mxu0 %v1331
    %1365 = vmatpush1.msra.mxu0 %v1330
    %1366 = vmatprep.subr.mxu0 %v1333
    %1367 = vmatpush1.msra.mxu0 %v1332
    %1368 = vmatprep.subr.mxu0 %v1335
    %1369 = vmatpush1.msra.mxu0 %v1334
    %1370 = vmatprep.subr.mxu0 %v1337
    %1371 = vmatpush1.msra.mxu0 %v1336
    %1372 = vmatprep.subr.mxu0 %v1339
    %1373 = vmatpush1.msra.mxu0 %v1338
    %1374 = vmatprep.subr.mxu0 %v1341
    %1375 = vmatpush1.msra.mxu0 %v1340
    %1376 = vmatprep.subr.mxu0 %v1343
    %1377 = vmatpush1.msra.mxu0 %v1342
    %1378 = vmatprep.subr.mxu0 %v1345
    %1379 = vmatpush1.msra.mxu0 %v1344
    %1380 = vmatprep.subr.mxu0 %v1347
    %1381 = vmatpush1.msra.mxu0 %v1346
    %1382 = vmatprep.subr.mxu0 %v1349
    %1383 = vmatpush1.msra.mxu0 %v1348
    %1384 = vmatprep.subr.mxu0 %v1351
    %1385 = vmatpush1.msra.mxu0 %v1350
    %1386 = vmatprep.subr.mxu0 %v1353
    %1387 = vmatpush1.msra.mxu0 %v1352
    %1388 = vmatprep.subr.mxu0 %v1355
    %1389 = vmatpush1.msra.mxu0 %v1354
    %1390 = vmatprep.subr.mxu0 %v1357
    %1391 = vmatpush1.msra.mxu0 %v1356
    %1392 = vmatprep.subr.mxu0 0.0
    %1393 = vmatpush1.msra.mxu0 0.0
    %1394 = vmatprep.subr.mxu0 0.0
    %1395 = vmatpush1.msra.mxu0 0.0
    %1396 = vmatprep.subr.mxu0 0.0
    %1397 = vmatpush1.msra.mxu0 0.0
    %1398 = vmatprep.subr.mxu0 0.0
    %1399 = vmatpush1.msra.mxu0 0.0
    %1400 = vmatprep.subr.mxu0 0.0
    %1401 = vmatpush1.msra.mxu0 0.0
    %1402 = vmatprep.subr.mxu0 0.0
    %1403 = vmatpush1.msra.mxu0 0.0
    %1404 = vmatprep.subr.mxu0 0.0
    %1405 = vmatpush1.msra.mxu0 0.0
    %1406 = vmatprep.subr.mxu0 0.0
    %1407 = vmatpush1.msra.mxu0 0.0
    %1408 = vmatprep.subr.mxu0 0.0
    %1409 = vmatpush1.msra.mxu0 0.0
    %1410 = vmatprep.subr.mxu0 0.0
    %1411 = vmatpush1.msra.mxu0 0.0
    %1412 = vmatprep.subr.mxu0 0.0
    %1413 = vmatpush1.msra.mxu0 0.0
    %1414 = vmatprep.subr.mxu0 0.0
    %1415 = vmatpush1.msra.mxu0 0.0
    %1416 = vmatprep.subr.mxu0 0.0
    %1417 = vmatpush1.msra.mxu0 0.0
    %1418 = vmatprep.subr.mxu0 0.0
    %1419 = vmatpush1.msra.mxu0 0.0
    %1420 = vmatprep.subr.mxu0 0.0
    %1421 = vmatpush1.msra.mxu0 0.0
    %1422 = vmatprep.subr.mxu0 0.0
    %1423 = vmatpush1.msra.mxu0 0.0
    %1424 = vmatprep.subr.mxu0 0.0
    %1425 = vmatpush1.msra.mxu0 0.0
    %1426 = vmatprep.subr.mxu0 0.0
    %1427 = vmatpush1.msra.mxu0 0.0
    %1428 = vmatprep.mubr.f32.mxu0 0.0
    %1429 = vmatmul.mubr.f32.gmra.mrb[0].mxu0 %v1359
    %v1430 = vpop.f32.mrb[0].mxu0
    %v1431 = vadd.f32 0.0, %v1430
    %v1432 = vpop.f32.mrb[0].mxu0
    %v1433 = vadd.f32 0.0, %v1432
    %1434 = vmatprep.mubr.f32.mxu0 0.0
    %1435 = vmatmul.mubr.f32.gmra.mrb[0].mxu0 %v1362
    %v1436 = vpop.f32.mrb[0].mxu0
    %v1437 = vadd.f32 0.0, %v1436
    %v1438 = vpop.f32.mrb[0].mxu0
    %v1439 = vadd.f32 0.0, %v1438
    %1440 = vdwg.mxu0
    %v1441 = vadd.f32 %v1317, %v1431
    %v1442 = vadd.f32 %v1319, %v1433
    %v1443 = vadd.f32 %v1323, %v1437
    %v1444 = vadd.f32 %v1325, %v1439
    %v1445 = vld [vmem:[%s4] sm:$0x3]
    %v1447 = vlaneseq
    %v1448 = vshrl.u32 %v1447, 7
    %v1449 = vsub.s32 0, %v1448
    %v1450 = vrot.slane %v1445, %v1449
    %v1451 = vlaneseq
    %v1452 = vshrl.u32 %v1451, 7
    %v1453 = vsub.s32 1, %v1452
    %v1454 = vrot.slane %v1445, %v1453
    %v1457 = vadd.f32 %v1441, %v1450
    %v1458 = vadd.f32 %v1442, %v1454
    %v1459 = vadd.f32 %v1443, %v1450
    %v1460 = vadd.f32 %v1444, %v1454
    %v1461 = vmax.f32 %v1457, 0.0
    %v1462 = vmax.f32 %v1458, 0.0
    %v1463 = vmax.f32 %v1459, 0.0
    %v1464 = vmax.f32 %v1460, 0.0
    %v1467 = vrot.slane %v1461, 1
    %v1468 = vrot.slane %v1462, 1
    %v1471 = vmax.f32 %v1461, %v1467
    %v1472 = vmax.f32 %v1462, %v1468
    %v1475 = vcombine.low %v1471, %v1472
    %v1477 = vunpack.c.l.s4 1966171168
    %v1478 = vunpack.c.0.s8 %v1477
    %v1479 = vlaneseq
    %v1480 = vshrl.u32 %v1479, 7
    %v1481 = vsub.s32 %v1478, %v1480
    %v1482 = vrot.slane %v1475, %v1481
    %v1484 = vunpack.c.l.s4 1966171168
    %v1485 = vunpack.c.0.s8 %v1484
    %v1486 = vlaneseq
    %v1487 = vshrl.u32 %v1486, 7
    %v1488 = vsub.s32 %v1485, %v1487
    %v1489 = vrot.slane %v1482, %v1488
    %1491 = vst.msk [vmem:[#allocation4] ss:$8 sm:$0x3] %vm672, %v1489
    %1492 = vst.msk [vmem:[#allocation4] ss:$8 sm:$0x0] %vm672, %v1489
    %v1493 = vcombine.high %v1489, %v1489
    %1495 = vst.msk [vmem:[%s677] ss:$8 sm:$0x3] %vm672, %v1493
    %1496 = vst.msk [vmem:[%s677] ss:$8 sm:$0x0] %vm672, %v1493
    %v1497 = vcombine.high %v1471, %v1472
    %v1499 = vunpack.c.l.s4 1966171168
    %v1500 = vunpack.c.0.s8 %v1499
    %v1501 = vlaneseq
    %v1502 = vshrl.u32 %v1501, 7
    %v1503 = vsub.s32 %v1500, %v1502
    %v1504 = vrot.slane %v1497, %v1503
    %v1506 = vunpack.c.l.s4 1966171168
    %v1507 = vunpack.c.0.s8 %v1506
    %v1508 = vlaneseq
    %v1509 = vshrl.u32 %v1508, 7
    %v1510 = vsub.s32 %v1507, %v1509
    %v1511 = vrot.slane %v1504, %v1510
    %1513 = vst.msk [vmem:[%s696] ss:$8 sm:$0x3] %vm672, %v1511
    %1514 = vst.msk [vmem:[%s696] ss:$8 sm:$0x0] %vm672, %v1511
    %v1515 = vcombine.high %v1511, %v1511
    %1517 = vst.msk [vmem:[%s701] ss:$8 sm:$0x3] %vm672, %v1515
    %1518 = vst.msk [vmem:[%s701] ss:$8 sm:$0x0] %vm672, %v1515
    %v1521 = vrot.slane %v1463, 1
    %v1522 = vrot.slane %v1464, 1
    %v1525 = vmax.f32 %v1463, %v1521
    %v1526 = vmax.f32 %v1464, %v1522
    %v1529 = vcombine.low %v1525, %v1526
    %v1531 = vunpack.c.l.s4 1966171168
    %v1532 = vunpack.c.0.s8 %v1531
    %v1533 = vlaneseq
    %v1534 = vshrl.u32 %v1533, 7
    %v1535 = vsub.s32 %v1532, %v1534
    %v1536 = vrot.slane %v1529, %v1535
    %v1538 = vunpack.c.l.s4 1966171168
    %v1539 = vunpack.c.0.s8 %v1538
    %v1540 = vlaneseq
    %v1541 = vshrl.u32 %v1540, 7
    %v1542 = vsub.s32 %v1539, %v1541
    %v1543 = vrot.slane %v1536, %v1542
    %1545 = vst.msk [vmem:[%s730] ss:$8 sm:$0x3] %vm672, %v1543
    %1546 = vst.msk [vmem:[%s730] ss:$8 sm:$0x0] %vm672, %v1543
    %v1547 = vcombine.high %v1543, %v1543
    %1549 = vst.msk [vmem:[%s735] ss:$8 sm:$0x3] %vm672, %v1547
    %1550 = vst.msk [vmem:[%s735] ss:$8 sm:$0x0] %vm672, %v1547
    %v1551 = vld [vmem:[#allocation4] sm:$0x3f]
    %1553 = vrot.lane.b32.xlu0 %v1551, 112
    %v1554 = vpop.permute.xlu0 %1553
    %v1556 = vmax.f32 %v1551, %v1554
    %1558 = vrot.lane.b32.xlu0 %v1556, 16
    %v1559 = vpop.permute.xlu0 %1558
    %vm1561 = vcmask 259200
    %1562 = vst.msk [vmem:[#allocation3 + $0x1] sm:$0x3f] %vm1561, %v1559
    %v1563 = vld [vmem:[#allocation4] sm:$0x3f]
    %1565 = vrot.lane.b32.xlu0 %v1563, 112
    %v1566 = vpop.permute.xlu0 %1565
    %v1568 = vmax.f32 %v1563, %v1566
    %vm1569 = vcmask 390400
    %1570 = vst.msk [vmem:[#allocation3 + $0x1] sm:$0x3f] %vm1569, %v1568
    %v1571 = vld [vmem:[#allocation4] sm:$0x3f]
    %1573 = vrot.lane.b32.xlu0 %v1571, 112
    %v1574 = vpop.permute.xlu0 %1573
    %v1576 = vmax.f32 %v1571, %v1574
    %1578 = vrot.lane.b32.xlu0 %v1576, 112
    %v1579 = vpop.permute.xlu0 %1578
    %vm1581 = vcmask 521600
    %1582 = vst.msk [vmem:[#allocation3 + $0x1] sm:$0x3f] %vm1581, %v1579
    %v1583 = vld [vmem:[#allocation4] sm:$0x3f]
    %1585 = vrot.lane.b32.xlu0 %v1583, 112
    %v1586 = vpop.permute.xlu0 %1585
    %v1588 = vmax.f32 %v1583, %v1586
    %1590 = vrot.lane.b32.xlu0 %v1588, 96
    %v1591 = vpop.permute.xlu0 %1590
    %vm1593 = vcmask 652800
    %1594 = vst.msk [vmem:[#allocation3 + $0x1] sm:$0x3f] %vm1593, %v1591
    %v1595 = vld [vmem:[#allocation4 + $0x8] sm:$0x3f]
    %1597 = vrot.lane.b32.xlu0 %v1595, 112
    %v1598 = vpop.permute.xlu0 %1597
    %v1600 = vmax.f32 %v1595, %v1598
    %1602 = vrot.lane.b32.xlu0 %v1600, 80
    %v1603 = vpop.permute.xlu0 %1602
    %vm1605 = vcmask 784000
    %1606 = vst.msk [vmem:[#allocation3 + $0x1] sm:$0x3f] %vm1605, %v1603
    %v1607 = vld [vmem:[#allocation4 + $0x8] sm:$0x3f]
    %1609 = vrot.lane.b32.xlu0 %v1607, 112
    %v1610 = vpop.permute.xlu0 %1609
    %v1612 = vmax.f32 %v1607, %v1610
    %1614 = vrot.lane.b32.xlu0 %v1612, 64
    %v1615 = vpop.permute.xlu0 %1614
    %vm1617 = vcmask 915200
    %1618 = vst.msk [vmem:[#allocation3 + $0x1] sm:$0x3f] %vm1617, %v1615
    %v1619 = vld [vmem:[#allocation3] sm:$0x3f]
    %v1620 = vld [vmem:[%s5] sm:$0xff]
    %v1621 = vld [vmem:[%s5 + $0x8] sm:$0xff]
    %v1622 = vld [vmem:[%s5 + $0x10] sm:$0xff]
    %v1623 = vld [vmem:[%s5 + $0x18] sm:$0xff]
    %v1624 = vld [vmem:[%s5 + $0x20] sm:$0xff]
    %v1625 = vld [vmem:[%s5 + $0x28] sm:$0xff]
    %v1626 = vld [vmem:[%s5 + $0x30] sm:$0xff]
    %v1627 = vld [vmem:[%s5 + $0x38] sm:$0xff]
    %v1628 = vld [vmem:[%s5 + $0x40] sm:$0xff]
    %v1629 = vld [vmem:[%s5 + $0x48] sm:$0xff]
    %v1630 = vld [vmem:[%s5 + $0x50] sm:$0xff]
    %v1631 = vld [vmem:[%s5 + $0x58] sm:$0xff]
    %v1632 = vld [vmem:[%s5 + $0x60] sm:$0xff]
    %v1633 = vld [vmem:[%s5 + $0x68] sm:$0xff]
    %v1634 = vld [vmem:[%s5 + $0x70] sm:$0xff]
    %v1635 = vld [vmem:[%s5 + $0x78] sm:$0xff]
    %v1636 = vld [vmem:[%s5 + $0x80] sm:$0xff]
    %v1637 = vld [vmem:[%s5 + $0x88] sm:$0xff]
    %v1638 = vld [vmem:[%s5 + $0x90] sm:$0xff]
    %v1639 = vld [vmem:[%s5 + $0x98] sm:$0xff]
    %v1640 = vld [vmem:[%s5 + $0xa0] sm:$0xff]
    %v1641 = vld [vmem:[%s5 + $0xa8] sm:$0xff]
    %v1642 = vld [vmem:[%s5 + $0xb0] sm:$0xff]
    %v1643 = vld [vmem:[%s5 + $0xb8] sm:$0xff]
    %v1644 = vld [vmem:[%s5 + $0xc0] sm:$0xff]
    %v1645 = vld [vmem:[%s5 + $0xc8] sm:$0xff]
    %v1646 = vld [vmem:[%s5 + $0xd0] sm:$0xff]
    %v1647 = vld [vmem:[%s5 + $0xd8] sm:$0xff]
    %v1648 = vld [vmem:[%s5 + $0xe0] sm:$0xff]
    %v1649 = vld [vmem:[%s5 + $0xe8] sm:$0xff]
    %v1650 = vld [vmem:[%s5 + $0xf0] sm:$0xff]
    %v1651 = vld [vmem:[%s5 + $0xf8] sm:$0xff]
    %v1652 = vld [vmem:[#allocation3 + $0x1] sm:$0x3f]
    %s1653 = scalar_lea.vmem %s5, 256
    %v1654 = vld [vmem:[%s1653] sm:$0xff]
    %v1655 = vld [vmem:[%s1653 + $0x8] sm:$0xff]
    %v1656 = vld [vmem:[%s1653 + $0x10] sm:$0xff]
    %v1657 = vld [vmem:[%s1653 + $0x18] sm:$0xff]
    %v1658 = vld [vmem:[%s1653 + $0x20] sm:$0xff]
    %v1659 = vld [vmem:[%s1653 + $0x28] sm:$0xff]
    %v1660 = vld [vmem:[%s1653 + $0x30] sm:$0xff]
    %v1661 = vld [vmem:[%s1653 + $0x38] sm:$0xff]
    %v1662 = vld [vmem:[%s1653 + $0x40] sm:$0xff]
    %v1663 = vld [vmem:[%s1653 + $0x48] sm:$0xff]
    %v1664 = vld [vmem:[%s1653 + $0x50] sm:$0xff]
    %v1665 = vld [vmem:[%s1653 + $0x58] sm:$0xff]
    %v1666 = vld [vmem:[%s1653 + $0x60] sm:$0xff]
    %v1667 = vld [vmem:[%s1653 + $0x68] sm:$0xff]
    %v1668 = vld [vmem:[%s1653 + $0x70] sm:$0xff]
    %v1669 = vld [vmem:[%s1653 + $0x78] sm:$0xff]
    %v1670 = vld [vmem:[%s1653 + $0x80] sm:$0xff]
    %v1671 = vld [vmem:[%s1653 + $0x88] sm:$0xff]
    %v1672 = vld [vmem:[%s1653 + $0x90] sm:$0xff]
    %v1673 = vld [vmem:[%s1653 + $0x98] sm:$0xff]
    %v1674 = vld [vmem:[%s1653 + $0xa0] sm:$0xff]
    %v1675 = vld [vmem:[%s1653 + $0xa8] sm:$0xff]
    %v1676 = vld [vmem:[%s1653 + $0xb0] sm:$0xff]
    %v1677 = vld [vmem:[%s1653 + $0xb8] sm:$0xff]
    %v1678 = vld [vmem:[%s1653 + $0xc0] sm:$0xff]
    %v1679 = vld [vmem:[%s1653 + $0xc8] sm:$0xff]
    %v1680 = vld [vmem:[%s1653 + $0xd0] sm:$0xff]
    %v1681 = vld [vmem:[%s1653 + $0xd8] sm:$0xff]
    %v1682 = vld [vmem:[%s1653 + $0xe0] sm:$0xff]
    %v1683 = vld [vmem:[%s1653 + $0xe8] sm:$0xff]
    %v1684 = vld [vmem:[%s1653 + $0xf0] sm:$0xff]
    %v1685 = vld [vmem:[%s1653 + $0xf8] sm:$0xff]
    %1686 = vmatprep.subr.mxu0 %v1655
    %1687 = vmatpush1.msra.mxu0 %v1654
    %1688 = vmatprep.subr.mxu0 %v1657
    %1689 = vmatpush1.msra.mxu0 %v1656
    %1690 = vmatprep.subr.mxu0 %v1659
    %1691 = vmatpush1.msra.mxu0 %v1658
    %1692 = vmatprep.subr.mxu0 %v1661
    %1693 = vmatpush1.msra.mxu0 %v1660
    %1694 = vmatprep.subr.mxu0 %v1663
    %1695 = vmatpush1.msra.mxu0 %v1662
    %1696 = vmatprep.subr.mxu0 %v1665
    %1697 = vmatpush1.msra.mxu0 %v1664
    %1698 = vmatprep.subr.mxu0 %v1667
    %1699 = vmatpush1.msra.mxu0 %v1666
    %1700 = vmatprep.subr.mxu0 %v1669
    %1701 = vmatpush1.msra.mxu0 %v1668
    %1702 = vmatprep.subr.mxu0 %v1671
    %1703 = vmatpush1.msra.mxu0 %v1670
    %1704 = vmatprep.subr.mxu0 %v1673
    %1705 = vmatpush1.msra.mxu0 %v1672
    %1706 = vmatprep.subr.mxu0 %v1675
    %1707 = vmatpush1.msra.mxu0 %v1674
    %1708 = vmatprep.subr.mxu0 %v1677
    %1709 = vmatpush1.msra.mxu0 %v1676
    %1710 = vmatprep.subr.mxu0 %v1679
    %1711 = vmatpush1.msra.mxu0 %v1678
    %1712 = vmatprep.subr.mxu0 %v1681
    %1713 = vmatpush1.msra.mxu0 %v1680
    %1714 = vmatprep.subr.mxu0 %v1683
    %1715 = vmatpush1.msra.mxu0 %v1682
    %1716 = vmatprep.subr.mxu0 %v1685
    %1717 = vmatpush1.msra.mxu0 %v1684
    %1718 = vmatprep.subr.mxu0 0.0
    %1719 = vmatpush1.msra.mxu0 0.0
    %1720 = vmatprep.subr.mxu0 0.0
    %1721 = vmatpush1.msra.mxu0 0.0
    %1722 = vmatprep.subr.mxu0 0.0
    %1723 = vmatpush1.msra.mxu0 0.0
    %1724 = vmatprep.subr.mxu0 0.0
    %1725 = vmatpush1.msra.mxu0 0.0
    %1726 = vmatprep.subr.mxu0 0.0
    %1727 = vmatpush1.msra.mxu0 0.0
    %1728 = vmatprep.subr.mxu0 0.0
    %1729 = vmatpush1.msra.mxu0 0.0
    %1730 = vmatprep.subr.mxu0 0.0
    %1731 = vmatpush1.msra.mxu0 0.0
    %1732 = vmatprep.subr.mxu0 0.0
    %1733 = vmatpush1.msra.mxu0 0.0
    %1734 = vmatprep.subr.mxu0 0.0
    %1735 = vmatpush1.msra.mxu0 0.0
    %1736 = vmatprep.subr.mxu0 0.0
    %1737 = vmatpush1.msra.mxu0 0.0
    %1738 = vmatprep.subr.mxu0 0.0
    %1739 = vmatpush1.msra.mxu0 0.0
    %1740 = vmatprep.subr.mxu0 0.0
    %1741 = vmatpush1.msra.mxu0 0.0
    %1742 = vmatprep.subr.mxu0 0.0
    %1743 = vmatpush1.msra.mxu0 0.0
    %1744 = vmatprep.subr.mxu0 0.0
    %1745 = vmatpush1.msra.mxu0 0.0
    %1746 = vmatprep.subr.mxu0 0.0
    %1747 = vmatpush1.msra.mxu0 0.0
    %1748 = vmatprep.subr.mxu0 0.0
    %1749 = vmatpush1.msra.mxu0 0.0
    %1750 = vmatprep.mubr.f32.mxu0 0.0
    %1751 = vmatmul.mubr.f32.gmra.mrb[0].mxu0 %v1652
    %v1752 = vpop.f32.mrb[0].mxu0
    %v1753 = vadd.f32 0.0, %v1752
    %v1754 = vpop.f32.mrb[0].mxu0
    %v1755 = vadd.f32 0.0, %v1754
    %1756 = vdwg.mxu0
    %1757 = vmatprep.subr.mxu0 %v1621
    %1758 = vmatpush1.msra.mxu0 %v1620
    %1759 = vmatprep.subr.mxu0 %v1623
    %1760 = vmatpush1.msra.mxu0 %v1622
    %1761 = vmatprep.subr.mxu0 %v1625
    %1762 = vmatpush1.msra.mxu0 %v1624
    %1763 = vmatprep.subr.mxu0 %v1627
    %1764 = vmatpush1.msra.mxu0 %v1626
    %1765 = vmatprep.subr.mxu0 %v1629
    %1766 = vmatpush1.msra.mxu0 %v1628
    %1767 = vmatprep.subr.mxu0 %v1631
    %1768 = vmatpush1.msra.mxu0 %v1630
    %1769 = vmatprep.subr.mxu0 %v1633
    %1770 = vmatpush1.msra.mxu0 %v1632
    %1771 = vmatprep.subr.mxu0 %v1635
    %1772 = vmatpush1.msra.mxu0 %v1634
    %1773 = vmatprep.subr.mxu0 %v1637
    %1774 = vmatpush1.msra.mxu0 %v1636
    %1775 = vmatprep.subr.mxu0 %v1639
    %1776 = vmatpush1.msra.mxu0 %v1638
    %1777 = vmatprep.subr.mxu0 %v1641
    %1778 = vmatpush1.msra.mxu0 %v1640
    %1779 = vmatprep.subr.mxu0 %v1643
    %1780 = vmatpush1.msra.mxu0 %v1642
    %1781 = vmatprep.subr.mxu0 %v1645
    %1782 = vmatpush1.msra.mxu0 %v1644
    %1783 = vmatprep.subr.mxu0 %v1647
    %1784 = vmatpush1.msra.mxu0 %v1646
    %1785 = vmatprep.subr.mxu0 %v1649
    %1786 = vmatpush1.msra.mxu0 %v1648
    %1787 = vmatprep.subr.mxu0 %v1651
    %1788 = vmatpush1.msra.mxu0 %v1650
    %1789 = vmatprep.subr.mxu0 0.0
    %1790 = vmatpush1.msra.mxu0 0.0
    %1791 = vmatprep.subr.mxu0 0.0
    %1792 = vmatpush1.msra.mxu0 0.0
    %1793 = vmatprep.subr.mxu0 0.0
    %1794 = vmatpush1.msra.mxu0 0.0
    %1795 = vmatprep.subr.mxu0 0.0
    %1796 = vmatpush1.msra.mxu0 0.0
    %1797 = vmatprep.subr.mxu0 0.0
    %1798 = vmatpush1.msra.mxu0 0.0
    %1799 = vmatprep.subr.mxu0 0.0
    %1800 = vmatpush1.msra.mxu0 0.0
    %1801 = vmatprep.subr.mxu0 0.0
    %1802 = vmatpush1.msra.mxu0 0.0
    %1803 = vmatprep.subr.mxu0 0.0
    %1804 = vmatpush1.msra.mxu0 0.0
    %1805 = vmatprep.subr.mxu0 0.0
    %1806 = vmatpush1.msra.mxu0 0.0
    %1807 = vmatprep.subr.mxu0 0.0
    %1808 = vmatpush1.msra.mxu0 0.0
    %1809 = vmatprep.subr.mxu0 0.0
    %1810 = vmatpush1.msra.mxu0 0.0
    %1811 = vmatprep.subr.mxu0 0.0
    %1812 = vmatpush1.msra.mxu0 0.0
    %1813 = vmatprep.subr.mxu0 0.0
    %1814 = vmatpush1.msra.mxu0 0.0
    %1815 = vmatprep.subr.mxu0 0.0
    %1816 = vmatpush1.msra.mxu0 0.0
    %1817 = vmatprep.subr.mxu0 0.0
    %1818 = vmatpush1.msra.mxu0 0.0
    %1819 = vmatprep.subr.mxu0 0.0
    %1820 = vmatpush1.msra.mxu0 0.0
    %1821 = vmatprep.mubr.f32.mxu0 0.0
    %1822 = vmatmul.mubr.f32.gmra.mrb[0].mxu0 %v1619
    %v1823 = vpop.f32.mrb[0].mxu0
    %v1824 = vadd.f32 %v1753, %v1823
    %v1825 = vpop.f32.mrb[0].mxu0
    %v1826 = vadd.f32 %v1755, %v1825
    %1827 = vdwg.mxu0
    %v1828 = vld [vmem:[#allocation3 + $0x2] sm:$0x3f]
    %s1829 = scalar_lea.vmem %s5, 512
    %v1830 = vld [vmem:[%s1829] sm:$0xff]
    %v1831 = vld [vmem:[%s1829 + $0x8] sm:$0xff]
    %v1832 = vld [vmem:[%s1829 + $0x10] sm:$0xff]
    %v1833 = vld [vmem:[%s1829 + $0x18] sm:$0xff]
    %v1834 = vld [vmem:[%s1829 + $0x20] sm:$0xff]
    %v1835 = vld [vmem:[%s1829 + $0x28] sm:$0xff]
    %v1836 = vld [vmem:[%s1829 + $0x30] sm:$0xff]
    %v1837 = vld [vmem:[%s1829 + $0x38] sm:$0xff]
    %v1838 = vld [vmem:[%s1829 + $0x40] sm:$0xff]
    %v1839 = vld [vmem:[%s1829 + $0x48] sm:$0xff]
    %v1840 = vld [vmem:[%s1829 + $0x50] sm:$0xff]
    %v1841 = vld [vmem:[%s1829 + $0x58] sm:$0xff]
    %v1842 = vld [vmem:[%s1829 + $0x60] sm:$0xff]
    %v1843 = vld [vmem:[%s1829 + $0x68] sm:$0xff]
    %v1844 = vld [vmem:[%s1829 + $0x70] sm:$0xff]
    %v1845 = vld [vmem:[%s1829 + $0x78] sm:$0xff]
    %v1846 = vld [vmem:[%s1829 + $0x80] sm:$0xff]
    %v1847 = vld [vmem:[%s1829 + $0x88] sm:$0xff]
    %v1848 = vld [vmem:[%s1829 + $0x90] sm:$0xff]
    %v1849 = vld [vmem:[%s1829 + $0x98] sm:$0xff]
    %v1850 = vld [vmem:[%s1829 + $0xa0] sm:$0xff]
    %v1851 = vld [vmem:[%s1829 + $0xa8] sm:$0xff]
    %v1852 = vld [vmem:[%s1829 + $0xb0] sm:$0xff]
    %v1853 = vld [vmem:[%s1829 + $0xb8] sm:$0xff]
    %v1854 = vld [vmem:[%s1829 + $0xc0] sm:$0xff]
    %v1855 = vld [vmem:[%s1829 + $0xc8] sm:$0xff]
    %v1856 = vld [vmem:[%s1829 + $0xd0] sm:$0xff]
    %v1857 = vld [vmem:[%s1829 + $0xd8] sm:$0xff]
    %v1858 = vld [vmem:[%s1829 + $0xe0] sm:$0xff]
    %v1859 = vld [vmem:[%s1829 + $0xe8] sm:$0xff]
    %v1860 = vld [vmem:[%s1829 + $0xf0] sm:$0xff]
    %v1861 = vld [vmem:[%s1829 + $0xf8] sm:$0xff]
    %1862 = vmatprep.subr.mxu0 %v1831
    %1863 = vmatpush1.msra.mxu0 %v1830
    %1864 = vmatprep.subr.mxu0 %v1833
    %1865 = vmatpush1.msra.mxu0 %v1832
    %1866 = vmatprep.subr.mxu0 %v1835
    %1867 = vmatpush1.msra.mxu0 %v1834
    %1868 = vmatprep.subr.mxu0 %v1837
    %1869 = vmatpush1.msra.mxu0 %v1836
    %1870 = vmatprep.subr.mxu0 %v1839
    %1871 = vmatpush1.msra.mxu0 %v1838
    %1872 = vmatprep.subr.mxu0 %v1841
    %1873 = vmatpush1.msra.mxu0 %v1840
    %1874 = vmatprep.subr.mxu0 %v1843
    %1875 = vmatpush1.msra.mxu0 %v1842
    %1876 = vmatprep.subr.mxu0 %v1845
    %1877 = vmatpush1.msra.mxu0 %v1844
    %1878 = vmatprep.subr.mxu0 %v1847
    %1879 = vmatpush1.msra.mxu0 %v1846
    %1880 = vmatprep.subr.mxu0 %v1849
    %1881 = vmatpush1.msra.mxu0 %v1848
    %1882 = vmatprep.subr.mxu0 %v1851
    %1883 = vmatpush1.msra.mxu0 %v1850
    %1884 = vmatprep.subr.mxu0 %v1853
    %1885 = vmatpush1.msra.mxu0 %v1852
    %1886 = vmatprep.subr.mxu0 %v1855
    %1887 = vmatpush1.msra.mxu0 %v1854
    %1888 = vmatprep.subr.mxu0 %v1857
    %1889 = vmatpush1.msra.mxu0 %v1856
    %1890 = vmatprep.subr.mxu0 %v1859
    %1891 = vmatpush1.msra.mxu0 %v1858
    %1892 = vmatprep.subr.mxu0 %v1861
    %1893 = vmatpush1.msra.mxu0 %v1860
    %1894 = vmatprep.subr.mxu0 0.0
    %1895 = vmatpush1.msra.mxu0 0.0
    %1896 = vmatprep.subr.mxu0 0.0
    %1897 = vmatpush1.msra.mxu0 0.0
    %1898 = vmatprep.subr.mxu0 0.0
    %1899 = vmatpush1.msra.mxu0 0.0
    %1900 = vmatprep.subr.mxu0 0.0
    %1901 = vmatpush1.msra.mxu0 0.0
    %1902 = vmatprep.subr.mxu0 0.0
    %1903 = vmatpush1.msra.mxu0 0.0
    %1904 = vmatprep.subr.mxu0 0.0
    %1905 = vmatpush1.msra.mxu0 0.0
    %1906 = vmatprep.subr.mxu0 0.0
    %1907 = vmatpush1.msra.mxu0 0.0
    %1908 = vmatprep.subr.mxu0 0.0
    %1909 = vmatpush1.msra.mxu0 0.0
    %1910 = vmatprep.subr.mxu0 0.0
    %1911 = vmatpush1.msra.mxu0 0.0
    %1912 = vmatprep.subr.mxu0 0.0
    %1913 = vmatpush1.msra.mxu0 0.0
    %1914 = vmatprep.subr.mxu0 0.0
    %1915 = vmatpush1.msra.mxu0 0.0
    %1916 = vmatprep.subr.mxu0 0.0
    %1917 = vmatpush1.msra.mxu0 0.0
    %1918 = vmatprep.subr.mxu0 0.0
    %1919 = vmatpush1.msra.mxu0 0.0
    %1920 = vmatprep.subr.mxu0 0.0
    %1921 = vmatpush1.msra.mxu0 0.0
    %1922 = vmatprep.subr.mxu0 0.0
    %1923 = vmatpush1.msra.mxu0 0.0
    %1924 = vmatprep.subr.mxu0 0.0
    %1925 = vmatpush1.msra.mxu0 0.0
    %1926 = vmatprep.mubr.f32.mxu0 0.0
    %1927 = vmatmul.mubr.f32.gmra.mrb[0].mxu0 %v1828
    %v1928 = vpop.f32.mrb[0].mxu0
    %v1929 = vadd.f32 0.0, %v1928
    %v1930 = vpop.f32.mrb[0].mxu0
    %v1931 = vadd.f32 0.0, %v1930
    %1932 = vdwg.mxu0
    %v1933 = vadd.f32 %v1824, %v1929
    %v1934 = vadd.f32 %v1826, %v1931
    %v1935 = vld [vmem:[%s6] sm:$0x3]
    %v1937 = vlaneseq
    %v1938 = vshrl.u32 %v1937, 7
    %v1939 = vsub.s32 0, %v1938
    %v1940 = vrot.slane %v1935, %v1939
    %v1941 = vlaneseq
    %v1942 = vshrl.u32 %v1941, 7
    %v1943 = vsub.s32 1, %v1942
    %v1944 = vrot.slane %v1935, %v1943
    %v1947 = vadd.f32 %v1933, %v1940
    %v1948 = vadd.f32 %v1934, %v1944
    %v1949 = vmax.f32 %v1947, 0.0
    %v1950 = vmax.f32 %v1948, 0.0
    %v1953 = vrot.slane %v1949, 1
    %v1954 = vrot.slane %v1950, 1
    %v1957 = vmax.f32 %v1949, %v1953
    %v1958 = vmax.f32 %v1950, %v1954
    %v1961 = vcombine.low %v1957, %v1958
    %v1963 = vunpack.c.l.s4 1966171168
    %v1964 = vunpack.c.0.s8 %v1963
    %v1965 = vlaneseq
    %v1966 = vshrl.u32 %v1965, 7
    %v1967 = vsub.s32 %v1964, %v1966
    %v1968 = vrot.slane %v1961, %v1967
    %v1970 = vunpack.c.l.s4 1966171168
    %v1971 = vunpack.c.0.s8 %v1970
    %v1972 = vlaneseq
    %v1973 = vshrl.u32 %v1972, 7
    %v1974 = vsub.s32 %v1971, %v1973
    %v1975 = vrot.slane %v1968, %v1974
    %1977 = vst.msk [vmem:[#allocation4] ss:$8 sm:$0x3] %vm672, %v1975
    %1978 = vst.msk [vmem:[#allocation4] ss:$8 sm:$0x0] %vm672, %v1975
    %v1979 = vcombine.high %v1975, %v1975
    %1981 = vst.msk [vmem:[%s677] ss:$8 sm:$0x3] %vm672, %v1979
    %1982 = vst.msk [vmem:[%s677] ss:$8 sm:$0x0] %vm672, %v1979
    %v1983 = vcombine.high %v1957, %v1958
    %v1985 = vunpack.c.l.s4 1966171168
    %v1986 = vunpack.c.0.s8 %v1985
    %v1987 = vlaneseq
    %v1988 = vshrl.u32 %v1987, 7
    %v1989 = vsub.s32 %v1986, %v1988
    %v1990 = vrot.slane %v1983, %v1989
    %v1992 = vunpack.c.l.s4 1966171168
    %v1993 = vunpack.c.0.s8 %v1992
    %v1994 = vlaneseq
    %v1995 = vshrl.u32 %v1994, 7
    %v1996 = vsub.s32 %v1993, %v1995
    %v1997 = vrot.slane %v1990, %v1996
    %1999 = vst.msk [vmem:[%s696] ss:$8 sm:$0x3] %vm672, %v1997
    %2000 = vst.msk [vmem:[%s696] ss:$8 sm:$0x0] %vm672, %v1997
    %v2001 = vld [vmem:[#allocation4] sm:$0x7]
    %2003 = vrot.lane.b32.xlu0 %v2001, 96
    %v2004 = vpop.permute.xlu0 %2003
    %v2006 = vmax.f32 %v2001, %v2004
    %vm2007 = vcmask 256000
    %2008 = vst.msk [vmem:[#allocation5] sm:$0x7] %vm2007, %v2006
    %v2009 = vld [vmem:[#allocation4] sm:$0x7]
    %2011 = vrot.lane.b32.xlu0 %v2009, 96
    %v2012 = vpop.permute.xlu0 %2011
    %v2014 = vmax.f32 %v2009, %v2012
    %2016 = vrot.lane.b32.xlu0 %v2014, 96
    %v2017 = vpop.permute.xlu0 %2016
    %vm2019 = vcmask 518400
    %2020 = vst.msk [vmem:[#allocation5] sm:$0x7] %vm2019, %v2017
    %v2021 = vld [vmem:[#allocation4 + $0x8] sm:$0x7]
    %2023 = vrot.lane.b32.xlu0 %v2021, 96
    %v2024 = vpop.permute.xlu0 %2023
    %v2026 = vmax.f32 %v2021, %v2024
    %2028 = vrot.lane.b32.xlu0 %v2026, 64
    %v2029 = vpop.permute.xlu0 %2028
    %vm2031 = vcmask 780800
    %2032 = vst.msk [vmem:[#allocation5] sm:$0x7] %vm2031, %v2029
    %v2033 = vld [vmem:[#allocation5] sm:$0x1]
    %vm2034 = vcmask 778240
    %2035 = vst.msk [vmem:[#allocation6] sm:$0x1] %vm2034, %v2033
    %v2036 = vld [vmem:[#allocation5 + $0x1] sm:$0x1]
    %v2039 = vunpack.c.l.s4 1983009808
    %v2040 = vunpack.c.0.s8 %v2039
    %v2041 = vlaneseq
    %v2042 = vshrl.u32 %v2041, 7
    %v2043 = vsub.s32 %v2040, %v2042
    %v2044 = vrot.slane %v2036, %v2043
    %2045 = vrot.lane.b32.xlu0 %v2044, 96
    %v2046 = vpop.permute.xlu0 %2045
    %v2047 = vrot.slane %v2046, 6
    %vm2048 = vcmask 785408
    %v2049 = vsel %vm2048, %v2047, %v2046
    %vm2051 = vcmask 1041152
    %vm2052 = vcmask 518146
    %vm2053 = vmor %vm2052, %vm2051
    %2054 = vst.msk [vmem:[#allocation6] sm:$0x5] %vm2053, %v2049
    %v2055 = vld [vmem:[#allocation5 + $0x2] sm:$0x1]
    %v2058 = vunpack.c.l.s4 1983009808
    %v2059 = vunpack.c.0.s8 %v2058
    %v2060 = vlaneseq
    %v2061 = vshrl.u32 %v2060, 7
    %v2062 = vsub.s32 %v2059, %v2061
    %v2063 = vrot.slane %v2055, %v2062
    %2064 = vrot.lane.b32.xlu0 %v2063, 64
    %v2065 = vpop.permute.xlu0 %2064
    %v2066 = vrot.slane %v2065, 6
    %vm2067 = vcmask 523264
    %v2068 = vsel %vm2067, %v2066, %v2065
    %vm2070 = vcmask 1040896
    %vm2071 = vcmask 256002
    %vm2072 = vmor %vm2071, %vm2070
    %2073 = vst.msk [vmem:[#allocation6 + $0x2] sm:$0x5] %vm2072, %v2068
    %s2074 = scalar_lea.vmem %s0, 32
    %v2075 = vld [vmem:[%s2074] sm:$0xff]
    %v2076 = vld [vmem:[%s2074 + $0x8] sm:$0xff]
    %v2077 = vld [vmem:[%s2074 + $0x10] sm:$0xff]
    %v2078 = vld [vmem:[%s1] sm:$0xff]
    %v2079 = vld [vmem:[%s1 + $0x8] sm:$0xff]
    %v2080 = vld [vmem:[%s1 + $0x10] sm:$0xff]
    %v2081 = vld [vmem:[%s1 + $0x18] sm:$0xff]
    %v2082 = vld [vmem:[%s1 + $0x20] sm:$0xff]
    %v2083 = vld [vmem:[%s1 + $0x28] sm:$0xff]
    %v2084 = vld [vmem:[%s1 + $0x30] sm:$0xf]
    %v2085 = vld [vmem:[%s1 + $0x38] sm:$0xf]
    %v2086 = vld [vmem:[%s2074 + $0x1] sm:$0xff]
    %v2087 = vld [vmem:[%s2074 + $0x9] sm:$0xff]
    %v2088 = vld [vmem:[%s2074 + $0x11] sm:$0xff]
    %v2089 = vld [vmem:[%s64] sm:$0xff]
    %v2090 = vld [vmem:[%s64 + $0x8] sm:$0xff]
    %v2091 = vld [vmem:[%s64 + $0x10] sm:$0xff]
    %v2092 = vld [vmem:[%s64 + $0x18] sm:$0xff]
    %v2093 = vld [vmem:[%s64 + $0x20] sm:$0xff]
    %v2094 = vld [vmem:[%s64 + $0x28] sm:$0xff]
    %v2095 = vld [vmem:[%s64 + $0x30] sm:$0xf]
    %v2096 = vld [vmem:[%s64 + $0x38] sm:$0xf]
    %v2098 = vsel %vm73, %v2086, 0
    %v2101 = vsel %vm73, %v2087, 0
    %v2104 = vsel %vm73, %v2088, 0
    %v2107 = vsel %vm83, %v2095, 0
    %v2110 = vsel %vm83, %v2096, 0
    %2112 = vmatprep.subr.mxu0 %v2090
    %2113 = vmatpush1.msra.mxu0 %v2089
    %2114 = vmatprep.subr.mxu0 %v2092
    %2115 = vmatpush1.msra.mxu0 %v2091
    %2116 = vmatprep.subr.mxu0 %v2094
    %2117 = vmatpush1.msra.mxu0 %v2093
    %2118 = vmatprep.subr.mxu0 %v2110
    %2119 = vmatpush1.msra.mxu0 %v2107
    %2120 = vmatprep.subr.mxu0 0.0
    %2121 = vmatpush1.msra.mxu0 0.0
    %2122 = vmatprep.subr.mxu0 0.0
    %2123 = vmatpush1.msra.mxu0 0.0
    %2124 = vmatprep.subr.mxu0 0.0
    %2125 = vmatpush1.msra.mxu0 0.0
    %2126 = vmatprep.subr.mxu0 0.0
    %2127 = vmatpush1.msra.mxu0 0.0
    %2128 = vmatprep.subr.mxu0 0.0
    %2129 = vmatpush1.msra.mxu0 0.0
    %2130 = vmatprep.subr.mxu0 0.0
    %2131 = vmatpush1.msra.mxu0 0.0
    %2132 = vmatprep.subr.mxu0 0.0
    %2133 = vmatpush1.msra.mxu0 0.0
    %2134 = vmatprep.subr.mxu0 0.0
    %2135 = vmatpush1.msra.mxu0 0.0
    %2136 = vmatprep.subr.mxu0 0.0
    %2137 = vmatpush1.msra.mxu0 0.0
    %2138 = vmatprep.subr.mxu0 0.0
    %2139 = vmatpush1.msra.mxu0 0.0
    %2140 = vmatprep.subr.mxu0 0.0
    %2141 = vmatpush1.msra.mxu0 0.0
    %2142 = vmatprep.subr.mxu0 0.0
    %2143 = vmatpush1.msra.mxu0 0.0
    %2144 = vmatprep.subr.mxu0 0.0
    %2145 = vmatpush1.msra.mxu0 0.0
    %2146 = vmatprep.subr.mxu0 0.0
    %2147 = vmatpush1.msra.mxu0 0.0
    %2148 = vmatprep.subr.mxu0 0.0
    %2149 = vmatpush1.msra.mxu0 0.0
    %2150 = vmatprep.subr.mxu0 0.0
    %2151 = vmatpush1.msra.mxu0 0.0
    %2152 = vmatprep.subr.mxu0 0.0
    %2153 = vmatpush1.msra.mxu0 0.0
    %2154 = vmatprep.subr.mxu0 0.0
    %2155 = vmatpush1.msra.mxu0 0.0
    %2156 = vmatprep.subr.mxu0 0.0
    %2157 = vmatpush1.msra.mxu0 0.0
    %2158 = vmatprep.subr.mxu0 0.0
    %2159 = vmatpush1.msra.mxu0 0.0
    %2160 = vmatprep.subr.mxu0 0.0
    %2161 = vmatpush1.msra.mxu0 0.0
    %2162 = vmatprep.subr.mxu0 0.0
    %2163 = vmatpush1.msra.mxu0 0.0
    %2164 = vmatprep.subr.mxu0 0.0
    %2165 = vmatpush1.msra.mxu0 0.0
    %2166 = vmatprep.subr.mxu0 0.0
    %2167 = vmatpush1.msra.mxu0 0.0
    %2168 = vmatprep.subr.mxu0 0.0
    %2169 = vmatpush1.msra.mxu0 0.0
    %2170 = vmatprep.subr.mxu0 0.0
    %2171 = vmatpush1.msra.mxu0 0.0
    %2172 = vmatprep.subr.mxu0 0.0
    %2173 = vmatpush1.msra.mxu0 0.0
    %2174 = vmatprep.subr.mxu0 0.0
    %2175 = vmatpush1.msra.mxu0 0.0
    %2176 = vmatprep.mubr.f32.mxu0 0.0
    %2177 = vmatmul.mubr.f32.gmra.mrb[0].mxu0 %v2098
    %v2178 = vpop.f32.mrb[0].mxu0
    %v2179 = vadd.f32 0.0, %v2178
    %v2180 = vpop.f32.mrb[0].mxu0
    %v2181 = vadd.f32 0.0, %v2180
    %2182 = vmatprep.mubr.f32.mxu0 0.0
    %2183 = vmatmul.mubr.f32.gmra.mrb[0].mxu0 %v2101
    %v2184 = vpop.f32.mrb[0].mxu0
    %v2185 = vadd.f32 0.0, %v2184
    %v2186 = vpop.f32.mrb[0].mxu0
    %v2187 = vadd.f32 0.0, %v2186
    %2188 = vmatprep.mubr.f32.mxu0 0.0
    %2189 = vmatmul.mubr.f32.gmra.mrb[0].mxu0 %v2104
    %v2190 = vpop.f32.mrb[0].mxu0
    %v2191 = vadd.f32 0.0, %v2190
    %v2192 = vpop.f32.mrb[0].mxu0
    %v2193 = vadd.f32 0.0, %v2192
    %2194 = vdwg.mxu0
    %v2196 = vsel %vm73, %v2075, 0
    %v2199 = vsel %vm73, %v2076, 0
    %v2202 = vsel %vm73, %v2077, 0
    %v2205 = vsel %vm83, %v2084, 0
    %v2208 = vsel %vm83, %v2085, 0
    %2210 = vmatprep.subr.mxu0 %v2079
    %2211 = vmatpush1.msra.mxu0 %v2078
    %2212 = vmatprep.subr.mxu0 %v2081
    %2213 = vmatpush1.msra.mxu0 %v2080
    %2214 = vmatprep.subr.mxu0 %v2083
    %2215 = vmatpush1.msra.mxu0 %v2082
    %2216 = vmatprep.subr.mxu0 %v2208
    %2217 = vmatpush1.msra.mxu0 %v2205
    %2218 = vmatprep.subr.mxu0 0.0
    %2219 = vmatpush1.msra.mxu0 0.0
    %2220 = vmatprep.subr.mxu0 0.0
    %2221 = vmatpush1.msra.mxu0 0.0
    %2222 = vmatprep.subr.mxu0 0.0
    %2223 = vmatpush1.msra.mxu0 0.0
    %2224 = vmatprep.subr.mxu0 0.0
    %2225 = vmatpush1.msra.mxu0 0.0
    %2226 = vmatprep.subr.mxu0 0.0
    %2227 = vmatpush1.msra.mxu0 0.0
    %2228 = vmatprep.subr.mxu0 0.0
    %2229 = vmatpush1.msra.mxu0 0.0
    %2230 = vmatprep.subr.mxu0 0.0
    %2231 = vmatpush1.msra.mxu0 0.0
    %2232 = vmatprep.subr.mxu0 0.0
    %2233 = vmatpush1.msra.mxu0 0.0
    %2234 = vmatprep.subr.mxu0 0.0
    %2235 = vmatpush1.msra.mxu0 0.0
    %2236 = vmatprep.subr.mxu0 0.0
    %2237 = vmatpush1.msra.mxu0 0.0
    %2238 = vmatprep.subr.mxu0 0.0
    %2239 = vmatpush1.msra.mxu0 0.0
    %2240 = vmatprep.subr.mxu0 0.0
    %2241 = vmatpush1.msra.mxu0 0.0
    %2242 = vmatprep.subr.mxu0 0.0
    %2243 = vmatpush1.msra.mxu0 0.0
    %2244 = vmatprep.subr.mxu0 0.0
    %2245 = vmatpush1.msra.mxu0 0.0
    %2246 = vmatprep.subr.mxu0 0.0
    %2247 = vmatpush1.msra.mxu0 0.0
    %2248 = vmatprep.subr.mxu0 0.0
    %2249 = vmatpush1.msra.mxu0 0.0
    %2250 = vmatprep.subr.mxu0 0.0
    %2251 = vmatpush1.msra.mxu0 0.0
    %2252 = vmatprep.subr.mxu0 0.0
    %2253 = vmatpush1.msra.mxu0 0.0
    %2254 = vmatprep.subr.mxu0 0.0
    %2255 = vmatpush1.msra.mxu0 0.0
    %2256 = vmatprep.subr.mxu0 0.0
    %2257 = vmatpush1.msra.mxu0 0.0
    %2258 = vmatprep.subr.mxu0 0.0
    %2259 = vmatpush1.msra.mxu0 0.0
    %2260 = vmatprep.subr.mxu0 0.0
    %2261 = vmatpush1.msra.mxu0 0.0
    %2262 = vmatprep.subr.mxu0 0.0
    %2263 = vmatpush1.msra.mxu0 0.0
    %2264 = vmatprep.subr.mxu0 0.0
    %2265 = vmatpush1.msra.mxu0 0.0
    %2266 = vmatprep.subr.mxu0 0.0
    %2267 = vmatpush1.msra.mxu0 0.0
    %2268 = vmatprep.subr.mxu0 0.0
    %2269 = vmatpush1.msra.mxu0 0.0
    %2270 = vmatprep.subr.mxu0 0.0
    %2271 = vmatpush1.msra.mxu0 0.0
    %2272 = vmatprep.subr.mxu0 0.0
    %2273 = vmatpush1.msra.mxu0 0.0
    %2274 = vmatprep.mubr.f32.mxu0 0.0
    %2275 = vmatmul.mubr.f32.gmra.mrb[0].mxu0 %v2196
    %v2276 = vpop.f32.mrb[0].mxu0
    %v2277 = vadd.f32 %v2179, %v2276
    %v2278 = vpop.f32.mrb[0].mxu0
    %v2279 = vadd.f32 %v2181, %v2278
    %2280 = vmatprep.mubr.f32.mxu0 0.0
    %2281 = vmatmul.mubr.f32.gmra.mrb[0].mxu0 %v2199
    %v2282 = vpop.f32.mrb[0].mxu0
    %v2283 = vadd.f32 %v2185, %v2282
    %v2284 = vpop.f32.mrb[0].mxu0
    %v2285 = vadd.f32 %v2187, %v2284
    %2286 = vmatprep.mubr.f32.mxu0 0.0
    %2287 = vmatmul.mubr.f32.gmra.mrb[0].mxu0 %v2202
    %v2288 = vpop.f32.mrb[0].mxu0
    %v2289 = vadd.f32 %v2191, %v2288
    %v2290 = vpop.f32.mrb[0].mxu0
    %v2291 = vadd.f32 %v2193, %v2290
    %2292 = vdwg.mxu0
    %v2293 = vld [vmem:[%s2074 + $0x2] sm:$0xff]
    %v2294 = vld [vmem:[%s2074 + $0xa] sm:$0xff]
    %v2295 = vld [vmem:[%s2074 + $0x12] sm:$0xff]
    %v2296 = vld [vmem:[%s274] sm:$0xff]
    %v2297 = vld [vmem:[%s274 + $0x8] sm:$0xff]
    %v2298 = vld [vmem:[%s274 + $0x10] sm:$0xff]
    %v2299 = vld [vmem:[%s274 + $0x18] sm:$0xff]
    %v2300 = vld [vmem:[%s274 + $0x20] sm:$0xff]
    %v2301 = vld [vmem:[%s274 + $0x28] sm:$0xff]
    %v2302 = vld [vmem:[%s274 + $0x30] sm:$0xf]
    %v2303 = vld [vmem:[%s274 + $0x38] sm:$0xf]
    %v2305 = vsel %vm73, %v2293, 0
    %v2308 = vsel %vm73, %v2294, 0
    %v2311 = vsel %vm73, %v2295, 0
    %v2314 = vsel %vm83, %v2302, 0
    %v2317 = vsel %vm83, %v2303, 0
    %2319 = vmatprep.subr.mxu0 %v2297
    %2320 = vmatpush1.msra.mxu0 %v2296
    %2321 = vmatprep.subr.mxu0 %v2299
    %2322 = vmatpush1.msra.mxu0 %v2298
    %2323 = vmatprep.subr.mxu0 %v2301
    %2324 = vmatpush1.msra.mxu0 %v2300
    %2325 = vmatprep.subr.mxu0 %v2317
    %2326 = vmatpush1.msra.mxu0 %v2314
    %2327 = vmatprep.subr.mxu0 0.0
    %2328 = vmatpush1.msra.mxu0 0.0
    %2329 = vmatprep.subr.mxu0 0.0
    %2330 = vmatpush1.msra.mxu0 0.0
    %2331 = vmatprep.subr.mxu0 0.0
    %2332 = vmatpush1.msra.mxu0 0.0
    %2333 = vmatprep.subr.mxu0 0.0
    %2334 = vmatpush1.msra.mxu0 0.0
    %2335 = vmatprep.subr.mxu0 0.0
    %2336 = vmatpush1.msra.mxu0 0.0
    %2337 = vmatprep.subr.mxu0 0.0
    %2338 = vmatpush1.msra.mxu0 0.0
    %2339 = vmatprep.subr.mxu0 0.0
    %2340 = vmatpush1.msra.mxu0 0.0
    %2341 = vmatprep.subr.mxu0 0.0
    %2342 = vmatpush1.msra.mxu0 0.0
    %2343 = vmatprep.subr.mxu0 0.0
    %2344 = vmatpush1.msra.mxu0 0.0
    %2345 = vmatprep.subr.mxu0 0.0
    %2346 = vmatpush1.msra.mxu0 0.0
    %2347 = vmatprep.subr.mxu0 0.0
    %2348 = vmatpush1.msra.mxu0 0.0
    %2349 = vmatprep.subr.mxu0 0.0
    %2350 = vmatpush1.msra.mxu0 0.0
    %2351 = vmatprep.subr.mxu0 0.0
    %2352 = vmatpush1.msra.mxu0 0.0
    %2353 = vmatprep.subr.mxu0 0.0
    %2354 = vmatpush1.msra.mxu0 0.0
    %2355 = vmatprep.subr.mxu0 0.0
    %2356 = vmatpush1.msra.mxu0 0.0
    %2357 = vmatprep.subr.mxu0 0.0
    %2358 = vmatpush1.msra.mxu0 0.0
    %2359 = vmatprep.subr.mxu0 0.0
    %2360 = vmatpush1.msra.mxu0 0.0
    %2361 = vmatprep.subr.mxu0 0.0
    %2362 = vmatpush1.msra.mxu0 0.0
    %2363 = vmatprep.subr.mxu0 0.0
    %2364 = vmatpush1.msra.mxu0 0.0
    %2365 = vmatprep.subr.mxu0 0.0
    %2366 = vmatpush1.msra.mxu0 0.0
    %2367 = vmatprep.subr.mxu0 0.0
    %2368 = vmatpush1.msra.mxu0 0.0
    %2369 = vmatprep.subr.mxu0 0.0
    %2370 = vmatpush1.msra.mxu0 0.0
    %2371 = vmatprep.subr.mxu0 0.0
    %2372 = vmatpush1.msra.mxu0 0.0
    %2373 = vmatprep.subr.mxu0 0.0
    %2374 = vmatpush1.msra.mxu0 0.0
    %2375 = vmatprep.subr.mxu0 0.0
    %2376 = vmatpush1.msra.mxu0 0.0
    %2377 = vmatprep.subr.mxu0 0.0
    %2378 = vmatpush1.msra.mxu0 0.0
    %2379 = vmatprep.subr.mxu0 0.0
    %2380 = vmatpush1.msra.mxu0 0.0
    %2381 = vmatprep.subr.mxu0 0.0
    %2382 = vmatpush1.msra.mxu0 0.0
    %2383 = vmatprep.mubr.f32.mxu0 0.0
    %2384 = vmatmul.mubr.f32.gmra.mrb[0].mxu0 %v2305
    %v2385 = vpop.f32.mrb[0].mxu0
    %v2386 = vadd.f32 0.0, %v2385
    %v2387 = vpop.f32.mrb[0].mxu0
    %v2388 = vadd.f32 0.0, %v2387
    %2389 = vmatprep.mubr.f32.mxu0 0.0
    %2390 = vmatmul.mubr.f32.gmra.mrb[0].mxu0 %v2308
    %v2391 = vpop.f32.mrb[0].mxu0
    %v2392 = vadd.f32 0.0, %v2391
    %v2393 = vpop.f32.mrb[0].mxu0
    %v2394 = vadd.f32 0.0, %v2393
    %2395 = vmatprep.mubr.f32.mxu0 0.0
    %2396 = vmatmul.mubr.f32.gmra.mrb[0].mxu0 %v2311
    %v2397 = vpop.f32.mrb[0].mxu0
    %v2398 = vadd.f32 0.0, %v2397
    %v2399 = vpop.f32.mrb[0].mxu0
    %v2400 = vadd.f32 0.0, %v2399
    %2401 = vdwg.mxu0
    %v2402 = vadd.f32 %v2277, %v2386
    %v2403 = vadd.f32 %v2279, %v2388
    %v2404 = vadd.f32 %v2283, %v2392
    %v2405 = vadd.f32 %v2285, %v2394
    %v2406 = vadd.f32 %v2289, %v2398
    %v2407 = vadd.f32 %v2291, %v2400
    %v2408 = vld [vmem:[%s2074 + $0x3] sm:$0xff]
    %v2409 = vld [vmem:[%s2074 + $0xb] sm:$0xff]
    %v2410 = vld [vmem:[%s2074 + $0x13] sm:$0xff]
    %v2411 = vld [vmem:[%s390] sm:$0xff]
    %v2412 = vld [vmem:[%s390 + $0x8] sm:$0xff]
    %v2413 = vld [vmem:[%s390 + $0x10] sm:$0xff]
    %v2414 = vld [vmem:[%s390 + $0x18] sm:$0xff]
    %v2415 = vld [vmem:[%s390 + $0x20] sm:$0xff]
    %v2416 = vld [vmem:[%s390 + $0x28] sm:$0xff]
    %v2417 = vld [vmem:[%s390 + $0x30] sm:$0xf]
    %v2418 = vld [vmem:[%s390 + $0x38] sm:$0xf]
    %v2420 = vsel %vm73, %v2408, 0
    %v2423 = vsel %vm73, %v2409, 0
    %v2426 = vsel %vm73, %v2410, 0
    %v2429 = vsel %vm83, %v2417, 0
    %v2432 = vsel %vm83, %v2418, 0
    %2434 = vmatprep.subr.mxu0 %v2412
    %2435 = vmatpush1.msra.mxu0 %v2411
    %2436 = vmatprep.subr.mxu0 %v2414
    %2437 = vmatpush1.msra.mxu0 %v2413
    %2438 = vmatprep.subr.mxu0 %v2416
    %2439 = vmatpush1.msra.mxu0 %v2415
    %2440 = vmatprep.subr.mxu0 %v2432
    %2441 = vmatpush1.msra.mxu0 %v2429
    %2442 = vmatprep.subr.mxu0 0.0
    %2443 = vmatpush1.msra.mxu0 0.0
    %2444 = vmatprep.subr.mxu0 0.0
    %2445 = vmatpush1.msra.mxu0 0.0
    %2446 = vmatprep.subr.mxu0 0.0
    %2447 = vmatpush1.msra.mxu0 0.0
    %2448 = vmatprep.subr.mxu0 0.0
    %2449 = vmatpush1.msra.mxu0 0.0
    %2450 = vmatprep.subr.mxu0 0.0
    %2451 = vmatpush1.msra.mxu0 0.0
    %2452 = vmatprep.subr.mxu0 0.0
    %2453 = vmatpush1.msra.mxu0 0.0
    %2454 = vmatprep.subr.mxu0 0.0
    %2455 = vmatpush1.msra.mxu0 0.0
    %2456 = vmatprep.subr.mxu0 0.0
    %2457 = vmatpush1.msra.mxu0 0.0
    %2458 = vmatprep.subr.mxu0 0.0
    %2459 = vmatpush1.msra.mxu0 0.0
    %2460 = vmatprep.subr.mxu0 0.0
    %2461 = vmatpush1.msra.mxu0 0.0
    %2462 = vmatprep.subr.mxu0 0.0
    %2463 = vmatpush1.msra.mxu0 0.0
    %2464 = vmatprep.subr.mxu0 0.0
    %2465 = vmatpush1.msra.mxu0 0.0
    %2466 = vmatprep.subr.mxu0 0.0
    %2467 = vmatpush1.msra.mxu0 0.0
    %2468 = vmatprep.subr.mxu0 0.0
    %2469 = vmatpush1.msra.mxu0 0.0
    %2470 = vmatprep.subr.mxu0 0.0
    %2471 = vmatpush1.msra.mxu0 0.0
    %2472 = vmatprep.subr.mxu0 0.0
    %2473 = vmatpush1.msra.mxu0 0.0
    %2474 = vmatprep.subr.mxu0 0.0
    %2475 = vmatpush1.msra.mxu0 0.0
    %2476 = vmatprep.subr.mxu0 0.0
    %2477 = vmatpush1.msra.mxu0 0.0
    %2478 = vmatprep.subr.mxu0 0.0
    %2479 = vmatpush1.msra.mxu0 0.0
    %2480 = vmatprep.subr.mxu0 0.0
    %2481 = vmatpush1.msra.mxu0 0.0
    %2482 = vmatprep.subr.mxu0 0.0
    %2483 = vmatpush1.msra.mxu0 0.0
    %2484 = vmatprep.subr.mxu0 0.0
    %2485 = vmatpush1.msra.mxu0 0.0
    %2486 = vmatprep.subr.mxu0 0.0
    %2487 = vmatpush1.msra.mxu0 0.0
    %2488 = vmatprep.subr.mxu0 0.0
    %2489 = vmatpush1.msra.mxu0 0.0
    %2490 = vmatprep.subr.mxu0 0.0
    %2491 = vmatpush1.msra.mxu0 0.0
    %2492 = vmatprep.subr.mxu0 0.0
    %2493 = vmatpush1.msra.mxu0 0.0
    %2494 = vmatprep.subr.mxu0 0.0
    %2495 = vmatpush1.msra.mxu0 0.0
    %2496 = vmatprep.subr.mxu0 0.0
    %2497 = vmatpush1.msra.mxu0 0.0
    %2498 = vmatprep.mubr.f32.mxu0 0.0
    %2499 = vmatmul.mubr.f32.gmra.mrb[0].mxu0 %v2420
    %v2500 = vpop.f32.mrb[0].mxu0
    %v2501 = vadd.f32 0.0, %v2500
    %v2502 = vpop.f32.mrb[0].mxu0
    %v2503 = vadd.f32 0.0, %v2502
    %2504 = vmatprep.mubr.f32.mxu0 0.0
    %2505 = vmatmul.mubr.f32.gmra.mrb[0].mxu0 %v2423
    %v2506 = vpop.f32.mrb[0].mxu0
    %v2507 = vadd.f32 0.0, %v2506
    %v2508 = vpop.f32.mrb[0].mxu0
    %v2509 = vadd.f32 0.0, %v2508
    %2510 = vmatprep.mubr.f32.mxu0 0.0
    %2511 = vmatmul.mubr.f32.gmra.mrb[0].mxu0 %v2426
    %v2512 = vpop.f32.mrb[0].mxu0
    %v2513 = vadd.f32 0.0, %v2512
    %v2514 = vpop.f32.mrb[0].mxu0
    %v2515 = vadd.f32 0.0, %v2514
    %2516 = vdwg.mxu0
    %v2517 = vadd.f32 %v2402, %v2501
    %v2518 = vadd.f32 %v2403, %v2503
    %v2519 = vadd.f32 %v2404, %v2507
    %v2520 = vadd.f32 %v2405, %v2509
    %v2521 = vadd.f32 %v2406, %v2513
    %v2522 = vadd.f32 %v2407, %v2515
    %v2523 = vld [vmem:[%s2074 + $0x4] sm:$0xff]
    %v2524 = vld [vmem:[%s2074 + $0xc] sm:$0xff]
    %v2525 = vld [vmem:[%s2074 + $0x14] sm:$0xff]
    %v2526 = vld [vmem:[%s506] sm:$0xff]
    %v2527 = vld [vmem:[%s506 + $0x8] sm:$0xff]
    %v2528 = vld [vmem:[%s506 + $0x10] sm:$0xff]
    %v2529 = vld [vmem:[%s506 + $0x18] sm:$0xff]
    %v2530 = vld [vmem:[%s506 + $0x20] sm:$0xff]
    %v2531 = vld [vmem:[%s506 + $0x28] sm:$0xff]
    %v2532 = vld [vmem:[%s506 + $0x30] sm:$0xf]
    %v2533 = vld [vmem:[%s506 + $0x38] sm:$0xf]
    %v2535 = vsel %vm73, %v2523, 0
    %v2538 = vsel %vm73, %v2524, 0
    %v2541 = vsel %vm73, %v2525, 0
    %v2544 = vsel %vm83, %v2532, 0
    %v2547 = vsel %vm83, %v2533, 0
    %2549 = vmatprep.subr.mxu0 %v2527
    %2550 = vmatpush1.msra.mxu0 %v2526
    %2551 = vmatprep.subr.mxu0 %v2529
    %2552 = vmatpush1.msra.mxu0 %v2528
    %2553 = vmatprep.subr.mxu0 %v2531
    %2554 = vmatpush1.msra.mxu0 %v2530
    %2555 = vmatprep.subr.mxu0 %v2547
    %2556 = vmatpush1.msra.mxu0 %v2544
    %2557 = vmatprep.subr.mxu0 0.0
    %2558 = vmatpush1.msra.mxu0 0.0
    %2559 = vmatprep.subr.mxu0 0.0
    %2560 = vmatpush1.msra.mxu0 0.0
    %2561 = vmatprep.subr.mxu0 0.0
    %2562 = vmatpush1.msra.mxu0 0.0
    %2563 = vmatprep.subr.mxu0 0.0
    %2564 = vmatpush1.msra.mxu0 0.0
    %2565 = vmatprep.subr.mxu0 0.0
    %2566 = vmatpush1.msra.mxu0 0.0
    %2567 = vmatprep.subr.mxu0 0.0
    %2568 = vmatpush1.msra.mxu0 0.0
    %2569 = vmatprep.subr.mxu0 0.0
    %2570 = vmatpush1.msra.mxu0 0.0
    %2571 = vmatprep.subr.mxu0 0.0
    %2572 = vmatpush1.msra.mxu0 0.0
    %2573 = vmatprep.subr.mxu0 0.0
    %2574 = vmatpush1.msra.mxu0 0.0
    %2575 = vmatprep.subr.mxu0 0.0
    %2576 = vmatpush1.msra.mxu0 0.0
    %2577 = vmatprep.subr.mxu0 0.0
    %2578 = vmatpush1.msra.mxu0 0.0
    %2579 = vmatprep.subr.mxu0 0.0
    %2580 = vmatpush1.msra.mxu0 0.0
    %2581 = vmatprep.subr.mxu0 0.0
    %2582 = vmatpush1.msra.mxu0 0.0
    %2583 = vmatprep.subr.mxu0 0.0
    %2584 = vmatpush1.msra.mxu0 0.0
    %2585 = vmatprep.subr.mxu0 0.0
    %2586 = vmatpush1.msra.mxu0 0.0
    %2587 = vmatprep.subr.mxu0 0.0
    %2588 = vmatpush1.msra.mxu0 0.0
    %2589 = vmatprep.subr.mxu0 0.0
    %2590 = vmatpush1.msra.mxu0 0.0
    %2591 = vmatprep.subr.mxu0 0.0
    %2592 = vmatpush1.msra.mxu0 0.0
    %2593 = vmatprep.subr.mxu0 0.0
    %2594 = vmatpush1.msra.mxu0 0.0
    %2595 = vmatprep.subr.mxu0 0.0
    %2596 = vmatpush1.msra.mxu0 0.0
    %2597 = vmatprep.subr.mxu0 0.0
    %2598 = vmatpush1.msra.mxu0 0.0
    %2599 = vmatprep.subr.mxu0 0.0
    %2600 = vmatpush1.msra.mxu0 0.0
    %2601 = vmatprep.subr.mxu0 0.0
    %2602 = vmatpush1.msra.mxu0 0.0
    %2603 = vmatprep.subr.mxu0 0.0
    %2604 = vmatpush1.msra.mxu0 0.0
    %2605 = vmatprep.subr.mxu0 0.0
    %2606 = vmatpush1.msra.mxu0 0.0
    %2607 = vmatprep.subr.mxu0 0.0
    %2608 = vmatpush1.msra.mxu0 0.0
    %2609 = vmatprep.subr.mxu0 0.0
    %2610 = vmatpush1.msra.mxu0 0.0
    %2611 = vmatprep.subr.mxu0 0.0
    %2612 = vmatpush1.msra.mxu0 0.0
    %2613 = vmatprep.mubr.f32.mxu0 0.0
    %2614 = vmatmul.mubr.f32.gmra.mrb[0].mxu0 %v2535
    %v2615 = vpop.f32.mrb[0].mxu0
    %v2616 = vadd.f32 0.0, %v2615
    %v2617 = vpop.f32.mrb[0].mxu0
    %v2618 = vadd.f32 0.0, %v2617
    %2619 = vmatprep.mubr.f32.mxu0 0.0
    %2620 = vmatmul.mubr.f32.gmra.mrb[0].mxu0 %v2538
    %v2621 = vpop.f32.mrb[0].mxu0
    %v2622 = vadd.f32 0.0, %v2621
    %v2623 = vpop.f32.mrb[0].mxu0
    %v2624 = vadd.f32 0.0, %v2623
    %2625 = vmatprep.mubr.f32.mxu0 0.0
    %2626 = vmatmul.mubr.f32.gmra.mrb[0].mxu0 %v2541
    %v2627 = vpop.f32.mrb[0].mxu0
    %v2628 = vadd.f32 0.0, %v2627
    %v2629 = vpop.f32.mrb[0].mxu0
    %v2630 = vadd.f32 0.0, %v2629
    %2631 = vdwg.mxu0
    %v2632 = vadd.f32 %v2517, %v2616
    %v2633 = vadd.f32 %v2518, %v2618
    %v2634 = vadd.f32 %v2519, %v2622
    %v2635 = vadd.f32 %v2520, %v2624
    %v2636 = vadd.f32 %v2521, %v2628
    %v2637 = vadd.f32 %v2522, %v2630
    %v2638 = vld [vmem:[%s2] sm:$0x3]
    %v2640 = vlaneseq
    %v2641 = vshrl.u32 %v2640, 7
    %v2642 = vsub.s32 0, %v2641
    %v2643 = vrot.slane %v2638, %v2642
    %v2644 = vlaneseq
    %v2645 = vshrl.u32 %v2644, 7
    %v2646 = vsub.s32 1, %v2645
    %v2647 = vrot.slane %v2638, %v2646
    %v2650 = vadd.f32 %v2632, %v2643
    %v2651 = vadd.f32 %v2633, %v2647
    %v2652 = vadd.f32 %v2634, %v2643
    %v2653 = vadd.f32 %v2635, %v2647
    %v2654 = vadd.f32 %v2636, %v2643
    %v2655 = vadd.f32 %v2637, %v2647
    %v2656 = vmax.f32 %v2650, 0.0
    %v2657 = vmax.f32 %v2651, 0.0
    %v2658 = vmax.f32 %v2652, 0.0
    %v2659 = vmax.f32 %v2653, 0.0
    %v2660 = vmax.f32 %v2654, 0.0
    %v2661 = vmax.f32 %v2655, 0.0
    %v2664 = vrot.slane %v2656, 1
    %v2665 = vrot.slane %v2657, 1
    %v2668 = vmax.f32 %v2656, %v2664
    %v2669 = vmax.f32 %v2657, %v2665
    %v2672 = vcombine.low %v2668, %v2669
    %v2674 = vunpack.c.l.s4 1966171168
    %v2675 = vunpack.c.0.s8 %v2674
    %v2676 = vlaneseq
    %v2677 = vshrl.u32 %v2676, 7
    %v2678 = vsub.s32 %v2675, %v2677
    %v2679 = vrot.slane %v2672, %v2678
    %v2681 = vunpack.c.l.s4 1966171168
    %v2682 = vunpack.c.0.s8 %v2681
    %v2683 = vlaneseq
    %v2684 = vshrl.u32 %v2683, 7
    %v2685 = vsub.s32 %v2682, %v2684
    %v2686 = vrot.slane %v2679, %v2685
    %2688 = vst.msk [vmem:[#allocation4] ss:$8 sm:$0x3] %vm672, %v2686
    %2689 = vst.msk [vmem:[#allocation4] ss:$8 sm:$0x0] %vm672, %v2686
    %v2690 = vcombine.high %v2686, %v2686
    %2692 = vst.msk [vmem:[%s677] ss:$8 sm:$0x3] %vm672, %v2690
    %2693 = vst.msk [vmem:[%s677] ss:$8 sm:$0x0] %vm672, %v2690
    %v2694 = vcombine.high %v2668, %v2669
    %v2696 = vunpack.c.l.s4 1966171168
    %v2697 = vunpack.c.0.s8 %v2696
    %v2698 = vlaneseq
    %v2699 = vshrl.u32 %v2698, 7
    %v2700 = vsub.s32 %v2697, %v2699
    %v2701 = vrot.slane %v2694, %v2700
    %v2703 = vunpack.c.l.s4 1966171168
    %v2704 = vunpack.c.0.s8 %v2703
    %v2705 = vlaneseq
    %v2706 = vshrl.u32 %v2705, 7
    %v2707 = vsub.s32 %v2704, %v2706
    %v2708 = vrot.slane %v2701, %v2707
    %2710 = vst.msk [vmem:[%s696] ss:$8 sm:$0x3] %vm672, %v2708
    %2711 = vst.msk [vmem:[%s696] ss:$8 sm:$0x0] %vm672, %v2708
    %v2712 = vcombine.high %v2708, %v2708
    %2714 = vst.msk [vmem:[%s701] ss:$8 sm:$0x3] %vm672, %v2712
    %2715 = vst.msk [vmem:[%s701] ss:$8 sm:$0x0] %vm672, %v2712
    %v2718 = vrot.slane %v2658, 1
    %v2719 = vrot.slane %v2659, 1
    %v2722 = vmax.f32 %v2658, %v2718
    %v2723 = vmax.f32 %v2659, %v2719
    %v2726 = vcombine.low %v2722, %v2723
    %v2728 = vunpack.c.l.s4 1966171168
    %v2729 = vunpack.c.0.s8 %v2728
    %v2730 = vlaneseq
    %v2731 = vshrl.u32 %v2730, 7
    %v2732 = vsub.s32 %v2729, %v2731
    %v2733 = vrot.slane %v2726, %v2732
    %v2735 = vunpack.c.l.s4 1966171168
    %v2736 = vunpack.c.0.s8 %v2735
    %v2737 = vlaneseq
    %v2738 = vshrl.u32 %v2737, 7
    %v2739 = vsub.s32 %v2736, %v2738
    %v2740 = vrot.slane %v2733, %v2739
    %2742 = vst.msk [vmem:[%s730] ss:$8 sm:$0x3] %vm672, %v2740
    %2743 = vst.msk [vmem:[%s730] ss:$8 sm:$0x0] %vm672, %v2740
    %v2744 = vcombine.high %v2740, %v2740
    %2746 = vst.msk [vmem:[%s735] ss:$8 sm:$0x3] %vm672, %v2744
    %2747 = vst.msk [vmem:[%s735] ss:$8 sm:$0x0] %vm672, %v2744
    %v2748 = vcombine.high %v2722, %v2723
    %v2750 = vunpack.c.l.s4 1966171168
    %v2751 = vunpack.c.0.s8 %v2750
    %v2752 = vlaneseq
    %v2753 = vshrl.u32 %v2752, 7
    %v2754 = vsub.s32 %v2751, %v2753
    %v2755 = vrot.slane %v2748, %v2754
    %v2757 = vunpack.c.l.s4 1966171168
    %v2758 = vunpack.c.0.s8 %v2757
    %v2759 = vlaneseq
    %v2760 = vshrl.u32 %v2759, 7
    %v2761 = vsub.s32 %v2758, %v2760
    %v2762 = vrot.slane %v2755, %v2761
    %2764 = vst.msk [vmem:[%s754] ss:$8 sm:$0x3] %vm672, %v2762
    %2765 = vst.msk [vmem:[%s754] ss:$8 sm:$0x0] %vm672, %v2762
    %v2766 = vcombine.high %v2762, %v2762
    %2768 = vst.msk [vmem:[%s759] ss:$8 sm:$0x3] %vm672, %v2766
    %2769 = vst.msk [vmem:[%s759] ss:$8 sm:$0x0] %vm672, %v2766
    %v2772 = vrot.slane %v2660, 1
    %v2773 = vrot.slane %v2661, 1
    %v2776 = vmax.f32 %v2660, %v2772
    %v2777 = vmax.f32 %v2661, %v2773
    %v2780 = vcombine.low %v2776, %v2777
    %v2782 = vunpack.c.l.s4 1966171168
    %v2783 = vunpack.c.0.s8 %v2782
    %v2784 = vlaneseq
    %v2785 = vshrl.u32 %v2784, 7
    %v2786 = vsub.s32 %v2783, %v2785
    %v2787 = vrot.slane %v2780, %v2786
    %v2789 = vunpack.c.l.s4 1966171168
    %v2790 = vunpack.c.0.s8 %v2789
    %v2791 = vlaneseq
    %v2792 = vshrl.u32 %v2791, 7
    %v2793 = vsub.s32 %v2790, %v2792
    %v2794 = vrot.slane %v2787, %v2793
    %2796 = vst.msk [vmem:[%s788] ss:$8 sm:$0x3] %vm672, %v2794
    %2797 = vst.msk [vmem:[%s788] ss:$8 sm:$0x0] %vm672, %v2794
    %v2798 = vcombine.high %v2794, %v2794
    %2800 = vst.msk [vmem:[%s793] ss:$8 sm:$0x3] %vm672, %v2798
    %2801 = vst.msk [vmem:[%s793] ss:$8 sm:$0x0] %vm672, %v2798
    %v2802 = vcombine.high %v2776, %v2777
    %v2804 = vunpack.c.l.s4 1966171168
    %v2805 = vunpack.c.0.s8 %v2804
    %v2806 = vlaneseq
    %v2807 = vshrl.u32 %v2806, 7
    %v2808 = vsub.s32 %v2805, %v2807
    %v2809 = vrot.slane %v2802, %v2808
    %v2811 = vunpack.c.l.s4 1966171168
    %v2812 = vunpack.c.0.s8 %v2811
    %v2813 = vlaneseq
    %v2814 = vshrl.u32 %v2813, 7
    %v2815 = vsub.s32 %v2812, %v2814
    %v2816 = vrot.slane %v2809, %v2815
    %2818 = vst.msk [vmem:[%s812] ss:$8 sm:$0x3] %vm672, %v2816
    %2819 = vst.msk [vmem:[%s812] ss:$8 sm:$0x0] %vm672, %v2816
    %v2820 = vcombine.high %v2816, %v2816
    %2822 = vst.msk [vmem:[%s817] ss:$8 sm:$0x3] %vm672, %v2820
    %2823 = vst.msk [vmem:[%s817] ss:$8 sm:$0x0] %vm672, %v2820
    %v2824 = vld [vmem:[#allocation4] sm:$0xff]
    %v2825 = vld [vmem:[#allocation4 + $0x10] sm:$0xf]
    %2828 = vrot.lane.b32.xlu0 %v2824, 120
    %v2829 = vpop.permute.xlu0 %2828
    %2830 = vrot.lane.b32.xlu0 %v2825, 120
    %v2831 = vpop.permute.xlu0 %2830
    %v2834 = vmax.f32 %v2824, %v2829
    %v2835 = vmax.f32 %v2825, %v2831
    %2838 = vrot.lane.b32.xlu0 %v2834, 8
    %v2839 = vpop.permute.xlu0 %2838
    %2840 = vrot.lane.b32.xlu0 %v2835, 8
    %v2841 = vpop.permute.xlu0 %2840
    %2844 = vst.msk [vmem:[#allocation2 + $0x1] sm:$0xff] %vm840, %v2839
    %2845 = vst.msk [vmem:[#allocation2 + $0x9] sm:$0xf] %vm842, %v2841
    %v2846 = vld [vmem:[#allocation4] sm:$0xff]
    %v2847 = vld [vmem:[#allocation4 + $0x10] sm:$0xf]
    %2850 = vrot.lane.b32.xlu0 %v2846, 120
    %v2851 = vpop.permute.xlu0 %2850
    %2852 = vrot.lane.b32.xlu0 %v2847, 120
    %v2853 = vpop.permute.xlu0 %2852
    %v2856 = vmax.f32 %v2846, %v2851
    %v2857 = vmax.f32 %v2847, %v2853
    %2858 = vst.msk [vmem:[#allocation2 + $0x1] sm:$0xff] %vm856, %v2856
    %2859 = vst.msk [vmem:[#allocation2 + $0x9] sm:$0xf] %vm858, %v2857
    %v2860 = vld [vmem:[#allocation4] sm:$0xff]
    %v2861 = vld [vmem:[#allocation4 + $0x10] sm:$0xf]
    %2864 = vrot.lane.b32.xlu0 %v2860, 120
    %v2865 = vpop.permute.xlu0 %2864
    %2866 = vrot.lane.b32.xlu0 %v2861, 120
    %v2867 = vpop.permute.xlu0 %2866
    %v2870 = vmax.f32 %v2860, %v2865
    %v2871 = vmax.f32 %v2861, %v2867
    %2874 = vrot.lane.b32.xlu0 %v2870, 120
    %v2875 = vpop.permute.xlu0 %2874
    %2876 = vrot.lane.b32.xlu0 %v2871, 120
    %v2877 = vpop.permute.xlu0 %2876
    %2880 = vst.msk [vmem:[#allocation2 + $0x1] sm:$0xff] %vm880, %v2875
    %2881 = vst.msk [vmem:[#allocation2 + $0x9] sm:$0xf] %vm882, %v2877
    %v2882 = vld [vmem:[#allocation4] sm:$0xff]
    %v2883 = vld [vmem:[#allocation4 + $0x10] sm:$0xf]
    %2886 = vrot.lane.b32.xlu0 %v2882, 120
    %v2887 = vpop.permute.xlu0 %2886
    %2888 = vrot.lane.b32.xlu0 %v2883, 120
    %v2889 = vpop.permute.xlu0 %2888
    %v2892 = vmax.f32 %v2882, %v2887
    %v2893 = vmax.f32 %v2883, %v2889
    %2896 = vrot.lane.b32.xlu0 %v2892, 112
    %v2897 = vpop.permute.xlu0 %2896
    %2898 = vrot.lane.b32.xlu0 %v2893, 112
    %v2899 = vpop.permute.xlu0 %2898
    %2902 = vst.msk [vmem:[#allocation2 + $0x1] sm:$0xff] %vm904, %v2897
    %2903 = vst.msk [vmem:[#allocation2 + $0x9] sm:$0xf] %vm906, %v2899
    %v2904 = vld [vmem:[#allocation4] sm:$0xff]
    %v2905 = vld [vmem:[#allocation4 + $0x10] sm:$0xf]
    %2908 = vrot.lane.b32.xlu0 %v2904, 120
    %v2909 = vpop.permute.xlu0 %2908
    %2910 = vrot.lane.b32.xlu0 %v2905, 120
    %v2911 = vpop.permute.xlu0 %2910
    %v2914 = vmax.f32 %v2904, %v2909
    %v2915 = vmax.f32 %v2905, %v2911
    %2918 = vrot.lane.b32.xlu0 %v2914, 104
    %v2919 = vpop.permute.xlu0 %2918
    %2920 = vrot.lane.b32.xlu0 %v2915, 104
    %v2921 = vpop.permute.xlu0 %2920
    %2924 = vst.msk [vmem:[#allocation2 + $0x1] sm:$0xff] %vm928, %v2919
    %2925 = vst.msk [vmem:[#allocation2 + $0x9] sm:$0xf] %vm930, %v2921
    %v2926 = vld [vmem:[#allocation4] sm:$0xff]
    %v2927 = vld [vmem:[#allocation4 + $0x10] sm:$0xf]
    %2930 = vrot.lane.b32.xlu0 %v2926, 120
    %v2931 = vpop.permute.xlu0 %2930
    %2932 = vrot.lane.b32.xlu0 %v2927, 120
    %v2933 = vpop.permute.xlu0 %2932
    %v2936 = vmax.f32 %v2926, %v2931
    %v2937 = vmax.f32 %v2927, %v2933
    %2940 = vrot.lane.b32.xlu0 %v2936, 96
    %v2941 = vpop.permute.xlu0 %2940
    %2942 = vrot.lane.b32.xlu0 %v2937, 96
    %v2943 = vpop.permute.xlu0 %2942
    %2946 = vst.msk [vmem:[#allocation2 + $0x1] sm:$0xff] %vm952, %v2941
    %2947 = vst.msk [vmem:[#allocation2 + $0x9] sm:$0xf] %vm954, %v2943
    %v2948 = vld [vmem:[#allocation4] sm:$0xff]
    %v2949 = vld [vmem:[#allocation4 + $0x10] sm:$0xf]
    %2952 = vrot.lane.b32.xlu0 %v2948, 120
    %v2953 = vpop.permute.xlu0 %2952
    %2954 = vrot.lane.b32.xlu0 %v2949, 120
    %v2955 = vpop.permute.xlu0 %2954
    %v2958 = vmax.f32 %v2948, %v2953
    %v2959 = vmax.f32 %v2949, %v2955
    %2962 = vrot.lane.b32.xlu0 %v2958, 88
    %v2963 = vpop.permute.xlu0 %2962
    %2964 = vrot.lane.b32.xlu0 %v2959, 88
    %v2965 = vpop.permute.xlu0 %2964
    %2968 = vst.msk [vmem:[#allocation2 + $0x1] sm:$0xff] %vm976, %v2963
    %2969 = vst.msk [vmem:[#allocation2 + $0x9] sm:$0xf] %vm978, %v2965
    %v2970 = vld [vmem:[#allocation4] sm:$0xff]
    %v2971 = vld [vmem:[#allocation4 + $0x10] sm:$0xf]
    %2974 = vrot.lane.b32.xlu0 %v2970, 120
    %v2975 = vpop.permute.xlu0 %2974
    %2976 = vrot.lane.b32.xlu0 %v2971, 120
    %v2977 = vpop.permute.xlu0 %2976
    %v2980 = vmax.f32 %v2970, %v2975
    %v2981 = vmax.f32 %v2971, %v2977
    %2984 = vrot.lane.b32.xlu0 %v2980, 80
    %v2985 = vpop.permute.xlu0 %2984
    %2986 = vrot.lane.b32.xlu0 %v2981, 80
    %v2987 = vpop.permute.xlu0 %2986
    %2990 = vst.msk [vmem:[#allocation2 + $0x1] sm:$0xff] %vm1000, %v2985
    %2991 = vst.msk [vmem:[#allocation2 + $0x9] sm:$0xf] %vm1002, %v2987
    %v2992 = vld [vmem:[#allocation4 + $0x8] sm:$0xff]
    %v2993 = vld [vmem:[#allocation4 + $0x18] sm:$0xf]
    %2996 = vrot.lane.b32.xlu0 %v2992, 120
    %v2997 = vpop.permute.xlu0 %2996
    %2998 = vrot.lane.b32.xlu0 %v2993, 120
    %v2999 = vpop.permute.xlu0 %2998
    %v3002 = vmax.f32 %v2992, %v2997
    %v3003 = vmax.f32 %v2993, %v2999
    %3006 = vrot.lane.b32.xlu0 %v3002, 72
    %v3007 = vpop.permute.xlu0 %3006
    %3008 = vrot.lane.b32.xlu0 %v3003, 72
    %v3009 = vpop.permute.xlu0 %3008
    %3012 = vst.msk [vmem:[#allocation2 + $0x1] sm:$0xff] %vm1024, %v3007
    %3013 = vst.msk [vmem:[#allocation2 + $0x9] sm:$0xf] %vm1026, %v3009
    %v3014 = vld [vmem:[#allocation4 + $0x8] sm:$0xff]
    %v3015 = vld [vmem:[#allocation4 + $0x18] sm:$0xf]
    %3018 = vrot.lane.b32.xlu0 %v3014, 120
    %v3019 = vpop.permute.xlu0 %3018
    %3020 = vrot.lane.b32.xlu0 %v3015, 120
    %v3021 = vpop.permute.xlu0 %3020
    %v3024 = vmax.f32 %v3014, %v3019
    %v3025 = vmax.f32 %v3015, %v3021
    %3028 = vrot.lane.b32.xlu0 %v3024, 64
    %v3029 = vpop.permute.xlu0 %3028
    %3030 = vrot.lane.b32.xlu0 %v3025, 64
    %v3031 = vpop.permute.xlu0 %3030
    %3034 = vst.msk [vmem:[#allocation2 + $0x1] sm:$0xff] %vm1048, %v3029
    %3035 = vst.msk [vmem:[#allocation2 + $0x9] sm:$0xf] %vm1050, %v3031
    %v3036 = vld [vmem:[#allocation4 + $0x8] sm:$0xff]
    %v3037 = vld [vmem:[#allocation4 + $0x18] sm:$0xf]
    %3040 = vrot.lane.b32.xlu0 %v3036, 120
    %v3041 = vpop.permute.xlu0 %3040
    %3042 = vrot.lane.b32.xlu0 %v3037, 120
    %v3043 = vpop.permute.xlu0 %3042
    %v3046 = vmax.f32 %v3036, %v3041
    %v3047 = vmax.f32 %v3037, %v3043
    %3050 = vrot.lane.b32.xlu0 %v3046, 56
    %v3051 = vpop.permute.xlu0 %3050
    %3052 = vrot.lane.b32.xlu0 %v3047, 56
    %v3053 = vpop.permute.xlu0 %3052
    %3056 = vst.msk [vmem:[#allocation2 + $0x1] sm:$0xff] %vm1072, %v3051
    %3057 = vst.msk [vmem:[#allocation2 + $0x9] sm:$0xf] %vm1074, %v3053
    %v3058 = vld [vmem:[#allocation4 + $0x8] sm:$0xff]
    %v3059 = vld [vmem:[#allocation4 + $0x18] sm:$0xf]
    %3062 = vrot.lane.b32.xlu0 %v3058, 120
    %v3063 = vpop.permute.xlu0 %3062
    %3064 = vrot.lane.b32.xlu0 %v3059, 120
    %v3065 = vpop.permute.xlu0 %3064
    %v3068 = vmax.f32 %v3058, %v3063
    %v3069 = vmax.f32 %v3059, %v3065
    %3072 = vrot.lane.b32.xlu0 %v3068, 48
    %v3073 = vpop.permute.xlu0 %3072
    %3074 = vrot.lane.b32.xlu0 %v3069, 48
    %v3075 = vpop.permute.xlu0 %3074
    %3078 = vst.msk [vmem:[#allocation2 + $0x1] sm:$0xff] %vm1096, %v3073
    %3079 = vst.msk [vmem:[#allocation2 + $0x9] sm:$0xf] %vm1098, %v3075
    %v3080 = vld [vmem:[#allocation2] sm:$0xff]
    %v3081 = vld [vmem:[#allocation2 + $0x8] sm:$0xf]
    %v3082 = vld [vmem:[%s3] sm:$0xff]
    %v3083 = vld [vmem:[%s3 + $0x8] sm:$0xff]
    %v3084 = vld [vmem:[%s3 + $0x10] sm:$0xff]
    %v3085 = vld [vmem:[%s3 + $0x18] sm:$0xff]
    %v3086 = vld [vmem:[%s3 + $0x20] sm:$0xff]
    %v3087 = vld [vmem:[%s3 + $0x28] sm:$0xff]
    %v3088 = vld [vmem:[%s3 + $0x30] sm:$0xff]
    %v3089 = vld [vmem:[%s3 + $0x38] sm:$0xff]
    %v3090 = vld [vmem:[%s3 + $0x40] sm:$0xff]
    %v3091 = vld [vmem:[%s3 + $0x48] sm:$0xff]
    %v3092 = vld [vmem:[%s3 + $0x50] sm:$0xff]
    %v3093 = vld [vmem:[%s3 + $0x58] sm:$0xff]
    %v3094 = vld [vmem:[%s3 + $0x60] sm:$0xff]
    %v3095 = vld [vmem:[%s3 + $0x68] sm:$0xff]
    %v3096 = vld [vmem:[%s3 + $0x70] sm:$0xff]
    %v3097 = vld [vmem:[%s3 + $0x78] sm:$0xff]
    %v3098 = vld [vmem:[%s3 + $0x80] sm:$0xff]
    %v3099 = vld [vmem:[%s3 + $0x88] sm:$0xff]
    %v3100 = vld [vmem:[%s3 + $0x90] sm:$0xff]
    %v3101 = vld [vmem:[%s3 + $0x98] sm:$0xff]
    %v3102 = vld [vmem:[%s3 + $0xa0] sm:$0xff]
    %v3103 = vld [vmem:[%s3 + $0xa8] sm:$0xff]
    %v3104 = vld [vmem:[%s3 + $0xb0] sm:$0xff]
    %v3105 = vld [vmem:[%s3 + $0xb8] sm:$0xff]
    %v3106 = vld [vmem:[%s3 + $0xc0] sm:$0xff]
    %v3107 = vld [vmem:[%s3 + $0xc8] sm:$0xff]
    %v3108 = vld [vmem:[%s3 + $0xd0] sm:$0xff]
    %v3109 = vld [vmem:[%s3 + $0xd8] sm:$0xff]
    %v3110 = vld [vmem:[#allocation2 + $0x1] sm:$0xff]
    %v3111 = vld [vmem:[#allocation2 + $0x9] sm:$0xf]
    %v3112 = vld [vmem:[%s1132] sm:$0xff]
    %v3113 = vld [vmem:[%s1132 + $0x8] sm:$0xff]
    %v3114 = vld [vmem:[%s1132 + $0x10] sm:$0xff]
    %v3115 = vld [vmem:[%s1132 + $0x18] sm:$0xff]
    %v3116 = vld [vmem:[%s1132 + $0x20] sm:$0xff]
    %v3117 = vld [vmem:[%s1132 + $0x28] sm:$0xff]
    %v3118 = vld [vmem:[%s1132 + $0x30] sm:$0xff]
    %v3119 = vld [vmem:[%s1132 + $0x38] sm:$0xff]
    %v3120 = vld [vmem:[%s1132 + $0x40] sm:$0xff]
    %v3121 = vld [vmem:[%s1132 + $0x48] sm:$0xff]
    %v3122 = vld [vmem:[%s1132 + $0x50] sm:$0xff]
    %v3123 = vld [vmem:[%s1132 + $0x58] sm:$0xff]
    %v3124 = vld [vmem:[%s1132 + $0x60] sm:$0xff]
    %v3125 = vld [vmem:[%s1132 + $0x68] sm:$0xff]
    %v3126 = vld [vmem:[%s1132 + $0x70] sm:$0xff]
    %v3127 = vld [vmem:[%s1132 + $0x78] sm:$0xff]
    %v3128 = vld [vmem:[%s1132 + $0x80] sm:$0xff]
    %v3129 = vld [vmem:[%s1132 + $0x88] sm:$0xff]
    %v3130 = vld [vmem:[%s1132 + $0x90] sm:$0xff]
    %v3131 = vld [vmem:[%s1132 + $0x98] sm:$0xff]
    %v3132 = vld [vmem:[%s1132 + $0xa0] sm:$0xff]
    %v3133 = vld [vmem:[%s1132 + $0xa8] sm:$0xff]
    %v3134 = vld [vmem:[%s1132 + $0xb0] sm:$0xff]
    %v3135 = vld [vmem:[%s1132 + $0xb8] sm:$0xff]
    %v3136 = vld [vmem:[%s1132 + $0xc0] sm:$0xff]
    %v3137 = vld [vmem:[%s1132 + $0xc8] sm:$0xff]
    %v3138 = vld [vmem:[%s1132 + $0xd0] sm:$0xff]
    %v3139 = vld [vmem:[%s1132 + $0xd8] sm:$0xff]
    %v3141 = vsel %vm45, %v3110, 0
    %v3144 = vsel %vm45, %v3111, 0
    %3146 = vmatprep.subr.mxu0 %v3113
    %3147 = vmatpush1.msra.mxu0 %v3112
    %3148 = vmatprep.subr.mxu0 %v3115
    %3149 = vmatpush1.msra.mxu0 %v3114
    %3150 = vmatprep.subr.mxu0 %v3117
    %3151 = vmatpush1.msra.mxu0 %v3116
    %3152 = vmatprep.subr.mxu0 %v3119
    %3153 = vmatpush1.msra.mxu0 %v3118
    %3154 = vmatprep.subr.mxu0 %v3121
    %3155 = vmatpush1.msra.mxu0 %v3120
    %3156 = vmatprep.subr.mxu0 %v3123
    %3157 = vmatpush1.msra.mxu0 %v3122
    %3158 = vmatprep.subr.mxu0 %v3125
    %3159 = vmatpush1.msra.mxu0 %v3124
    %3160 = vmatprep.subr.mxu0 %v3127
    %3161 = vmatpush1.msra.mxu0 %v3126
    %3162 = vmatprep.subr.mxu0 %v3129
    %3163 = vmatpush1.msra.mxu0 %v3128
    %3164 = vmatprep.subr.mxu0 %v3131
    %3165 = vmatpush1.msra.mxu0 %v3130
    %3166 = vmatprep.subr.mxu0 %v3133
    %3167 = vmatpush1.msra.mxu0 %v3132
    %3168 = vmatprep.subr.mxu0 %v3135
    %3169 = vmatpush1.msra.mxu0 %v3134
    %3170 = vmatprep.subr.mxu0 %v3137
    %3171 = vmatpush1.msra.mxu0 %v3136
    %3172 = vmatprep.subr.mxu0 %v3139
    %3173 = vmatpush1.msra.mxu0 %v3138
    %3174 = vmatprep.subr.mxu0 0.0
    %3175 = vmatpush1.msra.mxu0 0.0
    %3176 = vmatprep.subr.mxu0 0.0
    %3177 = vmatpush1.msra.mxu0 0.0
    %3178 = vmatprep.subr.mxu0 0.0
    %3179 = vmatpush1.msra.mxu0 0.0
    %3180 = vmatprep.subr.mxu0 0.0
    %3181 = vmatpush1.msra.mxu0 0.0
    %3182 = vmatprep.subr.mxu0 0.0
    %3183 = vmatpush1.msra.mxu0 0.0
    %3184 = vmatprep.subr.mxu0 0.0
    %3185 = vmatpush1.msra.mxu0 0.0
    %3186 = vmatprep.subr.mxu0 0.0
    %3187 = vmatpush1.msra.mxu0 0.0
    %3188 = vmatprep.subr.mxu0 0.0
    %3189 = vmatpush1.msra.mxu0 0.0
    %3190 = vmatprep.subr.mxu0 0.0
    %3191 = vmatpush1.msra.mxu0 0.0
    %3192 = vmatprep.subr.mxu0 0.0
    %3193 = vmatpush1.msra.mxu0 0.0
    %3194 = vmatprep.subr.mxu0 0.0
    %3195 = vmatpush1.msra.mxu0 0.0
    %3196 = vmatprep.subr.mxu0 0.0
    %3197 = vmatpush1.msra.mxu0 0.0
    %3198 = vmatprep.subr.mxu0 0.0
    %3199 = vmatpush1.msra.mxu0 0.0
    %3200 = vmatprep.subr.mxu0 0.0
    %3201 = vmatpush1.msra.mxu0 0.0
    %3202 = vmatprep.subr.mxu0 0.0
    %3203 = vmatpush1.msra.mxu0 0.0
    %3204 = vmatprep.subr.mxu0 0.0
    %3205 = vmatpush1.msra.mxu0 0.0
    %3206 = vmatprep.subr.mxu0 0.0
    %3207 = vmatpush1.msra.mxu0 0.0
    %3208 = vmatprep.subr.mxu0 0.0
    %3209 = vmatpush1.msra.mxu0 0.0
    %3210 = vmatprep.mubr.f32.mxu0 0.0
    %3211 = vmatmul.mubr.f32.gmra.mrb[0].mxu0 %v3141
    %v3212 = vpop.f32.mrb[0].mxu0
    %v3213 = vadd.f32 0.0, %v3212
    %v3214 = vpop.f32.mrb[0].mxu0
    %v3215 = vadd.f32 0.0, %v3214
    %3216 = vmatprep.mubr.f32.mxu0 0.0
    %3217 = vmatmul.mubr.f32.gmra.mrb[0].mxu0 %v3144
    %v3218 = vpop.f32.mrb[0].mxu0
    %v3219 = vadd.f32 0.0, %v3218
    %v3220 = vpop.f32.mrb[0].mxu0
    %v3221 = vadd.f32 0.0, %v3220
    %3222 = vdwg.mxu0
    %v3224 = vsel %vm45, %v3080, 0
    %v3227 = vsel %vm45, %v3081, 0
    %3229 = vmatprep.subr.mxu0 %v3083
    %3230 = vmatpush1.msra.mxu0 %v3082
    %3231 = vmatprep.subr.mxu0 %v3085
    %3232 = vmatpush1.msra.mxu0 %v3084
    %3233 = vmatprep.subr.mxu0 %v3087
    %3234 = vmatpush1.msra.mxu0 %v3086
    %3235 = vmatprep.subr.mxu0 %v3089
    %3236 = vmatpush1.msra.mxu0 %v3088
    %3237 = vmatprep.subr.mxu0 %v3091
    %3238 = vmatpush1.msra.mxu0 %v3090
    %3239 = vmatprep.subr.mxu0 %v3093
    %3240 = vmatpush1.msra.mxu0 %v3092
    %3241 = vmatprep.subr.mxu0 %v3095
    %3242 = vmatpush1.msra.mxu0 %v3094
    %3243 = vmatprep.subr.mxu0 %v3097
    %3244 = vmatpush1.msra.mxu0 %v3096
    %3245 = vmatprep.subr.mxu0 %v3099
    %3246 = vmatpush1.msra.mxu0 %v3098
    %3247 = vmatprep.subr.mxu0 %v3101
    %3248 = vmatpush1.msra.mxu0 %v3100
    %3249 = vmatprep.subr.mxu0 %v3103
    %3250 = vmatpush1.msra.mxu0 %v3102
    %3251 = vmatprep.subr.mxu0 %v3105
    %3252 = vmatpush1.msra.mxu0 %v3104
    %3253 = vmatprep.subr.mxu0 %v3107
    %3254 = vmatpush1.msra.mxu0 %v3106
    %3255 = vmatprep.subr.mxu0 %v3109
    %3256 = vmatpush1.msra.mxu0 %v3108
    %3257 = vmatprep.subr.mxu0 0.0
    %3258 = vmatpush1.msra.mxu0 0.0
    %3259 = vmatprep.subr.mxu0 0.0
    %3260 = vmatpush1.msra.mxu0 0.0
    %3261 = vmatprep.subr.mxu0 0.0
    %3262 = vmatpush1.msra.mxu0 0.0
    %3263 = vmatprep.subr.mxu0 0.0
    %3264 = vmatpush1.msra.mxu0 0.0
    %3265 = vmatprep.subr.mxu0 0.0
    %3266 = vmatpush1.msra.mxu0 0.0
    %3267 = vmatprep.subr.mxu0 0.0
    %3268 = vmatpush1.msra.mxu0 0.0
    %3269 = vmatprep.subr.mxu0 0.0
    %3270 = vmatpush1.msra.mxu0 0.0
    %3271 = vmatprep.subr.mxu0 0.0
    %3272 = vmatpush1.msra.mxu0 0.0
    %3273 = vmatprep.subr.mxu0 0.0
    %3274 = vmatpush1.msra.mxu0 0.0
    %3275 = vmatprep.subr.mxu0 0.0
    %3276 = vmatpush1.msra.mxu0 0.0
    %3277 = vmatprep.subr.mxu0 0.0
    %3278 = vmatpush1.msra.mxu0 0.0
    %3279 = vmatprep.subr.mxu0 0.0
    %3280 = vmatpush1.msra.mxu0 0.0
    %3281 = vmatprep.subr.mxu0 0.0
    %3282 = vmatpush1.msra.mxu0 0.0
    %3283 = vmatprep.subr.mxu0 0.0
    %3284 = vmatpush1.msra.mxu0 0.0
    %3285 = vmatprep.subr.mxu0 0.0
    %3286 = vmatpush1.msra.mxu0 0.0
    %3287 = vmatprep.subr.mxu0 0.0
    %3288 = vmatpush1.msra.mxu0 0.0
    %3289 = vmatprep.subr.mxu0 0.0
    %3290 = vmatpush1.msra.mxu0 0.0
    %3291 = vmatprep.subr.mxu0 0.0
    %3292 = vmatpush1.msra.mxu0 0.0
    %3293 = vmatprep.mubr.f32.mxu0 0.0
    %3294 = vmatmul.mubr.f32.gmra.mrb[0].mxu0 %v3224
    %v3295 = vpop.f32.mrb[0].mxu0
    %v3296 = vadd.f32 %v3213, %v3295
    %v3297 = vpop.f32.mrb[0].mxu0
    %v3298 = vadd.f32 %v3215, %v3297
    %3299 = vmatprep.mubr.f32.mxu0 0.0
    %3300 = vmatmul.mubr.f32.gmra.mrb[0].mxu0 %v3227
    %v3301 = vpop.f32.mrb[0].mxu0
    %v3302 = vadd.f32 %v3219, %v3301
    %v3303 = vpop.f32.mrb[0].mxu0
    %v3304 = vadd.f32 %v3221, %v3303
    %3305 = vdwg.mxu0
    %v3306 = vld [vmem:[#allocation2 + $0x2] sm:$0xff]
    %v3307 = vld [vmem:[#allocation2 + $0xa] sm:$0xf]
    %v3308 = vld [vmem:[%s1329] sm:$0xff]
    %v3309 = vld [vmem:[%s1329 + $0x8] sm:$0xff]
    %v3310 = vld [vmem:[%s1329 + $0x10] sm:$0xff]
    %v3311 = vld [vmem:[%s1329 + $0x18] sm:$0xff]
    %v3312 = vld [vmem:[%s1329 + $0x20] sm:$0xff]
    %v3313 = vld [vmem:[%s1329 + $0x28] sm:$0xff]
    %v3314 = vld [vmem:[%s1329 + $0x30] sm:$0xff]
    %v3315 = vld [vmem:[%s1329 + $0x38] sm:$0xff]
    %v3316 = vld [vmem:[%s1329 + $0x40] sm:$0xff]
    %v3317 = vld [vmem:[%s1329 + $0x48] sm:$0xff]
    %v3318 = vld [vmem:[%s1329 + $0x50] sm:$0xff]
    %v3319 = vld [vmem:[%s1329 + $0x58] sm:$0xff]
    %v3320 = vld [vmem:[%s1329 + $0x60] sm:$0xff]
    %v3321 = vld [vmem:[%s1329 + $0x68] sm:$0xff]
    %v3322 = vld [vmem:[%s1329 + $0x70] sm:$0xff]
    %v3323 = vld [vmem:[%s1329 + $0x78] sm:$0xff]
    %v3324 = vld [vmem:[%s1329 + $0x80] sm:$0xff]
    %v3325 = vld [vmem:[%s1329 + $0x88] sm:$0xff]
    %v3326 = vld [vmem:[%s1329 + $0x90] sm:$0xff]
    %v3327 = vld [vmem:[%s1329 + $0x98] sm:$0xff]
    %v3328 = vld [vmem:[%s1329 + $0xa0] sm:$0xff]
    %v3329 = vld [vmem:[%s1329 + $0xa8] sm:$0xff]
    %v3330 = vld [vmem:[%s1329 + $0xb0] sm:$0xff]
    %v3331 = vld [vmem:[%s1329 + $0xb8] sm:$0xff]
    %v3332 = vld [vmem:[%s1329 + $0xc0] sm:$0xff]
    %v3333 = vld [vmem:[%s1329 + $0xc8] sm:$0xff]
    %v3334 = vld [vmem:[%s1329 + $0xd0] sm:$0xff]
    %v3335 = vld [vmem:[%s1329 + $0xd8] sm:$0xff]
    %v3337 = vsel %vm45, %v3306, 0
    %v3340 = vsel %vm45, %v3307, 0
    %3342 = vmatprep.subr.mxu0 %v3309
    %3343 = vmatpush1.msra.mxu0 %v3308
    %3344 = vmatprep.subr.mxu0 %v3311
    %3345 = vmatpush1.msra.mxu0 %v3310
    %3346 = vmatprep.subr.mxu0 %v3313
    %3347 = vmatpush1.msra.mxu0 %v3312
    %3348 = vmatprep.subr.mxu0 %v3315
    %3349 = vmatpush1.msra.mxu0 %v3314
    %3350 = vmatprep.subr.mxu0 %v3317
    %3351 = vmatpush1.msra.mxu0 %v3316
    %3352 = vmatprep.subr.mxu0 %v3319
    %3353 = vmatpush1.msra.mxu0 %v3318
    %3354 = vmatprep.subr.mxu0 %v3321
    %3355 = vmatpush1.msra.mxu0 %v3320
    %3356 = vmatprep.subr.mxu0 %v3323
    %3357 = vmatpush1.msra.mxu0 %v3322
    %3358 = vmatprep.subr.mxu0 %v3325
    %3359 = vmatpush1.msra.mxu0 %v3324
    %3360 = vmatprep.subr.mxu0 %v3327
    %3361 = vmatpush1.msra.mxu0 %v3326
    %3362 = vmatprep.subr.mxu0 %v3329
    %3363 = vmatpush1.msra.mxu0 %v3328
    %3364 = vmatprep.subr.mxu0 %v3331
    %3365 = vmatpush1.msra.mxu0 %v3330
    %3366 = vmatprep.subr.mxu0 %v3333
    %3367 = vmatpush1.msra.mxu0 %v3332
    %3368 = vmatprep.subr.mxu0 %v3335
    %3369 = vmatpush1.msra.mxu0 %v3334
    %3370 = vmatprep.subr.mxu0 0.0
    %3371 = vmatpush1.msra.mxu0 0.0
    %3372 = vmatprep.subr.mxu0 0.0
    %3373 = vmatpush1.msra.mxu0 0.0
    %3374 = vmatprep.subr.mxu0 0.0
    %3375 = vmatpush1.msra.mxu0 0.0
    %3376 = vmatprep.subr.mxu0 0.0
    %3377 = vmatpush1.msra.mxu0 0.0
    %3378 = vmatprep.subr.mxu0 0.0
    %3379 = vmatpush1.msra.mxu0 0.0
    %3380 = vmatprep.subr.mxu0 0.0
    %3381 = vmatpush1.msra.mxu0 0.0
    %3382 = vmatprep.subr.mxu0 0.0
    %3383 = vmatpush1.msra.mxu0 0.0
    %3384 = vmatprep.subr.mxu0 0.0
    %3385 = vmatpush1.msra.mxu0 0.0
    %3386 = vmatprep.subr.mxu0 0.0
    %3387 = vmatpush1.msra.mxu0 0.0
    %3388 = vmatprep.subr.mxu0 0.0
    %3389 = vmatpush1.msra.mxu0 0.0
    %3390 = vmatprep.subr.mxu0 0.0
    %3391 = vmatpush1.msra.mxu0 0.0
    %3392 = vmatprep.subr.mxu0 0.0
    %3393 = vmatpush1.msra.mxu0 0.0
    %3394 = vmatprep.subr.mxu0 0.0
    %3395 = vmatpush1.msra.mxu0 0.0
    %3396 = vmatprep.subr.mxu0 0.0
    %3397 = vmatpush1.msra.mxu0 0.0
    %3398 = vmatprep.subr.mxu0 0.0
    %3399 = vmatpush1.msra.mxu0 0.0
    %3400 = vmatprep.subr.mxu0 0.0
    %3401 = vmatpush1.msra.mxu0 0.0
    %3402 = vmatprep.subr.mxu0 0.0
    %3403 = vmatpush1.msra.mxu0 0.0
    %3404 = vmatprep.subr.mxu0 0.0
    %3405 = vmatpush1.msra.mxu0 0.0
    %3406 = vmatprep.mubr.f32.mxu0 0.0
    %3407 = vmatmul.mubr.f32.gmra.mrb[0].mxu0 %v3337
    %v3408 = vpop.f32.mrb[0].mxu0
    %v3409 = vadd.f32 0.0, %v3408
    %v3410 = vpop.f32.mrb[0].mxu0
    %v3411 = vadd.f32 0.0, %v3410
    %3412 = vmatprep.mubr.f32.mxu0 0.0
    %3413 = vmatmul.mubr.f32.gmra.mrb[0].mxu0 %v3340
    %v3414 = vpop.f32.mrb[0].mxu0
    %v3415 = vadd.f32 0.0, %v3414
    %v3416 = vpop.f32.mrb[0].mxu0
    %v3417 = vadd.f32 0.0, %v3416
    %3418 = vdwg.mxu0
    %v3419 = vadd.f32 %v3296, %v3409
    %v3420 = vadd.f32 %v3298, %v3411
    %v3421 = vadd.f32 %v3302, %v3415
    %v3422 = vadd.f32 %v3304, %v3417
    %v3423 = vld [vmem:[%s4] sm:$0x3]
    %v3425 = vlaneseq
    %v3426 = vshrl.u32 %v3425, 7
    %v3427 = vsub.s32 0, %v3426
    %v3428 = vrot.slane %v3423, %v3427
    %v3429 = vlaneseq
    %v3430 = vshrl.u32 %v3429, 7
    %v3431 = vsub.s32 1, %v3430
    %v3432 = vrot.slane %v3423, %v3431
    %v3435 = vadd.f32 %v3419, %v3428
    %v3436 = vadd.f32 %v3420, %v3432
    %v3437 = vadd.f32 %v3421, %v3428
    %v3438 = vadd.f32 %v3422, %v3432
    %v3439 = vmax.f32 %v3435, 0.0
    %v3440 = vmax.f32 %v3436, 0.0
    %v3441 = vmax.f32 %v3437, 0.0
    %v3442 = vmax.f32 %v3438, 0.0
    %v3445 = vrot.slane %v3439, 1
    %v3446 = vrot.slane %v3440, 1
    %v3449 = vmax.f32 %v3439, %v3445
    %v3450 = vmax.f32 %v3440, %v3446
    %v3453 = vcombine.low %v3449, %v3450
    %v3455 = vunpack.c.l.s4 1966171168
    %v3456 = vunpack.c.0.s8 %v3455
    %v3457 = vlaneseq
    %v3458 = vshrl.u32 %v3457, 7
    %v3459 = vsub.s32 %v3456, %v3458
    %v3460 = vrot.slane %v3453, %v3459
    %v3462 = vunpack.c.l.s4 1966171168
    %v3463 = vunpack.c.0.s8 %v3462
    %v3464 = vlaneseq
    %v3465 = vshrl.u32 %v3464, 7
    %v3466 = vsub.s32 %v3463, %v3465
    %v3467 = vrot.slane %v3460, %v3466
    %3469 = vst.msk [vmem:[#allocation4] ss:$8 sm:$0x3] %vm672, %v3467
    %3470 = vst.msk [vmem:[#allocation4] ss:$8 sm:$0x0] %vm672, %v3467
    %v3471 = vcombine.high %v3467, %v3467
    %3473 = vst.msk [vmem:[%s677] ss:$8 sm:$0x3] %vm672, %v3471
    %3474 = vst.msk [vmem:[%s677] ss:$8 sm:$0x0] %vm672, %v3471
    %v3475 = vcombine.high %v3449, %v3450
    %v3477 = vunpack.c.l.s4 1966171168
    %v3478 = vunpack.c.0.s8 %v3477
    %v3479 = vlaneseq
    %v3480 = vshrl.u32 %v3479, 7
    %v3481 = vsub.s32 %v3478, %v3480
    %v3482 = vrot.slane %v3475, %v3481
    %v3484 = vunpack.c.l.s4 1966171168
    %v3485 = vunpack.c.0.s8 %v3484
    %v3486 = vlaneseq
    %v3487 = vshrl.u32 %v3486, 7
    %v3488 = vsub.s32 %v3485, %v3487
    %v3489 = vrot.slane %v3482, %v3488
    %3491 = vst.msk [vmem:[%s696] ss:$8 sm:$0x3] %vm672, %v3489
    %3492 = vst.msk [vmem:[%s696] ss:$8 sm:$0x0] %vm672, %v3489
    %v3493 = vcombine.high %v3489, %v3489
    %3495 = vst.msk [vmem:[%s701] ss:$8 sm:$0x3] %vm672, %v3493
    %3496 = vst.msk [vmem:[%s701] ss:$8 sm:$0x0] %vm672, %v3493
    %v3499 = vrot.slane %v3441, 1
    %v3500 = vrot.slane %v3442, 1
    %v3503 = vmax.f32 %v3441, %v3499
    %v3504 = vmax.f32 %v3442, %v3500
    %v3507 = vcombine.low %v3503, %v3504
    %v3509 = vunpack.c.l.s4 1966171168
    %v3510 = vunpack.c.0.s8 %v3509
    %v3511 = vlaneseq
    %v3512 = vshrl.u32 %v3511, 7
    %v3513 = vsub.s32 %v3510, %v3512
    %v3514 = vrot.slane %v3507, %v3513
    %v3516 = vunpack.c.l.s4 1966171168
    %v3517 = vunpack.c.0.s8 %v3516
    %v3518 = vlaneseq
    %v3519 = vshrl.u32 %v3518, 7
    %v3520 = vsub.s32 %v3517, %v3519
    %v3521 = vrot.slane %v3514, %v3520
    %3523 = vst.msk [vmem:[%s730] ss:$8 sm:$0x3] %vm672, %v3521
    %3524 = vst.msk [vmem:[%s730] ss:$8 sm:$0x0] %vm672, %v3521
    %v3525 = vcombine.high %v3521, %v3521
    %3527 = vst.msk [vmem:[%s735] ss:$8 sm:$0x3] %vm672, %v3525
    %3528 = vst.msk [vmem:[%s735] ss:$8 sm:$0x0] %vm672, %v3525
    %v3529 = vld [vmem:[#allocation4] sm:$0x3f]
    %3531 = vrot.lane.b32.xlu0 %v3529, 112
    %v3532 = vpop.permute.xlu0 %3531
    %v3534 = vmax.f32 %v3529, %v3532
    %3536 = vrot.lane.b32.xlu0 %v3534, 16
    %v3537 = vpop.permute.xlu0 %3536
    %3539 = vst.msk [vmem:[#allocation3 + $0x1] sm:$0x3f] %vm1561, %v3537
    %v3540 = vld [vmem:[#allocation4] sm:$0x3f]
    %3542 = vrot.lane.b32.xlu0 %v3540, 112
    %v3543 = vpop.permute.xlu0 %3542
    %v3545 = vmax.f32 %v3540, %v3543
    %3546 = vst.msk [vmem:[#allocation3 + $0x1] sm:$0x3f] %vm1569, %v3545
    %v3547 = vld [vmem:[#allocation4] sm:$0x3f]
    %3549 = vrot.lane.b32.xlu0 %v3547, 112
    %v3550 = vpop.permute.xlu0 %3549
    %v3552 = vmax.f32 %v3547, %v3550
    %3554 = vrot.lane.b32.xlu0 %v3552, 112
    %v3555 = vpop.permute.xlu0 %3554
    %3557 = vst.msk [vmem:[#allocation3 + $0x1] sm:$0x3f] %vm1581, %v3555
    %v3558 = vld [vmem:[#allocation4] sm:$0x3f]
    %3560 = vrot.lane.b32.xlu0 %v3558, 112
    %v3561 = vpop.permute.xlu0 %3560
    %v3563 = vmax.f32 %v3558, %v3561
    %3565 = vrot.lane.b32.xlu0 %v3563, 96
    %v3566 = vpop.permute.xlu0 %3565
    %3568 = vst.msk [vmem:[#allocation3 + $0x1] sm:$0x3f] %vm1593, %v3566
    %v3569 = vld [vmem:[#allocation4 + $0x8] sm:$0x3f]
    %3571 = vrot.lane.b32.xlu0 %v3569, 112
    %v3572 = vpop.permute.xlu0 %3571
    %v3574 = vmax.f32 %v3569, %v3572
    %3576 = vrot.lane.b32.xlu0 %v3574, 80
    %v3577 = vpop.permute.xlu0 %3576
    %3579 = vst.msk [vmem:[#allocation3 + $0x1] sm:$0x3f] %vm1605, %v3577
    %v3580 = vld [vmem:[#allocation4 + $0x8] sm:$0x3f]
    %3582 = vrot.lane.b32.xlu0 %v3580, 112
    %v3583 = vpop.permute.xlu0 %3582
    %v3585 = vmax.f32 %v3580, %v3583
    %3587 = vrot.lane.b32.xlu0 %v3585, 64
    %v3588 = vpop.permute.xlu0 %3587
    %3590 = vst.msk [vmem:[#allocation3 + $0x1] sm:$0x3f] %vm1617, %v3588
    %v3591 = vld [vmem:[#allocation3] sm:$0x3f]
    %v3592 = vld [vmem:[%s5] sm:$0xff]
    %v3593 = vld [vmem:[%s5 + $0x8] sm:$0xff]
    %v3594 = vld [vmem:[%s5 + $0x10] sm:$0xff]
    %v3595 = vld [vmem:[%s5 + $0x18] sm:$0xff]
    %v3596 = vld [vmem:[%s5 + $0x20] sm:$0xff]
    %v3597 = vld [vmem:[%s5 + $0x28] sm:$0xff]
    %v3598 = vld [vmem:[%s5 + $0x30] sm:$0xff]
    %v3599 = vld [vmem:[%s5 + $0x38] sm:$0xff]
    %v3600 = vld [vmem:[%s5 + $0x40] sm:$0xff]
    %v3601 = vld [vmem:[%s5 + $0x48] sm:$0xff]
    %v3602 = vld [vmem:[%s5 + $0x50] sm:$0xff]
    %v3603 = vld [vmem:[%s5 + $0x58] sm:$0xff]
    %v3604 = vld [vmem:[%s5 + $0x60] sm:$0xff]
    %v3605 = vld [vmem:[%s5 + $0x68] sm:$0xff]
    %v3606 = vld [vmem:[%s5 + $0x70] sm:$0xff]
    %v3607 = vld [vmem:[%s5 + $0x78] sm:$0xff]
    %v3608 = vld [vmem:[%s5 + $0x80] sm:$0xff]
    %v3609 = vld [vmem:[%s5 + $0x88] sm:$0xff]
    %v3610 = vld [vmem:[%s5 + $0x90] sm:$0xff]
    %v3611 = vld [vmem:[%s5 + $0x98] sm:$0xff]
    %v3612 = vld [vmem:[%s5 + $0xa0] sm:$0xff]
    %v3613 = vld [vmem:[%s5 + $0xa8] sm:$0xff]
    %v3614 = vld [vmem:[%s5 + $0xb0] sm:$0xff]
    %v3615 = vld [vmem:[%s5 + $0xb8] sm:$0xff]
    %v3616 = vld [vmem:[%s5 + $0xc0] sm:$0xff]
    %v3617 = vld [vmem:[%s5 + $0xc8] sm:$0xff]
    %v3618 = vld [vmem:[%s5 + $0xd0] sm:$0xff]
    %v3619 = vld [vmem:[%s5 + $0xd8] sm:$0xff]
    %v3620 = vld [vmem:[%s5 + $0xe0] sm:$0xff]
    %v3621 = vld [vmem:[%s5 + $0xe8] sm:$0xff]
    %v3622 = vld [vmem:[%s5 + $0xf0] sm:$0xff]
    %v3623 = vld [vmem:[%s5 + $0xf8] sm:$0xff]
    %v3624 = vld [vmem:[#allocation3 + $0x1] sm:$0x3f]
    %v3625 = vld [vmem:[%s1653] sm:$0xff]
    %v3626 = vld [vmem:[%s1653 + $0x8] sm:$0xff]
    %v3627 = vld [vmem:[%s1653 + $0x10] sm:$0xff]
    %v3628 = vld [vmem:[%s1653 + $0x18] sm:$0xff]
    %v3629 = vld [vmem:[%s1653 + $0x20] sm:$0xff]
    %v3630 = vld [vmem:[%s1653 + $0x28] sm:$0xff]
    %v3631 = vld [vmem:[%s1653 + $0x30] sm:$0xff]
    %v3632 = vld [vmem:[%s1653 + $0x38] sm:$0xff]
    %v3633 = vld [vmem:[%s1653 + $0x40] sm:$0xff]
    %v3634 = vld [vmem:[%s1653 + $0x48] sm:$0xff]
    %v3635 = vld [vmem:[%s1653 + $0x50] sm:$0xff]
    %v3636 = vld [vmem:[%s1653 + $0x58] sm:$0xff]
    %v3637 = vld [vmem:[%s1653 + $0x60] sm:$0xff]
    %v3638 = vld [vmem:[%s1653 + $0x68] sm:$0xff]
    %v3639 = vld [vmem:[%s1653 + $0x70] sm:$0xff]
    %v3640 = vld [vmem:[%s1653 + $0x78] sm:$0xff]
    %v3641 = vld [vmem:[%s1653 + $0x80] sm:$0xff]
    %v3642 = vld [vmem:[%s1653 + $0x88] sm:$0xff]
    %v3643 = vld [vmem:[%s1653 + $0x90] sm:$0xff]
    %v3644 = vld [vmem:[%s1653 + $0x98] sm:$0xff]
    %v3645 = vld [vmem:[%s1653 + $0xa0] sm:$0xff]
    %v3646 = vld [vmem:[%s1653 + $0xa8] sm:$0xff]
    %v3647 = vld [vmem:[%s1653 + $0xb0] sm:$0xff]
    %v3648 = vld [vmem:[%s1653 + $0xb8] sm:$0xff]
    %v3649 = vld [vmem:[%s1653 + $0xc0] sm:$0xff]
    %v3650 = vld [vmem:[%s1653 + $0xc8] sm:$0xff]
    %v3651 = vld [vmem:[%s1653 + $0xd0] sm:$0xff]
    %v3652 = vld [vmem:[%s1653 + $0xd8] sm:$0xff]
    %v3653 = vld [vmem:[%s1653 + $0xe0] sm:$0xff]
    %v3654 = vld [vmem:[%s1653 + $0xe8] sm:$0xff]
    %v3655 = vld [vmem:[%s1653 + $0xf0] sm:$0xff]
    %v3656 = vld [vmem:[%s1653 + $0xf8] sm:$0xff]
    %3657 = vmatprep.subr.mxu0 %v3626
    %3658 = vmatpush1.msra.mxu0 %v3625
    %3659 = vmatprep.subr.mxu0 %v3628
    %3660 = vmatpush1.msra.mxu0 %v3627
    %3661 = vmatprep.subr.mxu0 %v3630
    %3662 = vmatpush1.msra.mxu0 %v3629
    %3663 = vmatprep.subr.mxu0 %v3632
    %3664 = vmatpush1.msra.mxu0 %v3631
    %3665 = vmatprep.subr.mxu0 %v3634
    %3666 = vmatpush1.msra.mxu0 %v3633
    %3667 = vmatprep.subr.mxu0 %v3636
    %3668 = vmatpush1.msra.mxu0 %v3635
    %3669 = vmatprep.subr.mxu0 %v3638
    %3670 = vmatpush1.msra.mxu0 %v3637
    %3671 = vmatprep.subr.mxu0 %v3640
    %3672 = vmatpush1.msra.mxu0 %v3639
    %3673 = vmatprep.subr.mxu0 %v3642
    %3674 = vmatpush1.msra.mxu0 %v3641
    %3675 = vmatprep.subr.mxu0 %v3644
    %3676 = vmatpush1.msra.mxu0 %v3643
    %3677 = vmatprep.subr.mxu0 %v3646
    %3678 = vmatpush1.msra.mxu0 %v3645
    %3679 = vmatprep.subr.mxu0 %v3648
    %3680 = vmatpush1.msra.mxu0 %v3647
    %3681 = vmatprep.subr.mxu0 %v3650
    %3682 = vmatpush1.msra.mxu0 %v3649
    %3683 = vmatprep.subr.mxu0 %v3652
    %3684 = vmatpush1.msra.mxu0 %v3651
    %3685 = vmatprep.subr.mxu0 %v3654
    %3686 = vmatpush1.msra.mxu0 %v3653
    %3687 = vmatprep.subr.mxu0 %v3656
    %3688 = vmatpush1.msra.mxu0 %v3655
    %3689 = vmatprep.subr.mxu0 0.0
    %3690 = vmatpush1.msra.mxu0 0.0
    %3691 = vmatprep.subr.mxu0 0.0
    %3692 = vmatpush1.msra.mxu0 0.0
    %3693 = vmatprep.subr.mxu0 0.0
    %3694 = vmatpush1.msra.mxu0 0.0
    %3695 = vmatprep.subr.mxu0 0.0
    %3696 = vmatpush1.msra.mxu0 0.0
    %3697 = vmatprep.subr.mxu0 0.0
    %3698 = vmatpush1.msra.mxu0 0.0
    %3699 = vmatprep.subr.mxu0 0.0
    %3700 = vmatpush1.msra.mxu0 0.0
    %3701 = vmatprep.subr.mxu0 0.0
    %3702 = vmatpush1.msra.mxu0 0.0
    %3703 = vmatprep.subr.mxu0 0.0
    %3704 = vmatpush1.msra.mxu0 0.0
    %3705 = vmatprep.subr.mxu0 0.0
    %3706 = vmatpush1.msra.mxu0 0.0
    %3707 = vmatprep.subr.mxu0 0.0
    %3708 = vmatpush1.msra.mxu0 0.0
    %3709 = vmatprep.subr.mxu0 0.0
    %3710 = vmatpush1.msra.mxu0 0.0
    %3711 = vmatprep.subr.mxu0 0.0
    %3712 = vmatpush1.msra.mxu0 0.0
    %3713 = vmatprep.subr.mxu0 0.0
    %3714 = vmatpush1.msra.mxu0 0.0
    %3715 = vmatprep.subr.mxu0 0.0
    %3716 = vmatpush1.msra.mxu0 0.0
    %3717 = vmatprep.subr.mxu0 0.0
    %3718 = vmatpush1.msra.mxu0 0.0
    %3719 = vmatprep.subr.mxu0 0.0
    %3720 = vmatpush1.msra.mxu0 0.0
    %3721 = vmatprep.mubr.f32.mxu0 0.0
    %3722 = vmatmul.mubr.f32.gmra.mrb[0].mxu0 %v3624
    %v3723 = vpop.f32.mrb[0].mxu0
    %v3724 = vadd.f32 0.0, %v3723
    %v3725 = vpop.f32.mrb[0].mxu0
    %v3726 = vadd.f32 0.0, %v3725
    %3727 = vdwg.mxu0
    %3728 = vmatprep.subr.mxu0 %v3593
    %3729 = vmatpush1.msra.mxu0 %v3592
    %3730 = vmatprep.subr.mxu0 %v3595
    %3731 = vmatpush1.msra.mxu0 %v3594
    %3732 = vmatprep.subr.mxu0 %v3597
    %3733 = vmatpush1.msra.mxu0 %v3596
    %3734 = vmatprep.subr.mxu0 %v3599
    %3735 = vmatpush1.msra.mxu0 %v3598
    %3736 = vmatprep.subr.mxu0 %v3601
    %3737 = vmatpush1.msra.mxu0 %v3600
    %3738 = vmatprep.subr.mxu0 %v3603
    %3739 = vmatpush1.msra.mxu0 %v3602
    %3740 = vmatprep.subr.mxu0 %v3605
    %3741 = vmatpush1.msra.mxu0 %v3604
    %3742 = vmatprep.subr.mxu0 %v3607
    %3743 = vmatpush1.msra.mxu0 %v3606
    %3744 = vmatprep.subr.mxu0 %v3609
    %3745 = vmatpush1.msra.mxu0 %v3608
    %3746 = vmatprep.subr.mxu0 %v3611
    %3747 = vmatpush1.msra.mxu0 %v3610
    %3748 = vmatprep.subr.mxu0 %v3613
    %3749 = vmatpush1.msra.mxu0 %v3612
    %3750 = vmatprep.subr.mxu0 %v3615
    %3751 = vmatpush1.msra.mxu0 %v3614
    %3752 = vmatprep.subr.mxu0 %v3617
    %3753 = vmatpush1.msra.mxu0 %v3616
    %3754 = vmatprep.subr.mxu0 %v3619
    %3755 = vmatpush1.msra.mxu0 %v3618
    %3756 = vmatprep.subr.mxu0 %v3621
    %3757 = vmatpush1.msra.mxu0 %v3620
    %3758 = vmatprep.subr.mxu0 %v3623
    %3759 = vmatpush1.msra.mxu0 %v3622
    %3760 = vmatprep.subr.mxu0 0.0
    %3761 = vmatpush1.msra.mxu0 0.0
    %3762 = vmatprep.subr.mxu0 0.0
    %3763 = vmatpush1.msra.mxu0 0.0
    %3764 = vmatprep.subr.mxu0 0.0
    %3765 = vmatpush1.msra.mxu0 0.0
    %3766 = vmatprep.subr.mxu0 0.0
    %3767 = vmatpush1.msra.mxu0 0.0
    %3768 = vmatprep.subr.mxu0 0.0
    %3769 = vmatpush1.msra.mxu0 0.0
    %3770 = vmatprep.subr.mxu0 0.0
    %3771 = vmatpush1.msra.mxu0 0.0
    %3772 = vmatprep.subr.mxu0 0.0
    %3773 = vmatpush1.msra.mxu0 0.0
    %3774 = vmatprep.subr.mxu0 0.0
    %3775 = vmatpush1.msra.mxu0 0.0
    %3776 = vmatprep.subr.mxu0 0.0
    %3777 = vmatpush1.msra.mxu0 0.0
    %3778 = vmatprep.subr.mxu0 0.0
    %3779 = vmatpush1.msra.mxu0 0.0
    %3780 = vmatprep.subr.mxu0 0.0
    %3781 = vmatpush1.msra.mxu0 0.0
    %3782 = vmatprep.subr.mxu0 0.0
    %3783 = vmatpush1.msra.mxu0 0.0
    %3784 = vmatprep.subr.mxu0 0.0
    %3785 = vmatpush1.msra.mxu0 0.0
    %3786 = vmatprep.subr.mxu0 0.0
    %3787 = vmatpush1.msra.mxu0 0.0
    %3788 = vmatprep.subr.mxu0 0.0
    %3789 = vmatpush1.msra.mxu0 0.0
    %3790 = vmatprep.subr.mxu0 0.0
    %3791 = vmatpush1.msra.mxu0 0.0
    %3792 = vmatprep.mubr.f32.mxu0 0.0
    %3793 = vmatmul.mubr.f32.gmra.mrb[0].mxu0 %v3591
    %v3794 = vpop.f32.mrb[0].mxu0
    %v3795 = vadd.f32 %v3724, %v3794
    %v3796 = vpop.f32.mrb[0].mxu0
    %v3797 = vadd.f32 %v3726, %v3796
    %3798 = vdwg.mxu0
    %v3799 = vld [vmem:[#allocation3 + $0x2] sm:$0x3f]
    %v3800 = vld [vmem:[%s1829] sm:$0xff]
    %v3801 = vld [vmem:[%s1829 + $0x8] sm:$0xff]
    %v3802 = vld [vmem:[%s1829 + $0x10] sm:$0xff]
    %v3803 = vld [vmem:[%s1829 + $0x18] sm:$0xff]
    %v3804 = vld [vmem:[%s1829 + $0x20] sm:$0xff]
    %v3805 = vld [vmem:[%s1829 + $0x28] sm:$0xff]
    %v3806 = vld [vmem:[%s1829 + $0x30] sm:$0xff]
    %v3807 = vld [vmem:[%s1829 + $0x38] sm:$0xff]
    %v3808 = vld [vmem:[%s1829 + $0x40] sm:$0xff]
    %v3809 = vld [vmem:[%s1829 + $0x48] sm:$0xff]
    %v3810 = vld [vmem:[%s1829 + $0x50] sm:$0xff]
    %v3811 = vld [vmem:[%s1829 + $0x58] sm:$0xff]
    %v3812 = vld [vmem:[%s1829 + $0x60] sm:$0xff]
    %v3813 = vld [vmem:[%s1829 + $0x68] sm:$0xff]
    %v3814 = vld [vmem:[%s1829 + $0x70] sm:$0xff]
    %v3815 = vld [vmem:[%s1829 + $0x78] sm:$0xff]
    %v3816 = vld [vmem:[%s1829 + $0x80] sm:$0xff]
    %v3817 = vld [vmem:[%s1829 + $0x88] sm:$0xff]
    %v3818 = vld [vmem:[%s1829 + $0x90] sm:$0xff]
    %v3819 = vld [vmem:[%s1829 + $0x98] sm:$0xff]
    %v3820 = vld [vmem:[%s1829 + $0xa0] sm:$0xff]
    %v3821 = vld [vmem:[%s1829 + $0xa8] sm:$0xff]
    %v3822 = vld [vmem:[%s1829 + $0xb0] sm:$0xff]
    %v3823 = vld [vmem:[%s1829 + $0xb8] sm:$0xff]
    %v3824 = vld [vmem:[%s1829 + $0xc0] sm:$0xff]
    %v3825 = vld [vmem:[%s1829 + $0xc8] sm:$0xff]
    %v3826 = vld [vmem:[%s1829 + $0xd0] sm:$0xff]
    %v3827 = vld [vmem:[%s1829 + $0xd8] sm:$0xff]
    %v3828 = vld [vmem:[%s1829 + $0xe0] sm:$0xff]
    %v3829 = vld [vmem:[%s1829 + $0xe8] sm:$0xff]
    %v3830 = vld [vmem:[%s1829 + $0xf0] sm:$0xff]
    %v3831 = vld [vmem:[%s1829 + $0xf8] sm:$0xff]
    %3832 = vmatprep.subr.mxu0 %v3801
    %3833 = vmatpush1.msra.mxu0 %v3800
    %3834 = vmatprep.subr.mxu0 %v3803
    %3835 = vmatpush1.msra.mxu0 %v3802
    %3836 = vmatprep.subr.mxu0 %v3805
    %3837 = vmatpush1.msra.mxu0 %v3804
    %3838 = vmatprep.subr.mxu0 %v3807
    %3839 = vmatpush1.msra.mxu0 %v3806
    %3840 = vmatprep.subr.mxu0 %v3809
    %3841 = vmatpush1.msra.mxu0 %v3808
    %3842 = vmatprep.subr.mxu0 %v3811
    %3843 = vmatpush1.msra.mxu0 %v3810
    %3844 = vmatprep.subr.mxu0 %v3813
    %3845 = vmatpush1.msra.mxu0 %v3812
    %3846 = vmatprep.subr.mxu0 %v3815
    %3847 = vmatpush1.msra.mxu0 %v3814
    %3848 = vmatprep.subr.mxu0 %v3817
    %3849 = vmatpush1.msra.mxu0 %v3816
    %3850 = vmatprep.subr.mxu0 %v3819
    %3851 = vmatpush1.msra.mxu0 %v3818
    %3852 = vmatprep.subr.mxu0 %v3821
    %3853 = vmatpush1.msra.mxu0 %v3820
    %3854 = vmatprep.subr.mxu0 %v3823
    %3855 = vmatpush1.msra.mxu0 %v3822
    %3856 = vmatprep.subr.mxu0 %v3825
    %3857 = vmatpush1.msra.mxu0 %v3824
    %3858 = vmatprep.subr.mxu0 %v3827
    %3859 = vmatpush1.msra.mxu0 %v3826
    %3860 = vmatprep.subr.mxu0 %v3829
    %3861 = vmatpush1.msra.mxu0 %v3828
    %3862 = vmatprep.subr.mxu0 %v3831
    %3863 = vmatpush1.msra.mxu0 %v3830
    %3864 = vmatprep.subr.mxu0 0.0
    %3865 = vmatpush1.msra.mxu0 0.0
    %3866 = vmatprep.subr.mxu0 0.0
    %3867 = vmatpush1.msra.mxu0 0.0
    %3868 = vmatprep.subr.mxu0 0.0
    %3869 = vmatpush1.msra.mxu0 0.0
    %3870 = vmatprep.subr.mxu0 0.0
    %3871 = vmatpush1.msra.mxu0 0.0
    %3872 = vmatprep.subr.mxu0 0.0
    %3873 = vmatpush1.msra.mxu0 0.0
    %3874 = vmatprep.subr.mxu0 0.0
    %3875 = vmatpush1.msra.mxu0 0.0
    %3876 = vmatprep.subr.mxu0 0.0
    %3877 = vmatpush1.msra.mxu0 0.0
    %3878 = vmatprep.subr.mxu0 0.0
    %3879 = vmatpush1.msra.mxu0 0.0
    %3880 = vmatprep.subr.mxu0 0.0
    %3881 = vmatpush1.msra.mxu0 0.0
    %3882 = vmatprep.subr.mxu0 0.0
    %3883 = vmatpush1.msra.mxu0 0.0
    %3884 = vmatprep.subr.mxu0 0.0
    %3885 = vmatpush1.msra.mxu0 0.0
    %3886 = vmatprep.subr.mxu0 0.0
    %3887 = vmatpush1.msra.mxu0 0.0
    %3888 = vmatprep.subr.mxu0 0.0
    %3889 = vmatpush1.msra.mxu0 0.0
    %3890 = vmatprep.subr.mxu0 0.0
    %3891 = vmatpush1.msra.mxu0 0.0
    %3892 = vmatprep.subr.mxu0 0.0
    %3893 = vmatpush1.msra.mxu0 0.0
    %3894 = vmatprep.subr.mxu0 0.0
    %3895 = vmatpush1.msra.mxu0 0.0
    %3896 = vmatprep.mubr.f32.mxu0 0.0
    %3897 = vmatmul.mubr.f32.gmra.mrb[0].mxu0 %v3799
    %v3898 = vpop.f32.mrb[0].mxu0
    %v3899 = vadd.f32 0.0, %v3898
    %v3900 = vpop.f32.mrb[0].mxu0
    %v3901 = vadd.f32 0.0, %v3900
    %3902 = vdwg.mxu0
    %v3903 = vadd.f32 %v3795, %v3899
    %v3904 = vadd.f32 %v3797, %v3901
    %v3905 = vld [vmem:[%s6] sm:$0x3]
    %v3907 = vlaneseq
    %v3908 = vshrl.u32 %v3907, 7
    %v3909 = vsub.s32 0, %v3908
    %v3910 = vrot.slane %v3905, %v3909
    %v3911 = vlaneseq
    %v3912 = vshrl.u32 %v3911, 7
    %v3913 = vsub.s32 1, %v3912
    %v3914 = vrot.slane %v3905, %v3913
    %v3917 = vadd.f32 %v3903, %v3910
    %v3918 = vadd.f32 %v3904, %v3914
    %v3919 = vmax.f32 %v3917, 0.0
    %v3920 = vmax.f32 %v3918, 0.0
    %v3923 = vrot.slane %v3919, 1
    %v3924 = vrot.slane %v3920, 1
    %v3927 = vmax.f32 %v3919, %v3923
    %v3928 = vmax.f32 %v3920, %v3924
    %v3931 = vcombine.low %v3927, %v3928
    %v3933 = vunpack.c.l.s4 1966171168
    %v3934 = vunpack.c.0.s8 %v3933
    %v3935 = vlaneseq
    %v3936 = vshrl.u32 %v3935, 7
    %v3937 = vsub.s32 %v3934, %v3936
    %v3938 = vrot.slane %v3931, %v3937
    %v3940 = vunpack.c.l.s4 1966171168
    %v3941 = vunpack.c.0.s8 %v3940
    %v3942 = vlaneseq
    %v3943 = vshrl.u32 %v3942, 7
    %v3944 = vsub.s32 %v3941, %v3943
    %v3945 = vrot.slane %v3938, %v3944
    %3947 = vst.msk [vmem:[#allocation4] ss:$8 sm:$0x3] %vm672, %v3945
    %3948 = vst.msk [vmem:[#allocation4] ss:$8 sm:$0x0] %vm672, %v3945
    %v3949 = vcombine.high %v3945, %v3945
    %3951 = vst.msk [vmem:[%s677] ss:$8 sm:$0x3] %vm672, %v3949
    %3952 = vst.msk [vmem:[%s677] ss:$8 sm:$0x0] %vm672, %v3949
    %v3953 = vcombine.high %v3927, %v3928
    %v3955 = vunpack.c.l.s4 1966171168
    %v3956 = vunpack.c.0.s8 %v3955
    %v3957 = vlaneseq
    %v3958 = vshrl.u32 %v3957, 7
    %v3959 = vsub.s32 %v3956, %v3958
    %v3960 = vrot.slane %v3953, %v3959
    %v3962 = vunpack.c.l.s4 1966171168
    %v3963 = vunpack.c.0.s8 %v3962
    %v3964 = vlaneseq
    %v3965 = vshrl.u32 %v3964, 7
    %v3966 = vsub.s32 %v3963, %v3965
    %v3967 = vrot.slane %v3960, %v3966
    %3969 = vst.msk [vmem:[%s696] ss:$8 sm:$0x3] %vm672, %v3967
    %3970 = vst.msk [vmem:[%s696] ss:$8 sm:$0x0] %vm672, %v3967
    %v3971 = vld [vmem:[#allocation4] sm:$0x7]
    %3973 = vrot.lane.b32.xlu0 %v3971, 96
    %v3974 = vpop.permute.xlu0 %3973
    %v3976 = vmax.f32 %v3971, %v3974
    %3977 = vst.msk [vmem:[#allocation5] sm:$0x7] %vm2007, %v3976
    %v3978 = vld [vmem:[#allocation4] sm:$0x7]
    %3980 = vrot.lane.b32.xlu0 %v3978, 96
    %v3981 = vpop.permute.xlu0 %3980
    %v3983 = vmax.f32 %v3978, %v3981
    %3985 = vrot.lane.b32.xlu0 %v3983, 96
    %v3986 = vpop.permute.xlu0 %3985
    %3988 = vst.msk [vmem:[#allocation5] sm:$0x7] %vm2019, %v3986
    %v3989 = vld [vmem:[#allocation4 + $0x8] sm:$0x7]
    %3991 = vrot.lane.b32.xlu0 %v3989, 96
    %v3992 = vpop.permute.xlu0 %3991
    %v3994 = vmax.f32 %v3989, %v3992
    %3996 = vrot.lane.b32.xlu0 %v3994, 64
    %v3997 = vpop.permute.xlu0 %3996
    %3999 = vst.msk [vmem:[#allocation5] sm:$0x7] %vm2031, %v3997
    %v4000 = vld [vmem:[#allocation5] sm:$0x1]
    %4001 = vst.msk [vmem:[#allocation6 + $0x1] sm:$0x1] %vm2034, %v4000
    %v4002 = vld [vmem:[#allocation5 + $0x1] sm:$0x1]
    %v4005 = vunpack.c.l.s4 1983009808
    %v4006 = vunpack.c.0.s8 %v4005
    %v4007 = vlaneseq
    %v4008 = vshrl.u32 %v4007, 7
    %v4009 = vsub.s32 %v4006, %v4008
    %v4010 = vrot.slane %v4002, %v4009
    %4011 = vrot.lane.b32.xlu0 %v4010, 96
    %v4012 = vpop.permute.xlu0 %4011
    %v4013 = vrot.slane %v4012, 6
    %v4014 = vsel %vm2048, %v4013, %v4012
    %4016 = vst.msk [vmem:[#allocation6 + $0x1] sm:$0x5] %vm2053, %v4014
    %v4017 = vld [vmem:[#allocation5 + $0x2] sm:$0x1]
    %v4020 = vunpack.c.l.s4 1983009808
    %v4021 = vunpack.c.0.s8 %v4020
    %v4022 = vlaneseq
    %v4023 = vshrl.u32 %v4022, 7
    %v4024 = vsub.s32 %v4021, %v4023
    %v4025 = vrot.slane %v4017, %v4024
    %4026 = vrot.lane.b32.xlu0 %v4025, 64
    %v4027 = vpop.permute.xlu0 %4026
    %v4028 = vrot.slane %v4027, 6
    %v4029 = vsel %vm2067, %v4028, %v4027
    %4031 = vst.msk [vmem:[#allocation6 + $0x3] sm:$0x5] %vm2072, %v4029
    %v4032 = vld [vmem:[#allocation6] sm:$0x3f]
    %v4033 = vld [vmem:[%s7] sm:$0xff]
    %v4034 = vld [vmem:[%s7 + $0x8] sm:$0xff]
    %v4035 = vld [vmem:[%s7 + $0x10] sm:$0xff]
    %v4036 = vld [vmem:[%s7 + $0x18] sm:$0xff]
    %v4037 = vld [vmem:[%s7 + $0x20] sm:$0xff]
    %v4038 = vld [vmem:[%s7 + $0x28] sm:$0xff]
    %v4039 = vld [vmem:[%s7 + $0x30] sm:$0xff]
    %v4040 = vld [vmem:[%s7 + $0x38] sm:$0xff]
    %v4041 = vld [vmem:[%s7 + $0x40] sm:$0xff]
    %v4042 = vld [vmem:[%s7 + $0x48] sm:$0xff]
    %v4043 = vld [vmem:[%s7 + $0x50] sm:$0xff]
    %v4044 = vld [vmem:[%s7 + $0x58] sm:$0xff]
    %v4045 = vld [vmem:[%s7 + $0x60] sm:$0xff]
    %v4046 = vld [vmem:[%s7 + $0x68] sm:$0xff]
    %v4047 = vld [vmem:[%s7 + $0x70] sm:$0xff]
    %v4048 = vld [vmem:[%s7 + $0x78] sm:$0xff]
    %v4049 = vld [vmem:[%s7 + $0x80] sm:$0xff]
    %v4050 = vld [vmem:[%s7 + $0x88] sm:$0xff]
    %v4051 = vld [vmem:[%s7 + $0x90] sm:$0xff]
    %v4052 = vld [vmem:[%s7 + $0x98] sm:$0xff]
    %v4053 = vld [vmem:[%s7 + $0xa0] sm:$0xff]
    %v4054 = vld [vmem:[%s7 + $0xa8] sm:$0xff]
    %v4055 = vld [vmem:[%s7 + $0xb0] sm:$0xff]
    %v4056 = vld [vmem:[%s7 + $0xb8] sm:$0xff]
    %v4057 = vld [vmem:[%s7 + $0xc0] sm:$0xff]
    %v4058 = vld [vmem:[%s7 + $0xc8] sm:$0xff]
    %v4059 = vld [vmem:[%s7 + $0xd0] sm:$0xff]
    %v4060 = vld [vmem:[%s7 + $0xd8] sm:$0xff]
    %v4061 = vld [vmem:[%s7 + $0xe0] sm:$0xff]
    %v4062 = vld [vmem:[%s7 + $0xe8] sm:$0xff]
    %v4063 = vld [vmem:[%s7 + $0xf0] sm:$0xff]
    %v4064 = vld [vmem:[%s7 + $0xf8] sm:$0xff]
    %v4065 = vld [vmem:[%s7 + $0x100] sm:$0xff]
    %v4066 = vld [vmem:[%s7 + $0x108] sm:$0xff]
    %v4067 = vld [vmem:[%s7 + $0x110] sm:$0xff]
    %v4068 = vld [vmem:[%s7 + $0x118] sm:$0xff]
    %v4069 = vld [vmem:[%s8] sm:$0x1]
    %v4071 = vlaneseq
    %v4072 = vshrl.u32 %v4071, 7
    %v4073 = vsub.s32 0, %v4072
    %v4074 = vrot.slane %v4069, %v4073
    %v4077 = vcombine.high %v4032, %v4032
    %v4079 = vunpack.c.l.s4 1983009808
    %v4080 = vunpack.c.0.s8 %v4079
    %v4081 = vlaneseq
    %v4082 = vshrl.u32 %v4081, 7
    %v4083 = vsub.s32 %v4080, %v4082
    %v4084 = vrot.slane %v4032, %v4083
    %v4086 = vunpack.c.l.s4 1983009808
    %v4087 = vunpack.c.0.s8 %v4086
    %v4088 = vlaneseq
    %v4089 = vshrl.u32 %v4088, 7
    %v4090 = vsub.s32 %v4087, %v4089
    %v4091 = vrot.slane %v4077, %v4090
    %v4092 = vcombine.high %v4084, %v4084
    %vm4095 = vcmask 261120
    %v4096 = vsel %vm4095, %v4091, 0
    %4098 = vmatprep.subr.mxu0 0.0
    %4099 = vmatpush1.msra.mxu0 %v4033
    %4100 = vmatprep.subr.mxu0 0.0
    %4101 = vmatpush1.msra.mxu0 %v4034
    %4102 = vmatprep.subr.mxu0 0.0
    %4103 = vmatpush1.msra.mxu0 %v4035
    %4104 = vmatprep.subr.mxu0 0.0
    %4105 = vmatpush1.msra.mxu0 %v4036
    %4106 = vmatprep.subr.mxu0 0.0
    %4107 = vmatpush1.msra.mxu0 %v4037
    %4108 = vmatprep.subr.mxu0 0.0
    %4109 = vmatpush1.msra.mxu0 %v4038
    %4110 = vmatprep.subr.mxu0 0.0
    %4111 = vmatpush1.msra.mxu0 %v4039
    %4112 = vmatprep.subr.mxu0 0.0
    %4113 = vmatpush1.msra.mxu0 %v4040
    %4114 = vmatprep.subr.mxu0 0.0
    %4115 = vmatpush1.msra.mxu0 %v4041
    %4116 = vmatprep.subr.mxu0 0.0
    %4117 = vmatpush1.msra.mxu0 %v4042
    %4118 = vmatprep.subr.mxu0 0.0
    %4119 = vmatpush1.msra.mxu0 %v4043
    %4120 = vmatprep.subr.mxu0 0.0
    %4121 = vmatpush1.msra.mxu0 %v4044
    %4122 = vmatprep.subr.mxu0 0.0
    %4123 = vmatpush1.msra.mxu0 %v4045
    %4124 = vmatprep.subr.mxu0 0.0
    %4125 = vmatpush1.msra.mxu0 %v4046
    %4126 = vmatprep.subr.mxu0 0.0
    %4127 = vmatpush1.msra.mxu0 %v4047
    %4128 = vmatprep.subr.mxu0 0.0
    %4129 = vmatpush1.msra.mxu0 %v4048
    %4130 = vmatprep.subr.mxu0 0.0
    %4131 = vmatpush1.msra.mxu0 %v4049
    %4132 = vmatprep.subr.mxu0 0.0
    %4133 = vmatpush1.msra.mxu0 %v4050
    %4134 = vmatprep.subr.mxu0 0.0
    %4135 = vmatpush1.msra.mxu0 %v4051
    %4136 = vmatprep.subr.mxu0 0.0
    %4137 = vmatpush1.msra.mxu0 %v4052
    %4138 = vmatprep.subr.mxu0 0.0
    %4139 = vmatpush1.msra.mxu0 %v4053
    %4140 = vmatprep.subr.mxu0 0.0
    %4141 = vmatpush1.msra.mxu0 %v4054
    %4142 = vmatprep.subr.mxu0 0.0
    %4143 = vmatpush1.msra.mxu0 %v4055
    %4144 = vmatprep.subr.mxu0 0.0
    %4145 = vmatpush1.msra.mxu0 %v4056
    %4146 = vmatprep.subr.mxu0 0.0
    %4147 = vmatpush1.msra.mxu0 %v4057
    %4148 = vmatprep.subr.mxu0 0.0
    %4149 = vmatpush1.msra.mxu0 %v4058
    %4150 = vmatprep.subr.mxu0 0.0
    %4151 = vmatpush1.msra.mxu0 %v4059
    %4152 = vmatprep.subr.mxu0 0.0
    %4153 = vmatpush1.msra.mxu0 %v4060
    %4154 = vmatprep.subr.mxu0 0.0
    %4155 = vmatpush1.msra.mxu0 %v4061
    %4156 = vmatprep.subr.mxu0 0.0
    %4157 = vmatpush1.msra.mxu0 %v4062
    %4158 = vmatprep.subr.mxu0 0.0
    %4159 = vmatpush1.msra.mxu0 %v4063
    %4160 = vmatprep.subr.mxu0 0.0
    %4161 = vmatpush1.msra.mxu0 %v4064
    %4162 = vmatprep.mubr.f32.mxu0 %v4092
    %4163 = vmatmul.mubr.f32.gmra.mrb[0].mxu0 %v4084
    %v4164 = vpop.f32.mrb[0].mxu0
    %v4165 = vadd.f32 %v4074, %v4164
    %v4166 = vpop.f32.mrb[0].mxu0
    %4167 = vdwg.mxu0
    %4168 = vmatprep.subr.mxu0 0.0
    %4169 = vmatpush1.msra.mxu0 %v4065
    %4170 = vmatprep.subr.mxu0 0.0
    %4171 = vmatpush1.msra.mxu0 %v4066
    %4172 = vmatprep.subr.mxu0 0.0
    %4173 = vmatpush1.msra.mxu0 %v4067
    %4174 = vmatprep.subr.mxu0 0.0
    %4175 = vmatpush1.msra.mxu0 %v4068
    %4176 = vmatprep.subr.mxu0 0.0
    %4177 = vmatpush1.msra.mxu0 0.0
    %4178 = vmatprep.subr.mxu0 0.0
    %4179 = vmatpush1.msra.mxu0 0.0
    %4180 = vmatprep.subr.mxu0 0.0
    %4181 = vmatpush1.msra.mxu0 0.0
    %4182 = vmatprep.subr.mxu0 0.0
    %4183 = vmatpush1.msra.mxu0 0.0
    %4184 = vmatprep.subr.mxu0 0.0
    %4185 = vmatpush1.msra.mxu0 0.0
    %4186 = vmatprep.subr.mxu0 0.0
    %4187 = vmatpush1.msra.mxu0 0.0
    %4188 = vmatprep.subr.mxu0 0.0
    %4189 = vmatpush1.msra.mxu0 0.0
    %4190 = vmatprep.subr.mxu0 0.0
    %4191 = vmatpush1.msra.mxu0 0.0
    %4192 = vmatprep.subr.mxu0 0.0
    %4193 = vmatpush1.msra.mxu0 0.0
    %4194 = vmatprep.subr.mxu0 0.0
    %4195 = vmatpush1.msra.mxu0 0.0
    %4196 = vmatprep.subr.mxu0 0.0
    %4197 = vmatpush1.msra.mxu0 0.0
    %4198 = vmatprep.subr.mxu0 0.0
    %4199 = vmatpush1.msra.mxu0 0.0
    %4200 = vmatprep.subr.mxu0 0.0
    %4201 = vmatpush1.msra.mxu0 0.0
    %4202 = vmatprep.subr.mxu0 0.0
    %4203 = vmatpush1.msra.mxu0 0.0
    %4204 = vmatprep.subr.mxu0 0.0
    %4205 = vmatpush1.msra.mxu0 0.0
    %4206 = vmatprep.subr.mxu0 0.0
    %4207 = vmatpush1.msra.mxu0 0.0
    %4208 = vmatprep.subr.mxu0 0.0
    %4209 = vmatpush1.msra.mxu0 0.0
    %4210 = vmatprep.subr.mxu0 0.0
    %4211 = vmatpush1.msra.mxu0 0.0
    %4212 = vmatprep.subr.mxu0 0.0
    %4213 = vmatpush1.msra.mxu0 0.0
    %4214 = vmatprep.subr.mxu0 0.0
    %4215 = vmatpush1.msra.mxu0 0.0
    %4216 = vmatprep.subr.mxu0 0.0
    %4217 = vmatpush1.msra.mxu0 0.0
    %4218 = vmatprep.subr.mxu0 0.0
    %4219 = vmatpush1.msra.mxu0 0.0
    %4220 = vmatprep.subr.mxu0 0.0
    %4221 = vmatpush1.msra.mxu0 0.0
    %4222 = vmatprep.subr.mxu0 0.0
    %4223 = vmatpush1.msra.mxu0 0.0
    %4224 = vmatprep.subr.mxu0 0.0
    %4225 = vmatpush1.msra.mxu0 0.0
    %4226 = vmatprep.subr.mxu0 0.0
    %4227 = vmatpush1.msra.mxu0 0.0
    %4228 = vmatprep.subr.mxu0 0.0
    %4229 = vmatpush1.msra.mxu0 0.0
    %4230 = vmatprep.subr.mxu0 0.0
    %4231 = vmatpush1.msra.mxu0 0.0
    %4232 = vmatprep.mubr.f32.mxu0 0.0
    %4233 = vmatmul.mubr.f32.gmra.mrb[0].mxu0 %v4096
    %v4234 = vpop.f32.mrb[0].mxu0
    %v4235 = vadd.f32 %v4165, %v4234
    %v4236 = vpop.f32.mrb[0].mxu0
    %4237 = vdwg.mxu0
    %v4238 = vmax.f32 %v4235, 0.0
    %v4239 = vld [vmem:[%s9] sm:$0xff]
    %v4240 = vld [vmem:[%s9 + $0x8] sm:$0xff]
    %v4241 = vld [vmem:[%s9 + $0x10] sm:$0xff]
    %v4242 = vld [vmem:[%s9 + $0x18] sm:$0xff]
    %v4243 = vld [vmem:[%s9 + $0x20] sm:$0xff]
    %v4244 = vld [vmem:[%s9 + $0x28] sm:$0xff]
    %v4245 = vld [vmem:[%s9 + $0x30] sm:$0xff]
    %v4246 = vld [vmem:[%s9 + $0x38] sm:$0xff]
    %v4247 = vld [vmem:[%s9 + $0x40] sm:$0xff]
    %v4248 = vld [vmem:[%s9 + $0x48] sm:$0xff]
    %v4249 = vld [vmem:[%s9 + $0x50] sm:$0xff]
    %v4250 = vld [vmem:[%s9 + $0x58] sm:$0xff]
    %v4251 = vld [vmem:[%s9 + $0x60] sm:$0xff]
    %v4252 = vld [vmem:[%s9 + $0x68] sm:$0xff]
    %v4253 = vld [vmem:[%s9 + $0x70] sm:$0xff]
    %v4254 = vld [vmem:[%s10] sm:$0x1]
    %v4256 = vlaneseq
    %v4257 = vshrl.u32 %v4256, 7
    %v4258 = vsub.s32 0, %v4257
    %v4259 = vrot.slane %v4254, %v4258
    %vm4261 = vcmask 982016
    %v4263 = vsel %vm4261, %v4238, 0
    %4265 = vmatprep.subr.mxu0 0.0
    %4266 = vmatpush1.msra.mxu0 %v4239
    %4267 = vmatprep.subr.mxu0 0.0
    %4268 = vmatpush1.msra.mxu0 %v4240
    %4269 = vmatprep.subr.mxu0 0.0
    %4270 = vmatpush1.msra.mxu0 %v4241
    %4271 = vmatprep.subr.mxu0 0.0
    %4272 = vmatpush1.msra.mxu0 %v4242
    %4273 = vmatprep.subr.mxu0 0.0
    %4274 = vmatpush1.msra.mxu0 %v4243
    %4275 = vmatprep.subr.mxu0 0.0
    %4276 = vmatpush1.msra.mxu0 %v4244
    %4277 = vmatprep.subr.mxu0 0.0
    %4278 = vmatpush1.msra.mxu0 %v4245
    %4279 = vmatprep.subr.mxu0 0.0
    %4280 = vmatpush1.msra.mxu0 %v4246
    %4281 = vmatprep.subr.mxu0 0.0
    %4282 = vmatpush1.msra.mxu0 %v4247
    %4283 = vmatprep.subr.mxu0 0.0
    %4284 = vmatpush1.msra.mxu0 %v4248
    %4285 = vmatprep.subr.mxu0 0.0
    %4286 = vmatpush1.msra.mxu0 %v4249
    %4287 = vmatprep.subr.mxu0 0.0
    %4288 = vmatpush1.msra.mxu0 %v4250
    %4289 = vmatprep.subr.mxu0 0.0
    %4290 = vmatpush1.msra.mxu0 %v4251
    %4291 = vmatprep.subr.mxu0 0.0
    %4292 = vmatpush1.msra.mxu0 %v4252
    %4293 = vmatprep.subr.mxu0 0.0
    %4294 = vmatpush1.msra.mxu0 %v4253
    %4295 = vmatprep.subr.mxu0 0.0
    %4296 = vmatpush1.msra.mxu0 0.0
    %4297 = vmatprep.subr.mxu0 0.0
    %4298 = vmatpush1.msra.mxu0 0.0
    %4299 = vmatprep.subr.mxu0 0.0
    %4300 = vmatpush1.msra.mxu0 0.0
    %4301 = vmatprep.subr.mxu0 0.0
    %4302 = vmatpush1.msra.mxu0 0.0
    %4303 = vmatprep.subr.mxu0 0.0
    %4304 = vmatpush1.msra.mxu0 0.0
    %4305 = vmatprep.subr.mxu0 0.0
    %4306 = vmatpush1.msra.mxu0 0.0
    %4307 = vmatprep.subr.mxu0 0.0
    %4308 = vmatpush1.msra.mxu0 0.0
    %4309 = vmatprep.subr.mxu0 0.0
    %4310 = vmatpush1.msra.mxu0 0.0
    %4311 = vmatprep.subr.mxu0 0.0
    %4312 = vmatpush1.msra.mxu0 0.0
    %4313 = vmatprep.subr.mxu0 0.0
    %4314 = vmatpush1.msra.mxu0 0.0
    %4315 = vmatprep.subr.mxu0 0.0
    %4316 = vmatpush1.msra.mxu0 0.0
    %4317 = vmatprep.subr.mxu0 0.0
    %4318 = vmatpush1.msra.mxu0 0.0
    %4319 = vmatprep.subr.mxu0 0.0
    %4320 = vmatpush1.msra.mxu0 0.0
    %4321 = vmatprep.subr.mxu0 0.0
    %4322 = vmatpush1.msra.mxu0 0.0
    %4323 = vmatprep.subr.mxu0 0.0
    %4324 = vmatpush1.msra.mxu0 0.0
    %4325 = vmatprep.subr.mxu0 0.0
    %4326 = vmatpush1.msra.mxu0 0.0
    %4327 = vmatprep.subr.mxu0 0.0
    %4328 = vmatpush1.msra.mxu0 0.0
    %4329 = vmatprep.mubr.f32.mxu0 0.0
    %4330 = vmatmul.mubr.f32.gmra.mrb[0].mxu0 %v4263
    %v4331 = vpop.f32.mrb[0].mxu0
    %v4332 = vadd.f32 %v4259, %v4331
    %v4333 = vpop.f32.mrb[0].mxu0
    %4334 = vdwg.mxu0
    %v4335 = vmax.f32 %v4332, 0.0
    %v4336 = vld [vmem:[%s11] sm:$0xff]
    %v4337 = vld [vmem:[%s11 + $0x8] sm:$0xff]
    %v4338 = vld [vmem:[%s11 + $0x10] sm:$0xff]
    %v4339 = vld [vmem:[%s11 + $0x18] sm:$0xff]
    %v4340 = vld [vmem:[%s11 + $0x20] sm:$0xff]
    %v4341 = vld [vmem:[%s11 + $0x28] sm:$0xff]
    %v4342 = vld [vmem:[%s11 + $0x30] sm:$0xff]
    %v4343 = vld [vmem:[%s11 + $0x38] sm:$0xff]
    %v4344 = vld [vmem:[%s11 + $0x40] sm:$0xff]
    %v4345 = vld [vmem:[%s11 + $0x48] sm:$0xff]
    %v4346 = vld [vmem:[%s11 + $0x50] sm:$0xf]
    %v4347 = vld [vmem:[%s12] sm:$0x1]
    %v4349 = vlaneseq
    %v4350 = vshrl.u32 %v4349, 7
    %v4351 = vsub.s32 0, %v4350
    %v4352 = vrot.slane %v4347, %v4351
    %vm4354 = vcmask 687104
    %v4356 = vsel %vm4354, %v4335, 0
    %v4359 = vsel %vm83, %v4346, 0
    %4361 = vmatprep.subr.mxu0 0.0
    %4362 = vmatpush1.msra.mxu0 %v4336
    %4363 = vmatprep.subr.mxu0 0.0
    %4364 = vmatpush1.msra.mxu0 %v4337
    %4365 = vmatprep.subr.mxu0 0.0
    %4366 = vmatpush1.msra.mxu0 %v4338
    %4367 = vmatprep.subr.mxu0 0.0
    %4368 = vmatpush1.msra.mxu0 %v4339
    %4369 = vmatprep.subr.mxu0 0.0
    %4370 = vmatpush1.msra.mxu0 %v4340
    %4371 = vmatprep.subr.mxu0 0.0
    %4372 = vmatpush1.msra.mxu0 %v4341
    %4373 = vmatprep.subr.mxu0 0.0
    %4374 = vmatpush1.msra.mxu0 %v4342
    %4375 = vmatprep.subr.mxu0 0.0
    %4376 = vmatpush1.msra.mxu0 %v4343
    %4377 = vmatprep.subr.mxu0 0.0
    %4378 = vmatpush1.msra.mxu0 %v4344
    %4379 = vmatprep.subr.mxu0 0.0
    %4380 = vmatpush1.msra.mxu0 %v4345
    %4381 = vmatprep.subr.mxu0 0.0
    %4382 = vmatpush1.msra.mxu0 %v4359
    %4383 = vmatprep.subr.mxu0 0.0
    %4384 = vmatpush1.msra.mxu0 0.0
    %4385 = vmatprep.subr.mxu0 0.0
    %4386 = vmatpush1.msra.mxu0 0.0
    %4387 = vmatprep.subr.mxu0 0.0
    %4388 = vmatpush1.msra.mxu0 0.0
    %4389 = vmatprep.subr.mxu0 0.0
    %4390 = vmatpush1.msra.mxu0 0.0
    %4391 = vmatprep.subr.mxu0 0.0
    %4392 = vmatpush1.msra.mxu0 0.0
    %4393 = vmatprep.subr.mxu0 0.0
    %4394 = vmatpush1.msra.mxu0 0.0
    %4395 = vmatprep.subr.mxu0 0.0
    %4396 = vmatpush1.msra.mxu0 0.0
    %4397 = vmatprep.subr.mxu0 0.0
    %4398 = vmatpush1.msra.mxu0 0.0
    %4399 = vmatprep.subr.mxu0 0.0
    %4400 = vmatpush1.msra.mxu0 0.0
    %4401 = vmatprep.subr.mxu0 0.0
    %4402 = vmatpush1.msra.mxu0 0.0
    %4403 = vmatprep.subr.mxu0 0.0
    %4404 = vmatpush1.msra.mxu0 0.0
    %4405 = vmatprep.subr.mxu0 0.0
    %4406 = vmatpush1.msra.mxu0 0.0
    %4407 = vmatprep.subr.mxu0 0.0
    %4408 = vmatpush1.msra.mxu0 0.0
    %4409 = vmatprep.subr.mxu0 0.0
    %4410 = vmatpush1.msra.mxu0 0.0
    %4411 = vmatprep.subr.mxu0 0.0
    %4412 = vmatpush1.msra.mxu0 0.0
    %4413 = vmatprep.subr.mxu0 0.0
    %4414 = vmatpush1.msra.mxu0 0.0
    %4415 = vmatprep.subr.mxu0 0.0
    %4416 = vmatpush1.msra.mxu0 0.0
    %4417 = vmatprep.subr.mxu0 0.0
    %4418 = vmatpush1.msra.mxu0 0.0
    %4419 = vmatprep.subr.mxu0 0.0
    %4420 = vmatpush1.msra.mxu0 0.0
    %4421 = vmatprep.subr.mxu0 0.0
    %4422 = vmatpush1.msra.mxu0 0.0
    %4423 = vmatprep.subr.mxu0 0.0
    %4424 = vmatpush1.msra.mxu0 0.0
    %4425 = vmatprep.mubr.f32.mxu0 0.0
    %4426 = vmatmul.mubr.f32.gmra.mrb[0].mxu0 %v4356
    %v4427 = vpop.f32.mrb[0].mxu0
    %v4428 = vadd.f32 %v4352, %v4427
    %v4429 = vpop.f32.mrb[0].mxu0
    %4430 = vdwg.mxu0
    %vm4431 = vcmask 74752
    %4432 = vst.msk [vmem:[#allocation7] sm:$0x3] %vm4431, %v4428
    // Predicated region
    $region54: #{cnn_forward.1} parent=1 // pred_check
      _
    $region55: #{cnn_forward.1} parent=1 // pred_check_branch
      %4434 = sbr.rel (0) target = $region57
    $region56: #{cnn_forward.1} parent=1 // pred_region
      %s4436 = ssub.s32 32, 32
      %4437 = vsyncadd [#allocation8], %s4436
      %s4439 = sshll.u32 [#allocation7], 4
      %s4440 = int_to_ptr.vmem [resolvable:$true] %s4439
      %4442 = dma.vmem_to_hbm [thread:$0]  %s4440, 32, %s13, [#allocation8]
    $region57: #{cnn_forward.1} parent=1 // pred_fallthru
      _
    // Predicated region
    $region58: #{cnn_forward.1} parent=1 // pred_check
      _
    $region59: #{cnn_forward.1} parent=1 // pred_check_branch
      %4444 = sbr.rel (0) target = $region61
    $region60: #{cnn_forward.1} parent=1 // pred_region
      %4445 = dma.done [#allocation8], 32
    $region61: #{cnn_forward.1} parent=1 // pred_fallthru
      _
    %4446 = vsyncpa [#allocation8], 1

</llo_original>
